<compile_context>
chip_gen: v7x
topology: tpu7x:2x2x1
jax: 0.10.0
libtpu: 0.0.40
codegen_flags: <defaults>
</compile_context>

<pallas_src>
import jax
import jax.numpy as jnp
from jax import lax
from jax.experimental import pallas as pl
from jax.experimental.pallas import tpu as pltpu


# ----------------------------- Pallas kernel ------------------------------ #

def lstm_fc_kernel(xf_ref,                       # (S*Bp, I)
                   wih0_ref, whh0_ref, b0_ref,   # (I,4H) (H,4H) (1,4H)
                   wih1_ref, whh1_ref, b1_ref,   # (H,4H) (H,4H) (1,4H)
                   fcw_ref, fcb_ref,             # (H,Op) (1,Op)
                   out_ref,                      # (S*Bp, Op)
                   h0_ref, c0_ref, h1_ref, c1_ref,   # (Bp,H) each
                   xproj_ref,                    # (S*Bp, 4H)
                   h1all_ref):                   # (S*Bp, H)
    Bp, H = h0_ref.shape
    SB = xf_ref.shape[0]
    S = SB // Bp

    # PyTorch default: zero initial hidden/cell state when none is passed.
    h0_ref[...] = jnp.zeros_like(h0_ref)
    c0_ref[...] = jnp.zeros_like(c0_ref)
    h1_ref[...] = jnp.zeros_like(h1_ref)
    c1_ref[...] = jnp.zeros_like(c1_ref)

    # Hoist the (sequence-parallel) layer-0 input projection + bias out of the
    # recurrence: one MXU pass over all S*Bp rows.
    xproj_ref[...] = (
        jnp.dot(xf_ref[...], wih0_ref[...], preferred_element_type=jnp.float32)
        + b0_ref[...])

    def activate(gates, c):
        """Fused-gate nonlinearity; gates is (Bp, 4H) in (i, f, g, o) order."""
        i = jax.nn.sigmoid(gates[:, 0 * H:1 * H])
        f = jax.nn.sigmoid(gates[:, 1 * H:2 * H])
        g = jnp.tanh(gates[:, 2 * H:3 * H])
        o = jax.nn.sigmoid(gates[:, 3 * H:4 * H])
        c_new = f * c + i * g
        h_new = o * jnp.tanh(c_new)
        return h_new, c_new

    def step(t, carry):
        r = t * Bp
        if not isinstance(r, int):            # dynamic index → alignment hint
            r = pl.multiple_of(r, Bp)

        # Layer 0: precomputed input part + one fused recurrent matmul.
        g0 = xproj_ref[pl.ds(r, Bp), :] + jnp.dot(
            h0_ref[...], whh0_ref[...], preferred_element_type=jnp.float32)
        h0_new, c0_new = activate(g0, c0_ref[...])
        h0_ref[...] = h0_new
        c0_ref[...] = c0_new

        # Layer 1: fused input + recurrent gates (two matmuls, 4H lanes wide).
        g1 = (jnp.dot(h0_new, wih1_ref[...], preferred_element_type=jnp.float32)
              + jnp.dot(h1_ref[...], whh1_ref[...],
                        preferred_element_type=jnp.float32)
              + b1_ref[...])
        h1_new, c1_new = activate(g1, c1_ref[...])
        h1_ref[...] = h1_new
        c1_ref[...] = c1_new

        # Stash layer-1 output; FC head is applied once after the loop.
        h1all_ref[pl.ds(r, Bp), :] = h1_new
        return carry

    if S <= 16:
        # Fully unrolled — gives the scheduler cross-step visibility.
        for t in range(S):
            step(t, 0)
    else:
        lax.fori_loop(0, S, step, 0, unroll=4)

    # FC head: one lane-dense matmul + a single bulk (unmasked) store.
    out_ref[...] = (
        jnp.dot(h1all_ref[...], fcw_ref[...], preferred_element_type=jnp.float32)
        + fcb_ref[...]).astype(out_ref.dtype)


# ------------------------------ Host wrapper ------------------------------ #

def _round_up(x, m):
    return ((x + m - 1) // m) * m


def lstm_module_forward(x, params):
    S, B, I = x.shape
    H = params["w_hh0"].shape[0]
    O = params["fc_w"].shape[1]

    Bp = _round_up(max(B, 8), 8)      # fill f32 sublanes
    Op = _round_up(O, 128)            # lane-dense output store

    x_p = x if Bp == B else jnp.pad(x, ((0, 0), (0, Bp - B), (0, 0)))
    x_flat = x_p.reshape(S * Bp, I)

    fcw, fcb = params["fc_w"], params["fc_b"]
    if Op != O:
        fcw = jnp.pad(fcw, ((0, 0), (0, Op - O)))
        fcb = jnp.pad(fcb, ((0, 0), (0, Op - O)))

    args = (x_flat,
            params["w_ih0"], params["w_hh0"], params["b0"],
            params["w_ih1"], params["w_hh1"], params["b1"],
            fcw, fcb)

    def full_spec(shape):
        nd = len(shape)
        return pl.BlockSpec(shape, lambda i, nd=nd: (0,) * nd)

    grid_spec = pltpu.PrefetchScalarGridSpec(
        num_scalar_prefetch=0,
        grid=(1,),
        in_specs=[full_spec(a.shape) for a in args],
        out_specs=full_spec((S * Bp, Op)),
        scratch_shapes=[pltpu.VMEM((Bp, H), jnp.float32)] * 4      # h0 c0 h1 c1
        + [pltpu.VMEM((S * Bp, 4 * H), jnp.float32),               # x projection
           pltpu.VMEM((S * Bp, H), jnp.float32)],                  # h1 history
    )
    # TODO(synk): for long sequences on v7x, grid over sequence chunks
    # (pl.when-gated state init) instead of keeping x/out fully VMEM-resident.

    out_flat = pl.pallas_call(
        lstm_fc_kernel,
        out_shape=jax.ShapeDtypeStruct((S * Bp, Op), x.dtype),
        grid_spec=grid_spec,
        compiler_params=pltpu.CompilerParams(
            dimension_semantics=("arbitrary",)),
    )(*args)

    return out_flat.reshape(S, Bp, Op)[:, :B, :O]


# ------------------------- Parameters / reference ------------------------- #

def init_params(key, input_size, hidden_size, output_size):
    """Deterministic init mimicking PyTorch's U(-1/sqrt(H), 1/sqrt(H)).

    Weights are stored pre-fused: (in_dim, 4H) with gate order (i, f, g, o)
    along the last axis; biases are b_ih + b_hh as (1, 4H).
    """
    H = hidden_size
    bound = 1.0 / (H ** 0.5)
    ks = jax.random.split(key, 10)

    def u(k, shape):
        return jax.random.uniform(k, shape, jnp.float32, -bound, bound)

    return dict(
        w_ih0=u(ks[0], (input_size, 4 * H)),
        w_hh0=u(ks[1], (H, 4 * H)),
        b0=u(ks[2], (1, 4 * H)) + u(ks[3], (1, 4 * H)),
        w_ih1=u(ks[4], (H, 4 * H)),
        w_hh1=u(ks[5], (H, 4 * H)),
        b1=u(ks[6], (1, 4 * H)) + u(ks[7], (1, 4 * H)),
        fc_w=u(ks[8], (H, output_size)),
        fc_b=u(ks[9], (1, output_size)),
    )


def reference_forward(x, params):
    """Pure-JAX reference with identical semantics (for correctness check)."""
    S, B, _ = x.shape
    H = params["w_hh0"].shape[0]

    def cell(x_t, h, c, wih, whh, b):
        gates = jnp.dot(x_t, wih) + jnp.dot(h, whh) + b
        i = jax.nn.sigmoid(gates[:, 0 * H:1 * H])
        f = jax.nn.sigmoid(gates[:, 1 * H:2 * H])
        g = jnp.tanh(gates[:, 2 * H:3 * H])
        o = jax.nn.sigmoid(gates[:, 3 * H:4 * H])
        c = f * c + i * g
        h = o * jnp.tanh(c)
        return h, c

    h0 = c0 = h1 = c1 = jnp.zeros((B, H), jnp.float32)
    ys = []
    for t in range(S):
        h0, c0 = cell(x[t], h0, c0,
                      params["w_ih0"], params["w_hh0"], params["b0"])
        h1, c1 = cell(h0, h1, c1,
                      params["w_ih1"], params["w_hh1"], params["b1"])
        ys.append(jnp.dot(h1, params["fc_w"]) + params["fc_b"])
    return jnp.stack(ys, axis=0)


# ---------------------------------- Main ----------------------------------- #

if __name__ == "__main__":
    SEQ, BATCH = 8, 2
    INPUT_SIZE, HIDDEN_SIZE, OUTPUT_SIZE = 16, 32, 1

    key = jax.random.PRNGKey(0)
    kx, kp = jax.random.split(key)
    x = jax.random.normal(kx, (SEQ, BATCH, INPUT_SIZE), jnp.float32)
    params = init_params(kp, INPUT_SIZE, HIDDEN_SIZE, OUTPUT_SIZE)

    out = jax.block_until_ready(lstm_module_forward(x, params))
    ref = jax.block_until_ready(reference_forward(x, params))

    assert out.shape == (SEQ, BATCH, OUTPUT_SIZE), out.shape
    assert jnp.allclose(out, ref, atol=1e-4, rtol=1e-4), \
        float(jnp.max(jnp.abs(out - ref)))

    print("KERNEL_OK")
</pallas_src>

<mosaic_0001>
module attributes {stable_mosaic.version = 11 : i64} {
  func.func @lstm_fc_kernel(%arg0: i32, %arg1: memref<64x16xf32, #tpu.memory_space<vmem>>, %arg2: memref<16x128xf32, #tpu.memory_space<vmem>>, %arg3: memref<32x128xf32, #tpu.memory_space<vmem>>, %arg4: memref<1x128xf32, #tpu.memory_space<vmem>>, %arg5: memref<32x128xf32, #tpu.memory_space<vmem>>, %arg6: memref<32x128xf32, #tpu.memory_space<vmem>>, %arg7: memref<1x128xf32, #tpu.memory_space<vmem>>, %arg8: memref<32x128xf32, #tpu.memory_space<vmem>>, %arg9: memref<1x128xf32, #tpu.memory_space<vmem>>, %arg10: memref<64x128xf32, #tpu.memory_space<vmem>>, %arg11: memref<8x32xf32, #tpu.memory_space<vmem>>, %arg12: memref<8x32xf32, #tpu.memory_space<vmem>>, %arg13: memref<8x32xf32, #tpu.memory_space<vmem>>, %arg14: memref<8x32xf32, #tpu.memory_space<vmem>>, %arg15: memref<64x128xf32, #tpu.memory_space<vmem>>, %arg16: memref<64x32xf32, #tpu.memory_space<vmem>>) attributes {dimension_semantics = [#tpu.dimension_semantics<arbitrary>], iteration_bounds = array<i64: 1>, scalar_prefetch = 0 : i64, scratch_operands = 6 : i64, tpu.core_type = #tpu.core_type<tc>, window_params = [{pipeline_mode = #tpu.pipeline_mode<synchronous>, transform_indices = @transform_0, window_bounds = array<i64: 64, 16>}, {pipeline_mode = #tpu.pipeline_mode<synchronous>, transform_indices = @transform_1, window_bounds = array<i64: 16, 128>}, {pipeline_mode = #tpu.pipeline_mode<synchronous>, transform_indices = @transform_2, window_bounds = array<i64: 32, 128>}, {pipeline_mode = #tpu.pipeline_mode<synchronous>, transform_indices = @transform_3, window_bounds = array<i64: 1, 128>}, {pipeline_mode = #tpu.pipeline_mode<synchronous>, transform_indices = @transform_4, window_bounds = array<i64: 32, 128>}, {pipeline_mode = #tpu.pipeline_mode<synchronous>, transform_indices = @transform_5, window_bounds = array<i64: 32, 128>}, {pipeline_mode = #tpu.pipeline_mode<synchronous>, transform_indices = @transform_6, window_bounds = array<i64: 1, 128>}, {pipeline_mode = #tpu.pipeline_mode<synchronous>, transform_indices = @transform_7, window_bounds = array<i64: 32, 128>}, {pipeline_mode = #tpu.pipeline_mode<synchronous>, transform_indices = @transform_8, window_bounds = array<i64: 1, 128>}, {pipeline_mode = #tpu.pipeline_mode<synchronous>, transform_indices = @transform_9, window_bounds = array<i64: 64, 128>}]} {
    %cst = arith.constant 0.000000e+00 : f32
    %0 = vector.broadcast %cst : f32 to vector<8x32xf32>
    %c0 = arith.constant 0 : index
    %c0_0 = arith.constant 0 : index
    %1 = vector.load %arg11[%c0, %c0_0] : memref<8x32xf32, #tpu.memory_space<vmem>>, vector<8x32xf32>
    tpu.vector_store %arg11[%c0, %c0_0], %0 {strides = array<i32>} : memref<8x32xf32, #tpu.memory_space<vmem>>, vector<8x32xf32>,
    %cst_1 = arith.constant 0.000000e+00 : f32
    %2 = vector.broadcast %cst_1 : f32 to vector<8x32xf32>
    %c0_2 = arith.constant 0 : index
    %c0_3 = arith.constant 0 : index
    %3 = vector.load %arg12[%c0_2, %c0_3] : memref<8x32xf32, #tpu.memory_space<vmem>>, vector<8x32xf32>
    tpu.vector_store %arg12[%c0_2, %c0_3], %2 {strides = array<i32>} : memref<8x32xf32, #tpu.memory_space<vmem>>, vector<8x32xf32>,
    %cst_4 = arith.constant 0.000000e+00 : f32
    %4 = vector.broadcast %cst_4 : f32 to vector<8x32xf32>
    %c0_5 = arith.constant 0 : index
    %c0_6 = arith.constant 0 : index
    %5 = vector.load %arg13[%c0_5, %c0_6] : memref<8x32xf32, #tpu.memory_space<vmem>>, vector<8x32xf32>
    tpu.vector_store %arg13[%c0_5, %c0_6], %4 {strides = array<i32>} : memref<8x32xf32, #tpu.memory_space<vmem>>, vector<8x32xf32>,
    %cst_7 = arith.constant 0.000000e+00 : f32
    %6 = vector.broadcast %cst_7 : f32 to vector<8x32xf32>
    %c0_8 = arith.constant 0 : index
    %c0_9 = arith.constant 0 : index
    %7 = vector.load %arg14[%c0_8, %c0_9] : memref<8x32xf32, #tpu.memory_space<vmem>>, vector<8x32xf32>
    tpu.vector_store %arg14[%c0_8, %c0_9], %6 {strides = array<i32>} : memref<8x32xf32, #tpu.memory_space<vmem>>, vector<8x32xf32>,
    %c0_10 = arith.constant 0 : index
    %c0_11 = arith.constant 0 : index
    %8 = vector.load %arg1[%c0_10, %c0_11] : memref<64x16xf32, #tpu.memory_space<vmem>>, vector<64x16xf32>
    %c0_12 = arith.constant 0 : index
    %c0_13 = arith.constant 0 : index
    %9 = vector.load %arg2[%c0_12, %c0_13] : memref<16x128xf32, #tpu.memory_space<vmem>>, vector<16x128xf32>
    %cst_14 = arith.constant dense<0.000000e+00> : vector<64x128xf32>
    %10 = tpu.matmul %8, %9, %cst_14 {dimension_numbers = #tpu.dot_dimension_numbers<[1], [0], [0], [1], [0, 0, 1, 1], [], []>} : vector<64x16xf32>, vector<16x128xf32>, vector<64x128xf32> -> vector<64x128xf32>
    %c0_15 = arith.constant 0 : index
    %c0_16 = arith.constant 0 : index
    %11 = vector.load %arg4[%c0_15, %c0_16] : memref<1x128xf32, #tpu.memory_space<vmem>>, vector<1x128xf32>
    %12 = vector.broadcast %11 : vector<1x128xf32> to vector<64x128xf32>
    %13 = arith.addf %10, %12 : vector<64x128xf32>
    %c0_17 = arith.constant 0 : index
    %c0_18 = arith.constant 0 : index
    %14 = vector.load %arg15[%c0_17, %c0_18] : memref<64x128xf32, #tpu.memory_space<vmem>>, vector<64x128xf32>
    tpu.vector_store %arg15[%c0_17, %c0_18], %13 {strides = array<i32>} : memref<64x128xf32, #tpu.memory_space<vmem>>, vector<64x128xf32>,
    %c0_19 = arith.constant 0 : index
    %c0_20 = arith.constant 0 : index
    %15 = vector.load %arg15[%c0_19, %c0_20] : memref<64x128xf32, #tpu.memory_space<vmem>>, vector<8x128xf32>
    %c0_21 = arith.constant 0 : index
    %c0_22 = arith.constant 0 : index
    %16 = vector.load %arg11[%c0_21, %c0_22] : memref<8x32xf32, #tpu.memory_space<vmem>>, vector<8x32xf32>
    %c0_23 = arith.constant 0 : index
    %c0_24 = arith.constant 0 : index
    %17 = vector.load %arg3[%c0_23, %c0_24] : memref<32x128xf32, #tpu.memory_space<vmem>>, vector<32x128xf32>
    %cst_25 = arith.constant dense<0.000000e+00> : vector<8x128xf32>
    %18 = tpu.matmul %16, %17, %cst_25 {dimension_numbers = #tpu.dot_dimension_numbers<[1], [0], [0], [1], [0, 0, 1, 1], [], []>} : vector<8x32xf32>, vector<32x128xf32>, vector<8x128xf32> -> vector<8x128xf32>
    %19 = arith.addf %15, %18 : vector<8x128xf32>
    %c0_26 = arith.constant 0 : index
    %c0_27 = arith.constant 0 : index
    %20 = vector.load %arg12[%c0_26, %c0_27] : memref<8x32xf32, #tpu.memory_space<vmem>>, vector<8x32xf32>
    %21 = vector.extract_strided_slice %19 {offsets = [0, 0], sizes = [8, 32], strides = [1, 1]} : vector<8x128xf32> to vector<8x32xf32>
    %22 = arith.negf %21 : vector<8x32xf32>
    %23 = math.exp %22 : vector<8x32xf32>
    %cst_28 = arith.constant 1.000000e+00 : f32
    %24 = vector.broadcast %cst_28 : f32 to vector<8x32xf32>
    %25 = arith.addf %24, %23 : vector<8x32xf32>
    %26 = arith.divf %24, %25 : vector<8x32xf32>
    %27 = vector.extract_strided_slice %19 {offsets = [0, 32], sizes = [8, 32], strides = [1, 1]} : vector<8x128xf32> to vector<8x32xf32>
    %28 = arith.negf %27 : vector<8x32xf32>
    %29 = math.exp %28 : vector<8x32xf32>
    %cst_29 = arith.constant 1.000000e+00 : f32
    %30 = vector.broadcast %cst_29 : f32 to vector<8x32xf32>
    %31 = arith.addf %30, %29 : vector<8x32xf32>
    %32 = arith.divf %30, %31 : vector<8x32xf32>
    %33 = vector.extract_strided_slice %19 {offsets = [0, 64], sizes = [8, 32], strides = [1, 1]} : vector<8x128xf32> to vector<8x32xf32>
    %34 = math.tanh %33 : vector<8x32xf32>
    %35 = vector.extract_strided_slice %19 {offsets = [0, 96], sizes = [8, 32], strides = [1, 1]} : vector<8x128xf32> to vector<8x32xf32>
    %36 = arith.negf %35 : vector<8x32xf32>
    %37 = math.exp %36 : vector<8x32xf32>
    %cst_30 = arith.constant 1.000000e+00 : f32
    %38 = vector.broadcast %cst_30 : f32 to vector<8x32xf32>
    %39 = arith.addf %38, %37 : vector<8x32xf32>
    %40 = arith.divf %38, %39 : vector<8x32xf32>
    %41 = arith.mulf %32, %20 : vector<8x32xf32>
    %42 = arith.mulf %26, %34 : vector<8x32xf32>
    %43 = arith.addf %41, %42 : vector<8x32xf32>
    %44 = math.tanh %43 : vector<8x32xf32>
    %45 = arith.mulf %40, %44 : vector<8x32xf32>
    %c0_31 = arith.constant 0 : index
    %c0_32 = arith.constant 0 : index
    %46 = vector.load %arg11[%c0_31, %c0_32] : memref<8x32xf32, #tpu.memory_space<vmem>>, vector<8x32xf32>
    tpu.vector_store %arg11[%c0_31, %c0_32], %45 {strides = array<i32>} : memref<8x32xf32, #tpu.memory_space<vmem>>, vector<8x32xf32>,
    %c0_33 = arith.constant 0 : index
    %c0_34 = arith.constant 0 : index
    %47 = vector.load %arg12[%c0_33, %c0_34] : memref<8x32xf32, #tpu.memory_space<vmem>>, vector<8x32xf32>
    tpu.vector_store %arg12[%c0_33, %c0_34], %43 {strides = array<i32>} : memref<8x32xf32, #tpu.memory_space<vmem>>, vector<8x32xf32>,
    %c0_35 = arith.constant 0 : index
    %c0_36 = arith.constant 0 : index
    %48 = vector.load %arg5[%c0_35, %c0_36] : memref<32x128xf32, #tpu.memory_space<vmem>>, vector<32x128xf32>
    %cst_37 = arith.constant dense<0.000000e+00> : vector<8x128xf32>
    %49 = tpu.matmul %45, %48, %cst_37 {dimension_numbers = #tpu.dot_dimension_numbers<[1], [0], [0], [1], [0, 0, 1, 1], [], []>} : vector<8x32xf32>, vector<32x128xf32>, vector<8x128xf32> -> vector<8x128xf32>
    %c0_38 = arith.constant 0 : index
    %c0_39 = arith.constant 0 : index
    %50 = vector.load %arg13[%c0_38, %c0_39] : memref<8x32xf32, #tpu.memory_space<vmem>>, vector<8x32xf32>
    %c0_40 = arith.constant 0 : index
    %c0_41 = arith.constant 0 : index
    %51 = vector.load %arg6[%c0_40, %c0_41] : memref<32x128xf32, #tpu.memory_space<vmem>>, vector<32x128xf32>
    %cst_42 = arith.constant dense<0.000000e+00> : vector<8x128xf32>
    %52 = tpu.matmul %50, %51, %cst_42 {dimension_numbers = #tpu.dot_dimension_numbers<[1], [0], [0], [1], [0, 0, 1, 1], [], []>} : vector<8x32xf32>, vector<32x128xf32>, vector<8x128xf32> -> vector<8x128xf32>
    %53 = arith.addf %49, %52 : vector<8x128xf32>
    %c0_43 = arith.constant 0 : index
    %c0_44 = arith.constant 0 : index
    %54 = vector.load %arg7[%c0_43, %c0_44] : memref<1x128xf32, #tpu.memory_space<vmem>>, vector<1x128xf32>
    %55 = vector.broadcast %54 : vector<1x128xf32> to vector<8x128xf32>
    %56 = arith.addf %53, %55 : vector<8x128xf32>
    %c0_45 = arith.constant 0 : index
    %c0_46 = arith.constant 0 : index
    %57 = vector.load %arg14[%c0_45, %c0_46] : memref<8x32xf32, #tpu.memory_space<vmem>>, vector<8x32xf32>
    %58 = vector.extract_strided_slice %56 {offsets = [0, 0], sizes = [8, 32], strides = [1, 1]} : vector<8x128xf32> to vector<8x32xf32>
    %59 = arith.negf %58 : vector<8x32xf32>
    %60 = math.exp %59 : vector<8x32xf32>
    %cst_47 = arith.constant 1.000000e+00 : f32
    %61 = vector.broadcast %cst_47 : f32 to vector<8x32xf32>
    %62 = arith.addf %61, %60 : vector<8x32xf32>
    %63 = arith.divf %61, %62 : vector<8x32xf32>
    %64 = vector.extract_strided_slice %56 {offsets = [0, 32], sizes = [8, 32], strides = [1, 1]} : vector<8x128xf32> to vector<8x32xf32>
    %65 = arith.negf %64 : vector<8x32xf32>
    %66 = math.exp %65 : vector<8x32xf32>
    %cst_48 = arith.constant 1.000000e+00 : f32
    %67 = vector.broadcast %cst_48 : f32 to vector<8x32xf32>
    %68 = arith.addf %67, %66 : vector<8x32xf32>
    %69 = arith.divf %67, %68 : vector<8x32xf32>
    %70 = vector.extract_strided_slice %56 {offsets = [0, 64], sizes = [8, 32], strides = [1, 1]} : vector<8x128xf32> to vector<8x32xf32>
    %71 = math.tanh %70 : vector<8x32xf32>
    %72 = vector.extract_strided_slice %56 {offsets = [0, 96], sizes = [8, 32], strides = [1, 1]} : vector<8x128xf32> to vector<8x32xf32>
    %73 = arith.negf %72 : vector<8x32xf32>
    %74 = math.exp %73 : vector<8x32xf32>
    %cst_49 = arith.constant 1.000000e+00 : f32
    %75 = vector.broadcast %cst_49 : f32 to vector<8x32xf32>
    %76 = arith.addf %75, %74 : vector<8x32xf32>
    %77 = arith.divf %75, %76 : vector<8x32xf32>
    %78 = arith.mulf %69, %57 : vector<8x32xf32>
    %79 = arith.mulf %63, %71 : vector<8x32xf32>
    %80 = arith.addf %78, %79 : vector<8x32xf32>
    %81 = math.tanh %80 : vector<8x32xf32>
    %82 = arith.mulf %77, %81 : vector<8x32xf32>
    %c0_50 = arith.constant 0 : index
    %c0_51 = arith.constant 0 : index
    %83 = vector.load %arg13[%c0_50, %c0_51] : memref<8x32xf32, #tpu.memory_space<vmem>>, vector<8x32xf32>
    tpu.vector_store %arg13[%c0_50, %c0_51], %82 {strides = array<i32>} : memref<8x32xf32, #tpu.memory_space<vmem>>, vector<8x32xf32>,
    %c0_52 = arith.constant 0 : index
    %c0_53 = arith.constant 0 : index
    %84 = vector.load %arg14[%c0_52, %c0_53] : memref<8x32xf32, #tpu.memory_space<vmem>>, vector<8x32xf32>
    tpu.vector_store %arg14[%c0_52, %c0_53], %80 {strides = array<i32>} : memref<8x32xf32, #tpu.memory_space<vmem>>, vector<8x32xf32>,
    %c0_54 = arith.constant 0 : index
    %c0_55 = arith.constant 0 : index
    %85 = vector.load %arg16[%c0_54, %c0_55] : memref<64x32xf32, #tpu.memory_space<vmem>>, vector<8x32xf32>
    tpu.vector_store %arg16[%c0_54, %c0_55], %82 {strides = array<i32>} : memref<64x32xf32, #tpu.memory_space<vmem>>, vector<8x32xf32>,
    %c8 = arith.constant 8 : index
    %c0_56 = arith.constant 0 : index
    %86 = vector.load %arg15[%c8, %c0_56] : memref<64x128xf32, #tpu.memory_space<vmem>>, vector<8x128xf32>
    %c0_57 = arith.constant 0 : index
    %c0_58 = arith.constant 0 : index
    %87 = vector.load %arg11[%c0_57, %c0_58] : memref<8x32xf32, #tpu.memory_space<vmem>>, vector<8x32xf32>
    %c0_59 = arith.constant 0 : index
    %c0_60 = arith.constant 0 : index
    %88 = vector.load %arg3[%c0_59, %c0_60] : memref<32x128xf32, #tpu.memory_space<vmem>>, vector<32x128xf32>
    %cst_61 = arith.constant dense<0.000000e+00> : vector<8x128xf32>
    %89 = tpu.matmul %87, %88, %cst_61 {dimension_numbers = #tpu.dot_dimension_numbers<[1], [0], [0], [1], [0, 0, 1, 1], [], []>} : vector<8x32xf32>, vector<32x128xf32>, vector<8x128xf32> -> vector<8x128xf32>
    %90 = arith.addf %86, %89 : vector<8x128xf32>
    %c0_62 = arith.constant 0 : index
    %c0_63 = arith.constant 0 : index
    %91 = vector.load %arg12[%c0_62, %c0_63] : memref<8x32xf32, #tpu.memory_space<vmem>>, vector<8x32xf32>
    %92 = vector.extract_strided_slice %90 {offsets = [0, 0], sizes = [8, 32], strides = [1, 1]} : vector<8x128xf32> to vector<8x32xf32>
    %93 = arith.negf %92 : vector<8x32xf32>
    %94 = math.exp %93 : vector<8x32xf32>
    %cst_64 = arith.constant 1.000000e+00 : f32
    %95 = vector.broadcast %cst_64 : f32 to vector<8x32xf32>
    %96 = arith.addf %95, %94 : vector<8x32xf32>
    %97 = arith.divf %95, %96 : vector<8x32xf32>
    %98 = vector.extract_strided_slice %90 {offsets = [0, 32], sizes = [8, 32], strides = [1, 1]} : vector<8x128xf32> to vector<8x32xf32>
    %99 = arith.negf %98 : vector<8x32xf32>
    %100 = math.exp %99 : vector<8x32xf32>
    %cst_65 = arith.constant 1.000000e+00 : f32
    %101 = vector.broadcast %cst_65 : f32 to vector<8x32xf32>
    %102 = arith.addf %101, %100 : vector<8x32xf32>
    %103 = arith.divf %101, %102 : vector<8x32xf32>
    %104 = vector.extract_strided_slice %90 {offsets = [0, 64], sizes = [8, 32], strides = [1, 1]} : vector<8x128xf32> to vector<8x32xf32>
    %105 = math.tanh %104 : vector<8x32xf32>
    %106 = vector.extract_strided_slice %90 {offsets = [0, 96], sizes = [8, 32], strides = [1, 1]} : vector<8x128xf32> to vector<8x32xf32>
    %107 = arith.negf %106 : vector<8x32xf32>
    %108 = math.exp %107 : vector<8x32xf32>
    %cst_66 = arith.constant 1.000000e+00 : f32
    %109 = vector.broadcast %cst_66 : f32 to vector<8x32xf32>
    %110 = arith.addf %109, %108 : vector<8x32xf32>
    %111 = arith.divf %109, %110 : vector<8x32xf32>
    %112 = arith.mulf %103, %91 : vector<8x32xf32>
    %113 = arith.mulf %97, %105 : vector<8x32xf32>
    %114 = arith.addf %112, %113 : vector<8x32xf32>
    %115 = math.tanh %114 : vector<8x32xf32>
    %116 = arith.mulf %111, %115 : vector<8x32xf32>
    %c0_67 = arith.constant 0 : index
    %c0_68 = arith.constant 0 : index
    %117 = vector.load %arg11[%c0_67, %c0_68] : memref<8x32xf32, #tpu.memory_space<vmem>>, vector<8x32xf32>
    tpu.vector_store %arg11[%c0_67, %c0_68], %116 {strides = array<i32>} : memref<8x32xf32, #tpu.memory_space<vmem>>, vector<8x32xf32>,
    %c0_69 = arith.constant 0 : index
    %c0_70 = arith.constant 0 : index
    %118 = vector.load %arg12[%c0_69, %c0_70] : memref<8x32xf32, #tpu.memory_space<vmem>>, vector<8x32xf32>
    tpu.vector_store %arg12[%c0_69, %c0_70], %114 {strides = array<i32>} : memref<8x32xf32, #tpu.memory_space<vmem>>, vector<8x32xf32>,
    %c0_71 = arith.constant 0 : index
    %c0_72 = arith.constant 0 : index
    %119 = vector.load %arg5[%c0_71, %c0_72] : memref<32x128xf32, #tpu.memory_space<vmem>>, vector<32x128xf32>
    %cst_73 = arith.constant dense<0.000000e+00> : vector<8x128xf32>
    %120 = tpu.matmul %116, %119, %cst_73 {dimension_numbers = #tpu.dot_dimension_numbers<[1], [0], [0], [1], [0, 0, 1, 1], [], []>} : vector<8x32xf32>, vector<32x128xf32>, vector<8x128xf32> -> vector<8x128xf32>
    %c0_74 = arith.constant 0 : index
    %c0_75 = arith.constant 0 : index
    %121 = vector.load %arg13[%c0_74, %c0_75] : memref<8x32xf32, #tpu.memory_space<vmem>>, vector<8x32xf32>
    %c0_76 = arith.constant 0 : index
    %c0_77 = arith.constant 0 : index
    %122 = vector.load %arg6[%c0_76, %c0_77] : memref<32x128xf32, #tpu.memory_space<vmem>>, vector<32x128xf32>
    %cst_78 = arith.constant dense<0.000000e+00> : vector<8x128xf32>
    %123 = tpu.matmul %121, %122, %cst_78 {dimension_numbers = #tpu.dot_dimension_numbers<[1], [0], [0], [1], [0, 0, 1, 1], [], []>} : vector<8x32xf32>, vector<32x128xf32>, vector<8x128xf32> -> vector<8x128xf32>
    %124 = arith.addf %120, %123 : vector<8x128xf32>
    %c0_79 = arith.constant 0 : index
    %c0_80 = arith.constant 0 : index
    %125 = vector.load %arg7[%c0_79, %c0_80] : memref<1x128xf32, #tpu.memory_space<vmem>>, vector<1x128xf32>
    %126 = vector.broadcast %125 : vector<1x128xf32> to vector<8x128xf32>
    %127 = arith.addf %124, %126 : vector<8x128xf32>
    %c0_81 = arith.constant 0 : index
    %c0_82 = arith.constant 0 : index
    %128 = vector.load %arg14[%c0_81, %c0_82] : memref<8x32xf32, #tpu.memory_space<vmem>>, vector<8x32xf32>
    %129 = vector.extract_strided_slice %127 {offsets = [0, 0], sizes = [8, 32], strides = [1, 1]} : vector<8x128xf32> to vector<8x32xf32>
    %130 = arith.negf %129 : vector<8x32xf32>
    %131 = math.exp %130 : vector<8x32xf32>
    %cst_83 = arith.constant 1.000000e+00 : f32
    %132 = vector.broadcast %cst_83 : f32 to vector<8x32xf32>
    %133 = arith.addf %132, %131 : vector<8x32xf32>
    %134 = arith.divf %132, %133 : vector<8x32xf32>
    %135 = vector.extract_strided_slice %127 {offsets = [0, 32], sizes = [8, 32], strides = [1, 1]} : vector<8x128xf32> to vector<8x32xf32>
    %136 = arith.negf %135 : vector<8x32xf32>
    %137 = math.exp %136 : vector<8x32xf32>
    %cst_84 = arith.constant 1.000000e+00 : f32
    %138 = vector.broadcast %cst_84 : f32 to vector<8x32xf32>
    %139 = arith.addf %138, %137 : vector<8x32xf32>
    %140 = arith.divf %138, %139 : vector<8x32xf32>
    %141 = vector.extract_strided_slice %127 {offsets = [0, 64], sizes = [8, 32], strides = [1, 1]} : vector<8x128xf32> to vector<8x32xf32>
    %142 = math.tanh %141 : vector<8x32xf32>
    %143 = vector.extract_strided_slice %127 {offsets = [0, 96], sizes = [8, 32], strides = [1, 1]} : vector<8x128xf32> to vector<8x32xf32>
    %144 = arith.negf %143 : vector<8x32xf32>
    %145 = math.exp %144 : vector<8x32xf32>
    %cst_85 = arith.constant 1.000000e+00 : f32
    %146 = vector.broadcast %cst_85 : f32 to vector<8x32xf32>
    %147 = arith.addf %146, %145 : vector<8x32xf32>
    %148 = arith.divf %146, %147 : vector<8x32xf32>
    %149 = arith.mulf %140, %128 : vector<8x32xf32>
    %150 = arith.mulf %134, %142 : vector<8x32xf32>
    %151 = arith.addf %149, %150 : vector<8x32xf32>
    %152 = math.tanh %151 : vector<8x32xf32>
    %153 = arith.mulf %148, %152 : vector<8x32xf32>
    %c0_86 = arith.constant 0 : index
    %c0_87 = arith.constant 0 : index
    %154 = vector.load %arg13[%c0_86, %c0_87] : memref<8x32xf32, #tpu.memory_space<vmem>>, vector<8x32xf32>
    tpu.vector_store %arg13[%c0_86, %c0_87], %153 {strides = array<i32>} : memref<8x32xf32, #tpu.memory_space<vmem>>, vector<8x32xf32>,
    %c0_88 = arith.constant 0 : index
    %c0_89 = arith.constant 0 : index
    %155 = vector.load %arg14[%c0_88, %c0_89] : memref<8x32xf32, #tpu.memory_space<vmem>>, vector<8x32xf32>
    tpu.vector_store %arg14[%c0_88, %c0_89], %151 {strides = array<i32>} : memref<8x32xf32, #tpu.memory_space<vmem>>, vector<8x32xf32>,
    %c8_90 = arith.constant 8 : index
    %c0_91 = arith.constant 0 : index
    %156 = vector.load %arg16[%c8_90, %c0_91] : memref<64x32xf32, #tpu.memory_space<vmem>>, vector<8x32xf32>
    tpu.vector_store %arg16[%c8_90, %c0_91], %153 {strides = array<i32>} : memref<64x32xf32, #tpu.memory_space<vmem>>, vector<8x32xf32>,
    %c16 = arith.constant 16 : index
    %c0_92 = arith.constant 0 : index
    %157 = vector.load %arg15[%c16, %c0_92] : memref<64x128xf32, #tpu.memory_space<vmem>>, vector<8x128xf32>
    %c0_93 = arith.constant 0 : index
    %c0_94 = arith.constant 0 : index
    %158 = vector.load %arg11[%c0_93, %c0_94] : memref<8x32xf32, #tpu.memory_space<vmem>>, vector<8x32xf32>
    %c0_95 = arith.constant 0 : index
    %c0_96 = arith.constant 0 : index
    %159 = vector.load %arg3[%c0_95, %c0_96] : memref<32x128xf32, #tpu.memory_space<vmem>>, vector<32x128xf32>
    %cst_97 = arith.constant dense<0.000000e+00> : vector<8x128xf32>
    %160 = tpu.matmul %158, %159, %cst_97 {dimension_numbers = #tpu.dot_dimension_numbers<[1], [0], [0], [1], [0, 0, 1, 1], [], []>} : vector<8x32xf32>, vector<32x128xf32>, vector<8x128xf32> -> vector<8x128xf32>
    %161 = arith.addf %157, %160 : vector<8x128xf32>
    %c0_98 = arith.constant 0 : index
    %c0_99 = arith.constant 0 : index
    %162 = vector.load %arg12[%c0_98, %c0_99] : memref<8x32xf32, #tpu.memory_space<vmem>>, vector<8x32xf32>
    %163 = vector.extract_strided_slice %161 {offsets = [0, 0], sizes = [8, 32], strides = [1, 1]} : vector<8x128xf32> to vector<8x32xf32>
    %164 = arith.negf %163 : vector<8x32xf32>
    %165 = math.exp %164 : vector<8x32xf32>
    %cst_100 = arith.constant 1.000000e+00 : f32
    %166 = vector.broadcast %cst_100 : f32 to vector<8x32xf32>
    %167 = arith.addf %166, %165 : vector<8x32xf32>
    %168 = arith.divf %166, %167 : vector<8x32xf32>
    %169 = vector.extract_strided_slice %161 {offsets = [0, 32], sizes = [8, 32], strides = [1, 1]} : vector<8x128xf32> to vector<8x32xf32>
    %170 = arith.negf %169 : vector<8x32xf32>
    %171 = math.exp %170 : vector<8x32xf32>
    %cst_101 = arith.constant 1.000000e+00 : f32
    %172 = vector.broadcast %cst_101 : f32 to vector<8x32xf32>
    %173 = arith.addf %172, %171 : vector<8x32xf32>
    %174 = arith.divf %172, %173 : vector<8x32xf32>
    %175 = vector.extract_strided_slice %161 {offsets = [0, 64], sizes = [8, 32], strides = [1, 1]} : vector<8x128xf32> to vector<8x32xf32>
    %176 = math.tanh %175 : vector<8x32xf32>
    %177 = vector.extract_strided_slice %161 {offsets = [0, 96], sizes = [8, 32], strides = [1, 1]} : vector<8x128xf32> to vector<8x32xf32>
    %178 = arith.negf %177 : vector<8x32xf32>
    %179 = math.exp %178 : vector<8x32xf32>
    %cst_102 = arith.constant 1.000000e+00 : f32
    %180 = vector.broadcast %cst_102 : f32 to vector<8x32xf32>
    %181 = arith.addf %180, %179 : vector<8x32xf32>
    %182 = arith.divf %180, %181 : vector<8x32xf32>
    %183 = arith.mulf %174, %162 : vector<8x32xf32>
    %184 = arith.mulf %168, %176 : vector<8x32xf32>
    %185 = arith.addf %183, %184 : vector<8x32xf32>
    %186 = math.tanh %185 : vector<8x32xf32>
    %187 = arith.mulf %182, %186 : vector<8x32xf32>
    %c0_103 = arith.constant 0 : index
    %c0_104 = arith.constant 0 : index
    %188 = vector.load %arg11[%c0_103, %c0_104] : memref<8x32xf32, #tpu.memory_space<vmem>>, vector<8x32xf32>
    tpu.vector_store %arg11[%c0_103, %c0_104], %187 {strides = array<i32>} : memref<8x32xf32, #tpu.memory_space<vmem>>, vector<8x32xf32>,
    %c0_105 = arith.constant 0 : index
    %c0_106 = arith.constant 0 : index
    %189 = vector.load %arg12[%c0_105, %c0_106] : memref<8x32xf32, #tpu.memory_space<vmem>>, vector<8x32xf32>
    tpu.vector_store %arg12[%c0_105, %c0_106], %185 {strides = array<i32>} : memref<8x32xf32, #tpu.memory_space<vmem>>, vector<8x32xf32>,
    %c0_107 = arith.constant 0 : index
    %c0_108 = arith.constant 0 : index
    %190 = vector.load %arg5[%c0_107, %c0_108] : memref<32x128xf32, #tpu.memory_space<vmem>>, vector<32x128xf32>
    %cst_109 = arith.constant dense<0.000000e+00> : vector<8x128xf32>
    %191 = tpu.matmul %187, %190, %cst_109 {dimension_numbers = #tpu.dot_dimension_numbers<[1], [0], [0], [1], [0, 0, 1, 1], [], []>} : vector<8x32xf32>, vector<32x128xf32>, vector<8x128xf32> -> vector<8x128xf32>
    %c0_110 = arith.constant 0 : index
    %c0_111 = arith.constant 0 : index
    %192 = vector.load %arg13[%c0_110, %c0_111] : memref<8x32xf32, #tpu.memory_space<vmem>>, vector<8x32xf32>
    %c0_112 = arith.constant 0 : index
    %c0_113 = arith.constant 0 : index
    %193 = vector.load %arg6[%c0_112, %c0_113] : memref<32x128xf32, #tpu.memory_space<vmem>>, vector<32x128xf32>
    %cst_114 = arith.constant dense<0.000000e+00> : vector<8x128xf32>
    %194 = tpu.matmul %192, %193, %cst_114 {dimension_numbers = #tpu.dot_dimension_numbers<[1], [0], [0], [1], [0, 0, 1, 1], [], []>} : vector<8x32xf32>, vector<32x128xf32>, vector<8x128xf32> -> vector<8x128xf32>
    %195 = arith.addf %191, %194 : vector<8x128xf32>
    %c0_115 = arith.constant 0 : index
    %c0_116 = arith.constant 0 : index
    %196 = vector.load %arg7[%c0_115, %c0_116] : memref<1x128xf32, #tpu.memory_space<vmem>>, vector<1x128xf32>
    %197 = vector.broadcast %196 : vector<1x128xf32> to vector<8x128xf32>
    %198 = arith.addf %195, %197 : vector<8x128xf32>
    %c0_117 = arith.constant 0 : index
    %c0_118 = arith.constant 0 : index
    %199 = vector.load %arg14[%c0_117, %c0_118] : memref<8x32xf32, #tpu.memory_space<vmem>>, vector<8x32xf32>
    %200 = vector.extract_strided_slice %198 {offsets = [0, 0], sizes = [8, 32], strides = [1, 1]} : vector<8x128xf32> to vector<8x32xf32>
    %201 = arith.negf %200 : vector<8x32xf32>
    %202 = math.exp %201 : vector<8x32xf32>
    %cst_119 = arith.constant 1.000000e+00 : f32
    %203 = vector.broadcast %cst_119 : f32 to vector<8x32xf32>
    %204 = arith.addf %203, %202 : vector<8x32xf32>
    %205 = arith.divf %203, %204 : vector<8x32xf32>
    %206 = vector.extract_strided_slice %198 {offsets = [0, 32], sizes = [8, 32], strides = [1, 1]} : vector<8x128xf32> to vector<8x32xf32>
    %207 = arith.negf %206 : vector<8x32xf32>
    %208 = math.exp %207 : vector<8x32xf32>
    %cst_120 = arith.constant 1.000000e+00 : f32
    %209 = vector.broadcast %cst_120 : f32 to vector<8x32xf32>
    %210 = arith.addf %209, %208 : vector<8x32xf32>
    %211 = arith.divf %209, %210 : vector<8x32xf32>
    %212 = vector.extract_strided_slice %198 {offsets = [0, 64], sizes = [8, 32], strides = [1, 1]} : vector<8x128xf32> to vector<8x32xf32>
    %213 = math.tanh %212 : vector<8x32xf32>
    %214 = vector.extract_strided_slice %198 {offsets = [0, 96], sizes = [8, 32], strides = [1, 1]} : vector<8x128xf32> to vector<8x32xf32>
    %215 = arith.negf %214 : vector<8x32xf32>
    %216 = math.exp %215 : vector<8x32xf32>
    %cst_121 = arith.constant 1.000000e+00 : f32
    %217 = vector.broadcast %cst_121 : f32 to vector<8x32xf32>
    %218 = arith.addf %217, %216 : vector<8x32xf32>
    %219 = arith.divf %217, %218 : vector<8x32xf32>
    %220 = arith.mulf %211, %199 : vector<8x32xf32>
    %221 = arith.mulf %205, %213 : vector<8x32xf32>
    %222 = arith.addf %220, %221 : vector<8x32xf32>
    %223 = math.tanh %222 : vector<8x32xf32>
    %224 = arith.mulf %219, %223 : vector<8x32xf32>
    %c0_122 = arith.constant 0 : index
    %c0_123 = arith.constant 0 : index
    %225 = vector.load %arg13[%c0_122, %c0_123] : memref<8x32xf32, #tpu.memory_space<vmem>>, vector<8x32xf32>
    tpu.vector_store %arg13[%c0_122, %c0_123], %224 {strides = array<i32>} : memref<8x32xf32, #tpu.memory_space<vmem>>, vector<8x32xf32>,
    %c0_124 = arith.constant 0 : index
    %c0_125 = arith.constant 0 : index
    %226 = vector.load %arg14[%c0_124, %c0_125] : memref<8x32xf32, #tpu.memory_space<vmem>>, vector<8x32xf32>
    tpu.vector_store %arg14[%c0_124, %c0_125], %222 {strides = array<i32>} : memref<8x32xf32, #tpu.memory_space<vmem>>, vector<8x32xf32>,
    %c16_126 = arith.constant 16 : index
    %c0_127 = arith.constant 0 : index
    %227 = vector.load %arg16[%c16_126, %c0_127] : memref<64x32xf32, #tpu.memory_space<vmem>>, vector<8x32xf32>
    tpu.vector_store %arg16[%c16_126, %c0_127], %224 {strides = array<i32>} : memref<64x32xf32, #tpu.memory_space<vmem>>, vector<8x32xf32>,
    %c24 = arith.constant 24 : index
    %c0_128 = arith.constant 0 : index
    %228 = vector.load %arg15[%c24, %c0_128] : memref<64x128xf32, #tpu.memory_space<vmem>>, vector<8x128xf32>
    %c0_129 = arith.constant 0 : index
    %c0_130 = arith.constant 0 : index
    %229 = vector.load %arg11[%c0_129, %c0_130] : memref<8x32xf32, #tpu.memory_space<vmem>>, vector<8x32xf32>
    %c0_131 = arith.constant 0 : index
    %c0_132 = arith.constant 0 : index
    %230 = vector.load %arg3[%c0_131, %c0_132] : memref<32x128xf32, #tpu.memory_space<vmem>>, vector<32x128xf32>
    %cst_133 = arith.constant dense<0.000000e+00> : vector<8x128xf32>
    %231 = tpu.matmul %229, %230, %cst_133 {dimension_numbers = #tpu.dot_dimension_numbers<[1], [0], [0], [1], [0, 0, 1, 1], [], []>} : vector<8x32xf32>, vector<32x128xf32>, vector<8x128xf32> -> vector<8x128xf32>
    %232 = arith.addf %228, %231 : vector<8x128xf32>
    %c0_134 = arith.constant 0 : index
    %c0_135 = arith.constant 0 : index
    %233 = vector.load %arg12[%c0_134, %c0_135] : memref<8x32xf32, #tpu.memory_space<vmem>>, vector<8x32xf32>
    %234 = vector.extract_strided_slice %232 {offsets = [0, 0], sizes = [8, 32], strides = [1, 1]} : vector<8x128xf32> to vector<8x32xf32>
    %235 = arith.negf %234 : vector<8x32xf32>
    %236 = math.exp %235 : vector<8x32xf32>
    %cst_136 = arith.constant 1.000000e+00 : f32
    %237 = vector.broadcast %cst_136 : f32 to vector<8x32xf32>
    %238 = arith.addf %237, %236 : vector<8x32xf32>
    %239 = arith.divf %237, %238 : vector<8x32xf32>
    %240 = vector.extract_strided_slice %232 {offsets = [0, 32], sizes = [8, 32], strides = [1, 1]} : vector<8x128xf32> to vector<8x32xf32>
    %241 = arith.negf %240 : vector<8x32xf32>
    %242 = math.exp %241 : vector<8x32xf32>
    %cst_137 = arith.constant 1.000000e+00 : f32
    %243 = vector.broadcast %cst_137 : f32 to vector<8x32xf32>
    %244 = arith.addf %243, %242 : vector<8x32xf32>
    %245 = arith.divf %243, %244 : vector<8x32xf32>
    %246 = vector.extract_strided_slice %232 {offsets = [0, 64], sizes = [8, 32], strides = [1, 1]} : vector<8x128xf32> to vector<8x32xf32>
    %247 = math.tanh %246 : vector<8x32xf32>
    %248 = vector.extract_strided_slice %232 {offsets = [0, 96], sizes = [8, 32], strides = [1, 1]} : vector<8x128xf32> to vector<8x32xf32>
    %249 = arith.negf %248 : vector<8x32xf32>
    %250 = math.exp %249 : vector<8x32xf32>
    %cst_138 = arith.constant 1.000000e+00 : f32
    %251 = vector.broadcast %cst_138 : f32 to vector<8x32xf32>
    %252 = arith.addf %251, %250 : vector<8x32xf32>
    %253 = arith.divf %251, %252 : vector<8x32xf32>
    %254 = arith.mulf %245, %233 : vector<8x32xf32>
    %255 = arith.mulf %239, %247 : vector<8x32xf32>
    %256 = arith.addf %254, %255 : vector<8x32xf32>
    %257 = math.tanh %256 : vector<8x32xf32>
    %258 = arith.mulf %253, %257 : vector<8x32xf32>
    %c0_139 = arith.constant 0 : index
    %c0_140 = arith.constant 0 : index
    %259 = vector.load %arg11[%c0_139, %c0_140] : memref<8x32xf32, #tpu.memory_space<vmem>>, vector<8x32xf32>
    tpu.vector_store %arg11[%c0_139, %c0_140], %258 {strides = array<i32>} : memref<8x32xf32, #tpu.memory_space<vmem>>, vector<8x32xf32>,
    %c0_141 = arith.constant 0 : index
    %c0_142 = arith.constant 0 : index
    %260 = vector.load %arg12[%c0_141, %c0_142] : memref<8x32xf32, #tpu.memory_space<vmem>>, vector<8x32xf32>
    tpu.vector_store %arg12[%c0_141, %c0_142], %256 {strides = array<i32>} : memref<8x32xf32, #tpu.memory_space<vmem>>, vector<8x32xf32>,
    %c0_143 = arith.constant 0 : index
    %c0_144 = arith.constant 0 : index
    %261 = vector.load %arg5[%c0_143, %c0_144] : memref<32x128xf32, #tpu.memory_space<vmem>>, vector<32x128xf32>
    %cst_145 = arith.constant dense<0.000000e+00> : vector<8x128xf32>
    %262 = tpu.matmul %258, %261, %cst_145 {dimension_numbers = #tpu.dot_dimension_numbers<[1], [0], [0], [1], [0, 0, 1, 1], [], []>} : vector<8x32xf32>, vector<32x128xf32>, vector<8x128xf32> -> vector<8x128xf32>
    %c0_146 = arith.constant 0 : index
    %c0_147 = arith.constant 0 : index
    %263 = vector.load %arg13[%c0_146, %c0_147] : memref<8x32xf32, #tpu.memory_space<vmem>>, vector<8x32xf32>
    %c0_148 = arith.constant 0 : index
    %c0_149 = arith.constant 0 : index
    %264 = vector.load %arg6[%c0_148, %c0_149] : memref<32x128xf32, #tpu.memory_space<vmem>>, vector<32x128xf32>
    %cst_150 = arith.constant dense<0.000000e+00> : vector<8x128xf32>
    %265 = tpu.matmul %263, %264, %cst_150 {dimension_numbers = #tpu.dot_dimension_numbers<[1], [0], [0], [1], [0, 0, 1, 1], [], []>} : vector<8x32xf32>, vector<32x128xf32>, vector<8x128xf32> -> vector<8x128xf32>
    %266 = arith.addf %262, %265 : vector<8x128xf32>
    %c0_151 = arith.constant 0 : index
    %c0_152 = arith.constant 0 : index
    %267 = vector.load %arg7[%c0_151, %c0_152] : memref<1x128xf32, #tpu.memory_space<vmem>>, vector<1x128xf32>
    %268 = vector.broadcast %267 : vector<1x128xf32> to vector<8x128xf32>
    %269 = arith.addf %266, %268 : vector<8x128xf32>
    %c0_153 = arith.constant 0 : index
    %c0_154 = arith.constant 0 : index
    %270 = vector.load %arg14[%c0_153, %c0_154] : memref<8x32xf32, #tpu.memory_space<vmem>>, vector<8x32xf32>
    %271 = vector.extract_strided_slice %269 {offsets = [0, 0], sizes = [8, 32], strides = [1, 1]} : vector<8x128xf32> to vector<8x32xf32>
    %272 = arith.negf %271 : vector<8x32xf32>
    %273 = math.exp %272 : vector<8x32xf32>
    %cst_155 = arith.constant 1.000000e+00 : f32
    %274 = vector.broadcast %cst_155 : f32 to vector<8x32xf32>
    %275 = arith.addf %274, %273 : vector<8x32xf32>
    %276 = arith.divf %274, %275 : vector<8x32xf32>
    %277 = vector.extract_strided_slice %269 {offsets = [0, 32], sizes = [8, 32], strides = [1, 1]} : vector<8x128xf32> to vector<8x32xf32>
    %278 = arith.negf %277 : vector<8x32xf32>
    %279 = math.exp %278 : vector<8x32xf32>
    %cst_156 = arith.constant 1.000000e+00 : f32
    %280 = vector.broadcast %cst_156 : f32 to vector<8x32xf32>
    %281 = arith.addf %280, %279 : vector<8x32xf32>
    %282 = arith.divf %280, %281 : vector<8x32xf32>
    %283 = vector.extract_strided_slice %269 {offsets = [0, 64], sizes = [8, 32], strides = [1, 1]} : vector<8x128xf32> to vector<8x32xf32>
    %284 = math.tanh %283 : vector<8x32xf32>
    %285 = vector.extract_strided_slice %269 {offsets = [0, 96], sizes = [8, 32], strides = [1, 1]} : vector<8x128xf32> to vector<8x32xf32>
    %286 = arith.negf %285 : vector<8x32xf32>
    %287 = math.exp %286 : vector<8x32xf32>
    %cst_157 = arith.constant 1.000000e+00 : f32
    %288 = vector.broadcast %cst_157 : f32 to vector<8x32xf32>
    %289 = arith.addf %288, %287 : vector<8x32xf32>
    %290 = arith.divf %288, %289 : vector<8x32xf32>
    %291 = arith.mulf %282, %270 : vector<8x32xf32>
    %292 = arith.mulf %276, %284 : vector<8x32xf32>
    %293 = arith.addf %291, %292 : vector<8x32xf32>
    %294 = math.tanh %293 : vector<8x32xf32>
    %295 = arith.mulf %290, %294 : vector<8x32xf32>
    %c0_158 = arith.constant 0 : index
    %c0_159 = arith.constant 0 : index
    %296 = vector.load %arg13[%c0_158, %c0_159] : memref<8x32xf32, #tpu.memory_space<vmem>>, vector<8x32xf32>
    tpu.vector_store %arg13[%c0_158, %c0_159], %295 {strides = array<i32>} : memref<8x32xf32, #tpu.memory_space<vmem>>, vector<8x32xf32>,
    %c0_160 = arith.constant 0 : index
    %c0_161 = arith.constant 0 : index
    %297 = vector.load %arg14[%c0_160, %c0_161] : memref<8x32xf32, #tpu.memory_space<vmem>>, vector<8x32xf32>
    tpu.vector_store %arg14[%c0_160, %c0_161], %293 {strides = array<i32>} : memref<8x32xf32, #tpu.memory_space<vmem>>, vector<8x32xf32>,
    %c24_162 = arith.constant 24 : index
    %c0_163 = arith.constant 0 : index
    %298 = vector.load %arg16[%c24_162, %c0_163] : memref<64x32xf32, #tpu.memory_space<vmem>>, vector<8x32xf32>
    tpu.vector_store %arg16[%c24_162, %c0_163], %295 {strides = array<i32>} : memref<64x32xf32, #tpu.memory_space<vmem>>, vector<8x32xf32>,
    %c32 = arith.constant 32 : index
    %c0_164 = arith.constant 0 : index
    %299 = vector.load %arg15[%c32, %c0_164] : memref<64x128xf32, #tpu.memory_space<vmem>>, vector<8x128xf32>
    %c0_165 = arith.constant 0 : index
    %c0_166 = arith.constant 0 : index
    %300 = vector.load %arg11[%c0_165, %c0_166] : memref<8x32xf32, #tpu.memory_space<vmem>>, vector<8x32xf32>
    %c0_167 = arith.constant 0 : index
    %c0_168 = arith.constant 0 : index
    %301 = vector.load %arg3[%c0_167, %c0_168] : memref<32x128xf32, #tpu.memory_space<vmem>>, vector<32x128xf32>
    %cst_169 = arith.constant dense<0.000000e+00> : vector<8x128xf32>
    %302 = tpu.matmul %300, %301, %cst_169 {dimension_numbers = #tpu.dot_dimension_numbers<[1], [0], [0], [1], [0, 0, 1, 1], [], []>} : vector<8x32xf32>, vector<32x128xf32>, vector<8x128xf32> -> vector<8x128xf32>
    %303 = arith.addf %299, %302 : vector<8x128xf32>
    %c0_170 = arith.constant 0 : index
    %c0_171 = arith.constant 0 : index
    %304 = vector.load %arg12[%c0_170, %c0_171] : memref<8x32xf32, #tpu.memory_space<vmem>>, vector<8x32xf32>
    %305 = vector.extract_strided_slice %303 {offsets = [0, 0], sizes = [8, 32], strides = [1, 1]} : vector<8x128xf32> to vector<8x32xf32>
    %306 = arith.negf %305 : vector<8x32xf32>
    %307 = math.exp %306 : vector<8x32xf32>
    %cst_172 = arith.constant 1.000000e+00 : f32
    %308 = vector.broadcast %cst_172 : f32 to vector<8x32xf32>
    %309 = arith.addf %308, %307 : vector<8x32xf32>
    %310 = arith.divf %308, %309 : vector<8x32xf32>
    %311 = vector.extract_strided_slice %303 {offsets = [0, 32], sizes = [8, 32], strides = [1, 1]} : vector<8x128xf32> to vector<8x32xf32>
    %312 = arith.negf %311 : vector<8x32xf32>
    %313 = math.exp %312 : vector<8x32xf32>
    %cst_173 = arith.constant 1.000000e+00 : f32
    %314 = vector.broadcast %cst_173 : f32 to vector<8x32xf32>
    %315 = arith.addf %314, %313 : vector<8x32xf32>
    %316 = arith.divf %314, %315 : vector<8x32xf32>
    %317 = vector.extract_strided_slice %303 {offsets = [0, 64], sizes = [8, 32], strides = [1, 1]} : vector<8x128xf32> to vector<8x32xf32>
    %318 = math.tanh %317 : vector<8x32xf32>
    %319 = vector.extract_strided_slice %303 {offsets = [0, 96], sizes = [8, 32], strides = [1, 1]} : vector<8x128xf32> to vector<8x32xf32>
    %320 = arith.negf %319 : vector<8x32xf32>
    %321 = math.exp %320 : vector<8x32xf32>
    %cst_174 = arith.constant 1.000000e+00 : f32
    %322 = vector.broadcast %cst_174 : f32 to vector<8x32xf32>
    %323 = arith.addf %322, %321 : vector<8x32xf32>
    %324 = arith.divf %322, %323 : vector<8x32xf32>
    %325 = arith.mulf %316, %304 : vector<8x32xf32>
    %326 = arith.mulf %310, %318 : vector<8x32xf32>
    %327 = arith.addf %325, %326 : vector<8x32xf32>
    %328 = math.tanh %327 : vector<8x32xf32>
    %329 = arith.mulf %324, %328 : vector<8x32xf32>
    %c0_175 = arith.constant 0 : index
    %c0_176 = arith.constant 0 : index
    %330 = vector.load %arg11[%c0_175, %c0_176] : memref<8x32xf32, #tpu.memory_space<vmem>>, vector<8x32xf32>
    tpu.vector_store %arg11[%c0_175, %c0_176], %329 {strides = array<i32>} : memref<8x32xf32, #tpu.memory_space<vmem>>, vector<8x32xf32>,
    %c0_177 = arith.constant 0 : index
    %c0_178 = arith.constant 0 : index
    %331 = vector.load %arg12[%c0_177, %c0_178] : memref<8x32xf32, #tpu.memory_space<vmem>>, vector<8x32xf32>
    tpu.vector_store %arg12[%c0_177, %c0_178], %327 {strides = array<i32>} : memref<8x32xf32, #tpu.memory_space<vmem>>, vector<8x32xf32>,
    %c0_179 = arith.constant 0 : index
    %c0_180 = arith.constant 0 : index
    %332 = vector.load %arg5[%c0_179, %c0_180] : memref<32x128xf32, #tpu.memory_space<vmem>>, vector<32x128xf32>
    %cst_181 = arith.constant dense<0.000000e+00> : vector<8x128xf32>
    %333 = tpu.matmul %329, %332, %cst_181 {dimension_numbers = #tpu.dot_dimension_numbers<[1], [0], [0], [1], [0, 0, 1, 1], [], []>} : vector<8x32xf32>, vector<32x128xf32>, vector<8x128xf32> -> vector<8x128xf32>
    %c0_182 = arith.constant 0 : index
    %c0_183 = arith.constant 0 : index
    %334 = vector.load %arg13[%c0_182, %c0_183] : memref<8x32xf32, #tpu.memory_space<vmem>>, vector<8x32xf32>
    %c0_184 = arith.constant 0 : index
    %c0_185 = arith.constant 0 : index
    %335 = vector.load %arg6[%c0_184, %c0_185] : memref<32x128xf32, #tpu.memory_space<vmem>>, vector<32x128xf32>
    %cst_186 = arith.constant dense<0.000000e+00> : vector<8x128xf32>
    %336 = tpu.matmul %334, %335, %cst_186 {dimension_numbers = #tpu.dot_dimension_numbers<[1], [0], [0], [1], [0, 0, 1, 1], [], []>} : vector<8x32xf32>, vector<32x128xf32>, vector<8x128xf32> -> vector<8x128xf32>
    %337 = arith.addf %333, %336 : vector<8x128xf32>
    %c0_187 = arith.constant 0 : index
    %c0_188 = arith.constant 0 : index
    %338 = vector.load %arg7[%c0_187, %c0_188] : memref<1x128xf32, #tpu.memory_space<vmem>>, vector<1x128xf32>
    %339 = vector.broadcast %338 : vector<1x128xf32> to vector<8x128xf32>
    %340 = arith.addf %337, %339 : vector<8x128xf32>
    %c0_189 = arith.constant 0 : index
    %c0_190 = arith.constant 0 : index
    %341 = vector.load %arg14[%c0_189, %c0_190] : memref<8x32xf32, #tpu.memory_space<vmem>>, vector<8x32xf32>
    %342 = vector.extract_strided_slice %340 {offsets = [0, 0], sizes = [8, 32], strides = [1, 1]} : vector<8x128xf32> to vector<8x32xf32>
    %343 = arith.negf %342 : vector<8x32xf32>
    %344 = math.exp %343 : vector<8x32xf32>
    %cst_191 = arith.constant 1.000000e+00 : f32
    %345 = vector.broadcast %cst_191 : f32 to vector<8x32xf32>
    %346 = arith.addf %345, %344 : vector<8x32xf32>
    %347 = arith.divf %345, %346 : vector<8x32xf32>
    %348 = vector.extract_strided_slice %340 {offsets = [0, 32], sizes = [8, 32], strides = [1, 1]} : vector<8x128xf32> to vector<8x32xf32>
    %349 = arith.negf %348 : vector<8x32xf32>
    %350 = math.exp %349 : vector<8x32xf32>
    %cst_192 = arith.constant 1.000000e+00 : f32
    %351 = vector.broadcast %cst_192 : f32 to vector<8x32xf32>
    %352 = arith.addf %351, %350 : vector<8x32xf32>
    %353 = arith.divf %351, %352 : vector<8x32xf32>
    %354 = vector.extract_strided_slice %340 {offsets = [0, 64], sizes = [8, 32], strides = [1, 1]} : vector<8x128xf32> to vector<8x32xf32>
    %355 = math.tanh %354 : vector<8x32xf32>
    %356 = vector.extract_strided_slice %340 {offsets = [0, 96], sizes = [8, 32], strides = [1, 1]} : vector<8x128xf32> to vector<8x32xf32>
    %357 = arith.negf %356 : vector<8x32xf32>
    %358 = math.exp %357 : vector<8x32xf32>
    %cst_193 = arith.constant 1.000000e+00 : f32
    %359 = vector.broadcast %cst_193 : f32 to vector<8x32xf32>
    %360 = arith.addf %359, %358 : vector<8x32xf32>
    %361 = arith.divf %359, %360 : vector<8x32xf32>
    %362 = arith.mulf %353, %341 : vector<8x32xf32>
    %363 = arith.mulf %347, %355 : vector<8x32xf32>
    %364 = arith.addf %362, %363 : vector<8x32xf32>
    %365 = math.tanh %364 : vector<8x32xf32>
    %366 = arith.mulf %361, %365 : vector<8x32xf32>
    %c0_194 = arith.constant 0 : index
    %c0_195 = arith.constant 0 : index
    %367 = vector.load %arg13[%c0_194, %c0_195] : memref<8x32xf32, #tpu.memory_space<vmem>>, vector<8x32xf32>
    tpu.vector_store %arg13[%c0_194, %c0_195], %366 {strides = array<i32>} : memref<8x32xf32, #tpu.memory_space<vmem>>, vector<8x32xf32>,
    %c0_196 = arith.constant 0 : index
    %c0_197 = arith.constant 0 : index
    %368 = vector.load %arg14[%c0_196, %c0_197] : memref<8x32xf32, #tpu.memory_space<vmem>>, vector<8x32xf32>
    tpu.vector_store %arg14[%c0_196, %c0_197], %364 {strides = array<i32>} : memref<8x32xf32, #tpu.memory_space<vmem>>, vector<8x32xf32>,
    %c32_198 = arith.constant 32 : index
    %c0_199 = arith.constant 0 : index
    %369 = vector.load %arg16[%c32_198, %c0_199] : memref<64x32xf32, #tpu.memory_space<vmem>>, vector<8x32xf32>
    tpu.vector_store %arg16[%c32_198, %c0_199], %366 {strides = array<i32>} : memref<64x32xf32, #tpu.memory_space<vmem>>, vector<8x32xf32>,
    %c40 = arith.constant 40 : index
    %c0_200 = arith.constant 0 : index
    %370 = vector.load %arg15[%c40, %c0_200] : memref<64x128xf32, #tpu.memory_space<vmem>>, vector<8x128xf32>
    %c0_201 = arith.constant 0 : index
    %c0_202 = arith.constant 0 : index
    %371 = vector.load %arg11[%c0_201, %c0_202] : memref<8x32xf32, #tpu.memory_space<vmem>>, vector<8x32xf32>
    %c0_203 = arith.constant 0 : index
    %c0_204 = arith.constant 0 : index
    %372 = vector.load %arg3[%c0_203, %c0_204] : memref<32x128xf32, #tpu.memory_space<vmem>>, vector<32x128xf32>
    %cst_205 = arith.constant dense<0.000000e+00> : vector<8x128xf32>
    %373 = tpu.matmul %371, %372, %cst_205 {dimension_numbers = #tpu.dot_dimension_numbers<[1], [0], [0], [1], [0, 0, 1, 1], [], []>} : vector<8x32xf32>, vector<32x128xf32>, vector<8x128xf32> -> vector<8x128xf32>
    %374 = arith.addf %370, %373 : vector<8x128xf32>
    %c0_206 = arith.constant 0 : index
    %c0_207 = arith.constant 0 : index
    %375 = vector.load %arg12[%c0_206, %c0_207] : memref<8x32xf32, #tpu.memory_space<vmem>>, vector<8x32xf32>
    %376 = vector.extract_strided_slice %374 {offsets = [0, 0], sizes = [8, 32], strides = [1, 1]} : vector<8x128xf32> to vector<8x32xf32>
    %377 = arith.negf %376 : vector<8x32xf32>
    %378 = math.exp %377 : vector<8x32xf32>
    %cst_208 = arith.constant 1.000000e+00 : f32
    %379 = vector.broadcast %cst_208 : f32 to vector<8x32xf32>
    %380 = arith.addf %379, %378 : vector<8x32xf32>
    %381 = arith.divf %379, %380 : vector<8x32xf32>
    %382 = vector.extract_strided_slice %374 {offsets = [0, 32], sizes = [8, 32], strides = [1, 1]} : vector<8x128xf32> to vector<8x32xf32>
    %383 = arith.negf %382 : vector<8x32xf32>
    %384 = math.exp %383 : vector<8x32xf32>
    %cst_209 = arith.constant 1.000000e+00 : f32
    %385 = vector.broadcast %cst_209 : f32 to vector<8x32xf32>
    %386 = arith.addf %385, %384 : vector<8x32xf32>
    %387 = arith.divf %385, %386 : vector<8x32xf32>
    %388 = vector.extract_strided_slice %374 {offsets = [0, 64], sizes = [8, 32], strides = [1, 1]} : vector<8x128xf32> to vector<8x32xf32>
    %389 = math.tanh %388 : vector<8x32xf32>
    %390 = vector.extract_strided_slice %374 {offsets = [0, 96], sizes = [8, 32], strides = [1, 1]} : vector<8x128xf32> to vector<8x32xf32>
    %391 = arith.negf %390 : vector<8x32xf32>
    %392 = math.exp %391 : vector<8x32xf32>
    %cst_210 = arith.constant 1.000000e+00 : f32
    %393 = vector.broadcast %cst_210 : f32 to vector<8x32xf32>
    %394 = arith.addf %393, %392 : vector<8x32xf32>
    %395 = arith.divf %393, %394 : vector<8x32xf32>
    %396 = arith.mulf %387, %375 : vector<8x32xf32>
    %397 = arith.mulf %381, %389 : vector<8x32xf32>
    %398 = arith.addf %396, %397 : vector<8x32xf32>
    %399 = math.tanh %398 : vector<8x32xf32>
    %400 = arith.mulf %395, %399 : vector<8x32xf32>
    %c0_211 = arith.constant 0 : index
    %c0_212 = arith.constant 0 : index
    %401 = vector.load %arg11[%c0_211, %c0_212] : memref<8x32xf32, #tpu.memory_space<vmem>>, vector<8x32xf32>
    tpu.vector_store %arg11[%c0_211, %c0_212], %400 {strides = array<i32>} : memref<8x32xf32, #tpu.memory_space<vmem>>, vector<8x32xf32>,
    %c0_213 = arith.constant 0 : index
    %c0_214 = arith.constant 0 : index
    %402 = vector.load %arg12[%c0_213, %c0_214] : memref<8x32xf32, #tpu.memory_space<vmem>>, vector<8x32xf32>
    tpu.vector_store %arg12[%c0_213, %c0_214], %398 {strides = array<i32>} : memref<8x32xf32, #tpu.memory_space<vmem>>, vector<8x32xf32>,
    %c0_215 = arith.constant 0 : index
    %c0_216 = arith.constant 0 : index
    %403 = vector.load %arg5[%c0_215, %c0_216] : memref<32x128xf32, #tpu.memory_space<vmem>>, vector<32x128xf32>
    %cst_217 = arith.constant dense<0.000000e+00> : vector<8x128xf32>
    %404 = tpu.matmul %400, %403, %cst_217 {dimension_numbers = #tpu.dot_dimension_numbers<[1], [0], [0], [1], [0, 0, 1, 1], [], []>} : vector<8x32xf32>, vector<32x128xf32>, vector<8x128xf32> -> vector<8x128xf32>
    %c0_218 = arith.constant 0 : index
    %c0_219 = arith.constant 0 : index
    %405 = vector.load %arg13[%c0_218, %c0_219] : memref<8x32xf32, #tpu.memory_space<vmem>>, vector<8x32xf32>
    %c0_220 = arith.constant 0 : index
    %c0_221 = arith.constant 0 : index
    %406 = vector.load %arg6[%c0_220, %c0_221] : memref<32x128xf32, #tpu.memory_space<vmem>>, vector<32x128xf32>
    %cst_222 = arith.constant dense<0.000000e+00> : vector<8x128xf32>
    %407 = tpu.matmul %405, %406, %cst_222 {dimension_numbers = #tpu.dot_dimension_numbers<[1], [0], [0], [1], [0, 0, 1, 1], [], []>} : vector<8x32xf32>, vector<32x128xf32>, vector<8x128xf32> -> vector<8x128xf32>
    %408 = arith.addf %404, %407 : vector<8x128xf32>
    %c0_223 = arith.constant 0 : index
    %c0_224 = arith.constant 0 : index
    %409 = vector.load %arg7[%c0_223, %c0_224] : memref<1x128xf32, #tpu.memory_space<vmem>>, vector<1x128xf32>
    %410 = vector.broadcast %409 : vector<1x128xf32> to vector<8x128xf32>
    %411 = arith.addf %408, %410 : vector<8x128xf32>
    %c0_225 = arith.constant 0 : index
    %c0_226 = arith.constant 0 : index
    %412 = vector.load %arg14[%c0_225, %c0_226] : memref<8x32xf32, #tpu.memory_space<vmem>>, vector<8x32xf32>
    %413 = vector.extract_strided_slice %411 {offsets = [0, 0], sizes = [8, 32], strides = [1, 1]} : vector<8x128xf32> to vector<8x32xf32>
    %414 = arith.negf %413 : vector<8x32xf32>
    %415 = math.exp %414 : vector<8x32xf32>
    %cst_227 = arith.constant 1.000000e+00 : f32
    %416 = vector.broadcast %cst_227 : f32 to vector<8x32xf32>
    %417 = arith.addf %416, %415 : vector<8x32xf32>
    %418 = arith.divf %416, %417 : vector<8x32xf32>
    %419 = vector.extract_strided_slice %411 {offsets = [0, 32], sizes = [8, 32], strides = [1, 1]} : vector<8x128xf32> to vector<8x32xf32>
    %420 = arith.negf %419 : vector<8x32xf32>
    %421 = math.exp %420 : vector<8x32xf32>
    %cst_228 = arith.constant 1.000000e+00 : f32
    %422 = vector.broadcast %cst_228 : f32 to vector<8x32xf32>
    %423 = arith.addf %422, %421 : vector<8x32xf32>
    %424 = arith.divf %422, %423 : vector<8x32xf32>
    %425 = vector.extract_strided_slice %411 {offsets = [0, 64], sizes = [8, 32], strides = [1, 1]} : vector<8x128xf32> to vector<8x32xf32>
    %426 = math.tanh %425 : vector<8x32xf32>
    %427 = vector.extract_strided_slice %411 {offsets = [0, 96], sizes = [8, 32], strides = [1, 1]} : vector<8x128xf32> to vector<8x32xf32>
    %428 = arith.negf %427 : vector<8x32xf32>
    %429 = math.exp %428 : vector<8x32xf32>
    %cst_229 = arith.constant 1.000000e+00 : f32
    %430 = vector.broadcast %cst_229 : f32 to vector<8x32xf32>
    %431 = arith.addf %430, %429 : vector<8x32xf32>
    %432 = arith.divf %430, %431 : vector<8x32xf32>
    %433 = arith.mulf %424, %412 : vector<8x32xf32>
    %434 = arith.mulf %418, %426 : vector<8x32xf32>
    %435 = arith.addf %433, %434 : vector<8x32xf32>
    %436 = math.tanh %435 : vector<8x32xf32>
    %437 = arith.mulf %432, %436 : vector<8x32xf32>
    %c0_230 = arith.constant 0 : index
    %c0_231 = arith.constant 0 : index
    %438 = vector.load %arg13[%c0_230, %c0_231] : memref<8x32xf32, #tpu.memory_space<vmem>>, vector<8x32xf32>
    tpu.vector_store %arg13[%c0_230, %c0_231], %437 {strides = array<i32>} : memref<8x32xf32, #tpu.memory_space<vmem>>, vector<8x32xf32>,
    %c0_232 = arith.constant 0 : index
    %c0_233 = arith.constant 0 : index
    %439 = vector.load %arg14[%c0_232, %c0_233] : memref<8x32xf32, #tpu.memory_space<vmem>>, vector<8x32xf32>
    tpu.vector_store %arg14[%c0_232, %c0_233], %435 {strides = array<i32>} : memref<8x32xf32, #tpu.memory_space<vmem>>, vector<8x32xf32>,
    %c40_234 = arith.constant 40 : index
    %c0_235 = arith.constant 0 : index
    %440 = vector.load %arg16[%c40_234, %c0_235] : memref<64x32xf32, #tpu.memory_space<vmem>>, vector<8x32xf32>
    tpu.vector_store %arg16[%c40_234, %c0_235], %437 {strides = array<i32>} : memref<64x32xf32, #tpu.memory_space<vmem>>, vector<8x32xf32>,
    %c48 = arith.constant 48 : index
    %c0_236 = arith.constant 0 : index
    %441 = vector.load %arg15[%c48, %c0_236] : memref<64x128xf32, #tpu.memory_space<vmem>>, vector<8x128xf32>
    %c0_237 = arith.constant 0 : index
    %c0_238 = arith.constant 0 : index
    %442 = vector.load %arg11[%c0_237, %c0_238] : memref<8x32xf32, #tpu.memory_space<vmem>>, vector<8x32xf32>
    %c0_239 = arith.constant 0 : index
    %c0_240 = arith.constant 0 : index
    %443 = vector.load %arg3[%c0_239, %c0_240] : memref<32x128xf32, #tpu.memory_space<vmem>>, vector<32x128xf32>
    %cst_241 = arith.constant dense<0.000000e+00> : vector<8x128xf32>
    %444 = tpu.matmul %442, %443, %cst_241 {dimension_numbers = #tpu.dot_dimension_numbers<[1], [0], [0], [1], [0, 0, 1, 1], [], []>} : vector<8x32xf32>, vector<32x128xf32>, vector<8x128xf32> -> vector<8x128xf32>
    %445 = arith.addf %441, %444 : vector<8x128xf32>
    %c0_242 = arith.constant 0 : index
    %c0_243 = arith.constant 0 : index
    %446 = vector.load %arg12[%c0_242, %c0_243] : memref<8x32xf32, #tpu.memory_space<vmem>>, vector<8x32xf32>
    %447 = vector.extract_strided_slice %445 {offsets = [0, 0], sizes = [8, 32], strides = [1, 1]} : vector<8x128xf32> to vector<8x32xf32>
    %448 = arith.negf %447 : vector<8x32xf32>
    %449 = math.exp %448 : vector<8x32xf32>
    %cst_244 = arith.constant 1.000000e+00 : f32
    %450 = vector.broadcast %cst_244 : f32 to vector<8x32xf32>
    %451 = arith.addf %450, %449 : vector<8x32xf32>
    %452 = arith.divf %450, %451 : vector<8x32xf32>
    %453 = vector.extract_strided_slice %445 {offsets = [0, 32], sizes = [8, 32], strides = [1, 1]} : vector<8x128xf32> to vector<8x32xf32>
    %454 = arith.negf %453 : vector<8x32xf32>
    %455 = math.exp %454 : vector<8x32xf32>
    %cst_245 = arith.constant 1.000000e+00 : f32
    %456 = vector.broadcast %cst_245 : f32 to vector<8x32xf32>
    %457 = arith.addf %456, %455 : vector<8x32xf32>
    %458 = arith.divf %456, %457 : vector<8x32xf32>
    %459 = vector.extract_strided_slice %445 {offsets = [0, 64], sizes = [8, 32], strides = [1, 1]} : vector<8x128xf32> to vector<8x32xf32>
    %460 = math.tanh %459 : vector<8x32xf32>
    %461 = vector.extract_strided_slice %445 {offsets = [0, 96], sizes = [8, 32], strides = [1, 1]} : vector<8x128xf32> to vector<8x32xf32>
    %462 = arith.negf %461 : vector<8x32xf32>
    %463 = math.exp %462 : vector<8x32xf32>
    %cst_246 = arith.constant 1.000000e+00 : f32
    %464 = vector.broadcast %cst_246 : f32 to vector<8x32xf32>
    %465 = arith.addf %464, %463 : vector<8x32xf32>
    %466 = arith.divf %464, %465 : vector<8x32xf32>
    %467 = arith.mulf %458, %446 : vector<8x32xf32>
    %468 = arith.mulf %452, %460 : vector<8x32xf32>
    %469 = arith.addf %467, %468 : vector<8x32xf32>
    %470 = math.tanh %469 : vector<8x32xf32>
    %471 = arith.mulf %466, %470 : vector<8x32xf32>
    %c0_247 = arith.constant 0 : index
    %c0_248 = arith.constant 0 : index
    %472 = vector.load %arg11[%c0_247, %c0_248] : memref<8x32xf32, #tpu.memory_space<vmem>>, vector<8x32xf32>
    tpu.vector_store %arg11[%c0_247, %c0_248], %471 {strides = array<i32>} : memref<8x32xf32, #tpu.memory_space<vmem>>, vector<8x32xf32>,
    %c0_249 = arith.constant 0 : index
    %c0_250 = arith.constant 0 : index
    %473 = vector.load %arg12[%c0_249, %c0_250] : memref<8x32xf32, #tpu.memory_space<vmem>>, vector<8x32xf32>
    tpu.vector_store %arg12[%c0_249, %c0_250], %469 {strides = array<i32>} : memref<8x32xf32, #tpu.memory_space<vmem>>, vector<8x32xf32>,
    %c0_251 = arith.constant 0 : index
    %c0_252 = arith.constant 0 : index
    %474 = vector.load %arg5[%c0_251, %c0_252] : memref<32x128xf32, #tpu.memory_space<vmem>>, vector<32x128xf32>
    %cst_253 = arith.constant dense<0.000000e+00> : vector<8x128xf32>
    %475 = tpu.matmul %471, %474, %cst_253 {dimension_numbers = #tpu.dot_dimension_numbers<[1], [0], [0], [1], [0, 0, 1, 1], [], []>} : vector<8x32xf32>, vector<32x128xf32>, vector<8x128xf32> -> vector<8x128xf32>
    %c0_254 = arith.constant 0 : index
    %c0_255 = arith.constant 0 : index
    %476 = vector.load %arg13[%c0_254, %c0_255] : memref<8x32xf32, #tpu.memory_space<vmem>>, vector<8x32xf32>
    %c0_256 = arith.constant 0 : index
    %c0_257 = arith.constant 0 : index
    %477 = vector.load %arg6[%c0_256, %c0_257] : memref<32x128xf32, #tpu.memory_space<vmem>>, vector<32x128xf32>
    %cst_258 = arith.constant dense<0.000000e+00> : vector<8x128xf32>
    %478 = tpu.matmul %476, %477, %cst_258 {dimension_numbers = #tpu.dot_dimension_numbers<[1], [0], [0], [1], [0, 0, 1, 1], [], []>} : vector<8x32xf32>, vector<32x128xf32>, vector<8x128xf32> -> vector<8x128xf32>
    %479 = arith.addf %475, %478 : vector<8x128xf32>
    %c0_259 = arith.constant 0 : index
    %c0_260 = arith.constant 0 : index
    %480 = vector.load %arg7[%c0_259, %c0_260] : memref<1x128xf32, #tpu.memory_space<vmem>>, vector<1x128xf32>
    %481 = vector.broadcast %480 : vector<1x128xf32> to vector<8x128xf32>
    %482 = arith.addf %479, %481 : vector<8x128xf32>
    %c0_261 = arith.constant 0 : index
    %c0_262 = arith.constant 0 : index
    %483 = vector.load %arg14[%c0_261, %c0_262] : memref<8x32xf32, #tpu.memory_space<vmem>>, vector<8x32xf32>
    %484 = vector.extract_strided_slice %482 {offsets = [0, 0], sizes = [8, 32], strides = [1, 1]} : vector<8x128xf32> to vector<8x32xf32>
    %485 = arith.negf %484 : vector<8x32xf32>
    %486 = math.exp %485 : vector<8x32xf32>
    %cst_263 = arith.constant 1.000000e+00 : f32
    %487 = vector.broadcast %cst_263 : f32 to vector<8x32xf32>
    %488 = arith.addf %487, %486 : vector<8x32xf32>
    %489 = arith.divf %487, %488 : vector<8x32xf32>
    %490 = vector.extract_strided_slice %482 {offsets = [0, 32], sizes = [8, 32], strides = [1, 1]} : vector<8x128xf32> to vector<8x32xf32>
    %491 = arith.negf %490 : vector<8x32xf32>
    %492 = math.exp %491 : vector<8x32xf32>
    %cst_264 = arith.constant 1.000000e+00 : f32
    %493 = vector.broadcast %cst_264 : f32 to vector<8x32xf32>
    %494 = arith.addf %493, %492 : vector<8x32xf32>
    %495 = arith.divf %493, %494 : vector<8x32xf32>
    %496 = vector.extract_strided_slice %482 {offsets = [0, 64], sizes = [8, 32], strides = [1, 1]} : vector<8x128xf32> to vector<8x32xf32>
    %497 = math.tanh %496 : vector<8x32xf32>
    %498 = vector.extract_strided_slice %482 {offsets = [0, 96], sizes = [8, 32], strides = [1, 1]} : vector<8x128xf32> to vector<8x32xf32>
    %499 = arith.negf %498 : vector<8x32xf32>
    %500 = math.exp %499 : vector<8x32xf32>
    %cst_265 = arith.constant 1.000000e+00 : f32
    %501 = vector.broadcast %cst_265 : f32 to vector<8x32xf32>
    %502 = arith.addf %501, %500 : vector<8x32xf32>
    %503 = arith.divf %501, %502 : vector<8x32xf32>
    %504 = arith.mulf %495, %483 : vector<8x32xf32>
    %505 = arith.mulf %489, %497 : vector<8x32xf32>
    %506 = arith.addf %504, %505 : vector<8x32xf32>
    %507 = math.tanh %506 : vector<8x32xf32>
    %508 = arith.mulf %503, %507 : vector<8x32xf32>
    %c0_266 = arith.constant 0 : index
    %c0_267 = arith.constant 0 : index
    %509 = vector.load %arg13[%c0_266, %c0_267] : memref<8x32xf32, #tpu.memory_space<vmem>>, vector<8x32xf32>
    tpu.vector_store %arg13[%c0_266, %c0_267], %508 {strides = array<i32>} : memref<8x32xf32, #tpu.memory_space<vmem>>, vector<8x32xf32>,
    %c0_268 = arith.constant 0 : index
    %c0_269 = arith.constant 0 : index
    %510 = vector.load %arg14[%c0_268, %c0_269] : memref<8x32xf32, #tpu.memory_space<vmem>>, vector<8x32xf32>
    tpu.vector_store %arg14[%c0_268, %c0_269], %506 {strides = array<i32>} : memref<8x32xf32, #tpu.memory_space<vmem>>, vector<8x32xf32>,
    %c48_270 = arith.constant 48 : index
    %c0_271 = arith.constant 0 : index
    %511 = vector.load %arg16[%c48_270, %c0_271] : memref<64x32xf32, #tpu.memory_space<vmem>>, vector<8x32xf32>
    tpu.vector_store %arg16[%c48_270, %c0_271], %508 {strides = array<i32>} : memref<64x32xf32, #tpu.memory_space<vmem>>, vector<8x32xf32>,
    %c56 = arith.constant 56 : index
    %c0_272 = arith.constant 0 : index
    %512 = vector.load %arg15[%c56, %c0_272] : memref<64x128xf32, #tpu.memory_space<vmem>>, vector<8x128xf32>
    %c0_273 = arith.constant 0 : index
    %c0_274 = arith.constant 0 : index
    %513 = vector.load %arg11[%c0_273, %c0_274] : memref<8x32xf32, #tpu.memory_space<vmem>>, vector<8x32xf32>
    %c0_275 = arith.constant 0 : index
    %c0_276 = arith.constant 0 : index
    %514 = vector.load %arg3[%c0_275, %c0_276] : memref<32x128xf32, #tpu.memory_space<vmem>>, vector<32x128xf32>
    %cst_277 = arith.constant dense<0.000000e+00> : vector<8x128xf32>
    %515 = tpu.matmul %513, %514, %cst_277 {dimension_numbers = #tpu.dot_dimension_numbers<[1], [0], [0], [1], [0, 0, 1, 1], [], []>} : vector<8x32xf32>, vector<32x128xf32>, vector<8x128xf32> -> vector<8x128xf32>
    %516 = arith.addf %512, %515 : vector<8x128xf32>
    %c0_278 = arith.constant 0 : index
    %c0_279 = arith.constant 0 : index
    %517 = vector.load %arg12[%c0_278, %c0_279] : memref<8x32xf32, #tpu.memory_space<vmem>>, vector<8x32xf32>
    %518 = vector.extract_strided_slice %516 {offsets = [0, 0], sizes = [8, 32], strides = [1, 1]} : vector<8x128xf32> to vector<8x32xf32>
    %519 = arith.negf %518 : vector<8x32xf32>
    %520 = math.exp %519 : vector<8x32xf32>
    %cst_280 = arith.constant 1.000000e+00 : f32
    %521 = vector.broadcast %cst_280 : f32 to vector<8x32xf32>
    %522 = arith.addf %521, %520 : vector<8x32xf32>
    %523 = arith.divf %521, %522 : vector<8x32xf32>
    %524 = vector.extract_strided_slice %516 {offsets = [0, 32], sizes = [8, 32], strides = [1, 1]} : vector<8x128xf32> to vector<8x32xf32>
    %525 = arith.negf %524 : vector<8x32xf32>
    %526 = math.exp %525 : vector<8x32xf32>
    %cst_281 = arith.constant 1.000000e+00 : f32
    %527 = vector.broadcast %cst_281 : f32 to vector<8x32xf32>
    %528 = arith.addf %527, %526 : vector<8x32xf32>
    %529 = arith.divf %527, %528 : vector<8x32xf32>
    %530 = vector.extract_strided_slice %516 {offsets = [0, 64], sizes = [8, 32], strides = [1, 1]} : vector<8x128xf32> to vector<8x32xf32>
    %531 = math.tanh %530 : vector<8x32xf32>
    %532 = vector.extract_strided_slice %516 {offsets = [0, 96], sizes = [8, 32], strides = [1, 1]} : vector<8x128xf32> to vector<8x32xf32>
    %533 = arith.negf %532 : vector<8x32xf32>
    %534 = math.exp %533 : vector<8x32xf32>
    %cst_282 = arith.constant 1.000000e+00 : f32
    %535 = vector.broadcast %cst_282 : f32 to vector<8x32xf32>
    %536 = arith.addf %535, %534 : vector<8x32xf32>
    %537 = arith.divf %535, %536 : vector<8x32xf32>
    %538 = arith.mulf %529, %517 : vector<8x32xf32>
    %539 = arith.mulf %523, %531 : vector<8x32xf32>
    %540 = arith.addf %538, %539 : vector<8x32xf32>
    %541 = math.tanh %540 : vector<8x32xf32>
    %542 = arith.mulf %537, %541 : vector<8x32xf32>
    %c0_283 = arith.constant 0 : index
    %c0_284 = arith.constant 0 : index
    %543 = vector.load %arg11[%c0_283, %c0_284] : memref<8x32xf32, #tpu.memory_space<vmem>>, vector<8x32xf32>
    tpu.vector_store %arg11[%c0_283, %c0_284], %542 {strides = array<i32>} : memref<8x32xf32, #tpu.memory_space<vmem>>, vector<8x32xf32>,
    %c0_285 = arith.constant 0 : index
    %c0_286 = arith.constant 0 : index
    %544 = vector.load %arg12[%c0_285, %c0_286] : memref<8x32xf32, #tpu.memory_space<vmem>>, vector<8x32xf32>
    tpu.vector_store %arg12[%c0_285, %c0_286], %540 {strides = array<i32>} : memref<8x32xf32, #tpu.memory_space<vmem>>, vector<8x32xf32>,
    %c0_287 = arith.constant 0 : index
    %c0_288 = arith.constant 0 : index
    %545 = vector.load %arg5[%c0_287, %c0_288] : memref<32x128xf32, #tpu.memory_space<vmem>>, vector<32x128xf32>
    %cst_289 = arith.constant dense<0.000000e+00> : vector<8x128xf32>
    %546 = tpu.matmul %542, %545, %cst_289 {dimension_numbers = #tpu.dot_dimension_numbers<[1], [0], [0], [1], [0, 0, 1, 1], [], []>} : vector<8x32xf32>, vector<32x128xf32>, vector<8x128xf32> -> vector<8x128xf32>
    %c0_290 = arith.constant 0 : index
    %c0_291 = arith.constant 0 : index
    %547 = vector.load %arg13[%c0_290, %c0_291] : memref<8x32xf32, #tpu.memory_space<vmem>>, vector<8x32xf32>
    %c0_292 = arith.constant 0 : index
    %c0_293 = arith.constant 0 : index
    %548 = vector.load %arg6[%c0_292, %c0_293] : memref<32x128xf32, #tpu.memory_space<vmem>>, vector<32x128xf32>
    %cst_294 = arith.constant dense<0.000000e+00> : vector<8x128xf32>
    %549 = tpu.matmul %547, %548, %cst_294 {dimension_numbers = #tpu.dot_dimension_numbers<[1], [0], [0], [1], [0, 0, 1, 1], [], []>} : vector<8x32xf32>, vector<32x128xf32>, vector<8x128xf32> -> vector<8x128xf32>
    %550 = arith.addf %546, %549 : vector<8x128xf32>
    %c0_295 = arith.constant 0 : index
    %c0_296 = arith.constant 0 : index
    %551 = vector.load %arg7[%c0_295, %c0_296] : memref<1x128xf32, #tpu.memory_space<vmem>>, vector<1x128xf32>
    %552 = vector.broadcast %551 : vector<1x128xf32> to vector<8x128xf32>
    %553 = arith.addf %550, %552 : vector<8x128xf32>
    %c0_297 = arith.constant 0 : index
    %c0_298 = arith.constant 0 : index
    %554 = vector.load %arg14[%c0_297, %c0_298] : memref<8x32xf32, #tpu.memory_space<vmem>>, vector<8x32xf32>
    %555 = vector.extract_strided_slice %553 {offsets = [0, 0], sizes = [8, 32], strides = [1, 1]} : vector<8x128xf32> to vector<8x32xf32>
    %556 = arith.negf %555 : vector<8x32xf32>
    %557 = math.exp %556 : vector<8x32xf32>
    %cst_299 = arith.constant 1.000000e+00 : f32
    %558 = vector.broadcast %cst_299 : f32 to vector<8x32xf32>
    %559 = arith.addf %558, %557 : vector<8x32xf32>
    %560 = arith.divf %558, %559 : vector<8x32xf32>
    %561 = vector.extract_strided_slice %553 {offsets = [0, 32], sizes = [8, 32], strides = [1, 1]} : vector<8x128xf32> to vector<8x32xf32>
    %562 = arith.negf %561 : vector<8x32xf32>
    %563 = math.exp %562 : vector<8x32xf32>
    %cst_300 = arith.constant 1.000000e+00 : f32
    %564 = vector.broadcast %cst_300 : f32 to vector<8x32xf32>
    %565 = arith.addf %564, %563 : vector<8x32xf32>
    %566 = arith.divf %564, %565 : vector<8x32xf32>
    %567 = vector.extract_strided_slice %553 {offsets = [0, 64], sizes = [8, 32], strides = [1, 1]} : vector<8x128xf32> to vector<8x32xf32>
    %568 = math.tanh %567 : vector<8x32xf32>
    %569 = vector.extract_strided_slice %553 {offsets = [0, 96], sizes = [8, 32], strides = [1, 1]} : vector<8x128xf32> to vector<8x32xf32>
    %570 = arith.negf %569 : vector<8x32xf32>
    %571 = math.exp %570 : vector<8x32xf32>
    %cst_301 = arith.constant 1.000000e+00 : f32
    %572 = vector.broadcast %cst_301 : f32 to vector<8x32xf32>
    %573 = arith.addf %572, %571 : vector<8x32xf32>
    %574 = arith.divf %572, %573 : vector<8x32xf32>
    %575 = arith.mulf %566, %554 : vector<8x32xf32>
    %576 = arith.mulf %560, %568 : vector<8x32xf32>
    %577 = arith.addf %575, %576 : vector<8x32xf32>
    %578 = math.tanh %577 : vector<8x32xf32>
    %579 = arith.mulf %574, %578 : vector<8x32xf32>
    %c0_302 = arith.constant 0 : index
    %c0_303 = arith.constant 0 : index
    %580 = vector.load %arg13[%c0_302, %c0_303] : memref<8x32xf32, #tpu.memory_space<vmem>>, vector<8x32xf32>
    tpu.vector_store %arg13[%c0_302, %c0_303], %579 {strides = array<i32>} : memref<8x32xf32, #tpu.memory_space<vmem>>, vector<8x32xf32>,
    %c0_304 = arith.constant 0 : index
    %c0_305 = arith.constant 0 : index
    %581 = vector.load %arg14[%c0_304, %c0_305] : memref<8x32xf32, #tpu.memory_space<vmem>>, vector<8x32xf32>
    tpu.vector_store %arg14[%c0_304, %c0_305], %577 {strides = array<i32>} : memref<8x32xf32, #tpu.memory_space<vmem>>, vector<8x32xf32>,
    %c56_306 = arith.constant 56 : index
    %c0_307 = arith.constant 0 : index
    %582 = vector.load %arg16[%c56_306, %c0_307] : memref<64x32xf32, #tpu.memory_space<vmem>>, vector<8x32xf32>
    tpu.vector_store %arg16[%c56_306, %c0_307], %579 {strides = array<i32>} : memref<64x32xf32, #tpu.memory_space<vmem>>, vector<8x32xf32>,
    %c0_308 = arith.constant 0 : index
    %c0_309 = arith.constant 0 : index
    %583 = vector.load %arg16[%c0_308, %c0_309] : memref<64x32xf32, #tpu.memory_space<vmem>>, vector<64x32xf32>
    %c0_310 = arith.constant 0 : index
    %c0_311 = arith.constant 0 : index
    %584 = vector.load %arg8[%c0_310, %c0_311] : memref<32x128xf32, #tpu.memory_space<vmem>>, vector<32x128xf32>
    %cst_312 = arith.constant dense<0.000000e+00> : vector<64x128xf32>
    %585 = tpu.matmul %583, %584, %cst_312 {dimension_numbers = #tpu.dot_dimension_numbers<[1], [0], [0], [1], [0, 0, 1, 1], [], []>} : vector<64x32xf32>, vector<32x128xf32>, vector<64x128xf32> -> vector<64x128xf32>
    %c0_313 = arith.constant 0 : index
    %c0_314 = arith.constant 0 : index
    %586 = vector.load %arg9[%c0_313, %c0_314] : memref<1x128xf32, #tpu.memory_space<vmem>>, vector<1x128xf32>
    %587 = vector.broadcast %586 : vector<1x128xf32> to vector<64x128xf32>
    %588 = arith.addf %585, %587 : vector<64x128xf32>
    %c0_315 = arith.constant 0 : index
    %c0_316 = arith.constant 0 : index
    %589 = vector.load %arg10[%c0_315, %c0_316] : memref<64x128xf32, #tpu.memory_space<vmem>>, vector<64x128xf32>
    tpu.vector_store %arg10[%c0_315, %c0_316], %588 {strides = array<i32>} : memref<64x128xf32, #tpu.memory_space<vmem>>, vector<64x128xf32>,
    return
  }
  func.func @transform_0(%arg0: i32) -> (i32, i32) {
    %c0_i32 = arith.constant 0 : i32
    %c0_i32_0 = arith.constant 0 : i32
    %c0_i32_1 = arith.constant 0 : i32
    return %c0_i32, %c0_i32_0 : i32, i32
  }
  func.func @transform_1(%arg0: i32) -> (i32, i32) {
    %c0_i32 = arith.constant 0 : i32
    %c0_i32_0 = arith.constant 0 : i32
    %c0_i32_1 = arith.constant 0 : i32
    return %c0_i32, %c0_i32_0 : i32, i32
  }
  func.func @transform_2(%arg0: i32) -> (i32, i32) {
    %c0_i32 = arith.constant 0 : i32
    %c0_i32_0 = arith.constant 0 : i32
    %c0_i32_1 = arith.constant 0 : i32
    return %c0_i32, %c0_i32_0 : i32, i32
  }
  func.func @transform_3(%arg0: i32) -> (i32, i32) {
    %c0_i32 = arith.constant 0 : i32
    %c0_i32_0 = arith.constant 0 : i32
    %c0_i32_1 = arith.constant 0 : i32
    return %c0_i32, %c0_i32_0 : i32, i32
  }
  func.func @transform_4(%arg0: i32) -> (i32, i32) {
    %c0_i32 = arith.constant 0 : i32
    %c0_i32_0 = arith.constant 0 : i32
    %c0_i32_1 = arith.constant 0 : i32
    return %c0_i32, %c0_i32_0 : i32, i32
  }
  func.func @transform_5(%arg0: i32) -> (i32, i32) {
    %c0_i32 = arith.constant 0 : i32
    %c0_i32_0 = arith.constant 0 : i32
    %c0_i32_1 = arith.constant 0 : i32
    return %c0_i32, %c0_i32_0 : i32, i32
  }
  func.func @transform_6(%arg0: i32) -> (i32, i32) {
    %c0_i32 = arith.constant 0 : i32
    %c0_i32_0 = arith.constant 0 : i32
    %c0_i32_1 = arith.constant 0 : i32
    return %c0_i32, %c0_i32_0 : i32, i32
  }
  func.func @transform_7(%arg0: i32) -> (i32, i32) {
    %c0_i32 = arith.constant 0 : i32
    %c0_i32_0 = arith.constant 0 : i32
    %c0_i32_1 = arith.constant 0 : i32
    return %c0_i32, %c0_i32_0 : i32, i32
  }
  func.func @transform_8(%arg0: i32) -> (i32, i32) {
    %c0_i32 = arith.constant 0 : i32
    %c0_i32_0 = arith.constant 0 : i32
    %c0_i32_1 = arith.constant 0 : i32
    return %c0_i32, %c0_i32_0 : i32, i32
  }
  func.func @transform_9(%arg0: i32) -> (i32, i32) {
    %c0_i32 = arith.constant 0 : i32
    %c0_i32_0 = arith.constant 0 : i32
    %c0_i32_1 = arith.constant 0 : i32
    return %c0_i32, %c0_i32_0 : i32, i32
  }
}

</mosaic_0001>

<llo_original>
// kernel: tpu_custom_call.1
$region0: #{tpu_custom_call.1}
  #allocation0 [shape = 'u32[]', space=smem, size = 0x4, offset = 0x4, fixed_abs, tag = 'smem constant byte address 0x4 - core index']
  #allocation1 [shape = 'u32[144,128]{1,0:T(1,128)}', space=vmem, size = 0x12000, scoped, tag = 'internal scratch']
  #allocation2 [shape = 'f32[8,32]{1,0:T(8,128)}', space=vmem, size = 0x1000, scoped, tag = 'scratch operand']
  #allocation3 [shape = 'f32[8,32]{1,0:T(8,128)}', space=vmem, size = 0x1000, scoped, tag = 'scratch operand']
  #allocation4 [shape = 'f32[8,32]{1,0:T(8,128)}', space=vmem, size = 0x1000, scoped, tag = 'scratch operand']
  #allocation5 [shape = 'f32[8,32]{1,0:T(8,128)}', space=vmem, size = 0x1000, scoped, tag = 'scratch operand']
  #allocation6 [shape = 'f32[64,128]{1,0:T(8,128)}', space=vmem, size = 0x8000, scoped, tag = 'scratch operand']
  #allocation7 [shape = 'f32[64,32]{1,0:T(8,128)}', space=vmem, size = 0x8000, scoped, tag = 'scratch operand']
  %s0 = inlined_call_operand.vmem [shape: f32[64,16], index: 0, kind: input, shape index: {}]
  %s1 = inlined_call_operand.hbm [shape: f32[16,128], index: 1, kind: input, shape index: {}]
  %s2 = inlined_call_operand.vmem [shape: f32[32,128], index: 2, kind: input, shape index: {}]
  %s3 = inlined_call_operand.vmem [shape: f32[1,128], index: 3, kind: input, shape index: {}]
  %s4 = inlined_call_operand.vmem [shape: f32[32,128], index: 4, kind: input, shape index: {}]
  %s5 = inlined_call_operand.vmem [shape: f32[32,128], index: 5, kind: input, shape index: {}]
  %s6 = inlined_call_operand.vmem [shape: f32[1,128], index: 6, kind: input, shape index: {}]
  %s7 = inlined_call_operand.hbm [shape: f32[32,128], index: 7, kind: input, shape index: {}]
  %s8 = inlined_call_operand.vmem [shape: f32[1,128], index: 8, kind: input, shape index: {}]
  %s9 = inlined_call_operand.hbm [shape: f32[64,128], index: 9, kind: output, shape index: {}]
  %s10 = sld [smem:[#allocation0]]
  $region54: #{tpu_custom_call.1} parent=0
    _
  %s12 = ssub.s32 1, %s10
  %s13 = scalar_select 0, %s12, %s10
  $region1: #{tpu_custom_call.1} parent=0
    #allocation8 [shape = 'u8[8192]{0}', space=vmem, size = 0x2000, scoped, tag = 'input window, operand 1, single buffered']
    #allocation9 [shape = 's32[1]{0}', space=sflag, size = 0x4, scoped, tag = 'scoped memory for tpu_custom_call.1']
    #allocation10 [shape = 's32[1]{0}', space=sflag, size = 0x4, scoped, tag = 'scoped memory for tpu_custom_call.1']
    #allocation11 [shape = 'u8[16384]{0}', space=vmem, size = 0x4000, scoped, tag = 'input window, operand 7, single buffered']
    #allocation12 [shape = 's32[1]{0}', space=sflag, size = 0x4, scoped, tag = 'scoped memory for tpu_custom_call.1']
    #allocation13 [shape = 'u8[32768]{0}', space=vmem, size = 0x8000, scoped, tag = 'output window, operand 0, single buffered']
    %14 = vsyncpa [#allocation9], 0
    %15 = vsyncpa [#allocation12], 0
    %16 = vsyncpa [#allocation10], 0
    // Predicated region
    $region2: #{tpu_custom_call.1} parent=1 // pred_check
      _
    $region3: #{tpu_custom_call.1} parent=1 // pred_check_branch
      %18 = sbr.rel (0) target = $region5
    $region4: #{tpu_custom_call.1} parent=1 // pred_region
      _
    $region5: #{tpu_custom_call.1} parent=1 // pred_fallthru
      _
    // Predicated region
    $region6: #{tpu_custom_call.1} parent=1 // pred_check
      _
    $region7: #{tpu_custom_call.1} parent=1 // pred_check_branch
      %20 = sbr.rel (0) target = $region9
    $region8: #{tpu_custom_call.1} parent=1 // pred_region
      %s22 = ssub.s32 256, 256
      %23 = vsyncadd [#allocation9], %s22
      %s24 = sshll.u32 [#allocation8], 4
      %s25 = int_to_ptr.vmem [resolvable:$true] %s24
      %30 = dma.hbm_to_vmem [thread:$0]  %s1, 256, %s25, [#allocation9], 128, 128, 8
    $region9: #{tpu_custom_call.1} parent=1 // pred_fallthru
      _
    // Predicated region
    $region10: #{tpu_custom_call.1} parent=1 // pred_check
      _
    $region11: #{tpu_custom_call.1} parent=1 // pred_check_branch
      %32 = sbr.rel (0) target = $region13
    $region12: #{tpu_custom_call.1} parent=1 // pred_region
      _
    $region13: #{tpu_custom_call.1} parent=1 // pred_fallthru
      _
    // Predicated region
    $region14: #{tpu_custom_call.1} parent=1 // pred_check
      _
    $region15: #{tpu_custom_call.1} parent=1 // pred_check_branch
      %34 = sbr.rel (0) target = $region17
    $region16: #{tpu_custom_call.1} parent=1 // pred_region
      _
    $region17: #{tpu_custom_call.1} parent=1 // pred_fallthru
      _
    // Predicated region
    $region18: #{tpu_custom_call.1} parent=1 // pred_check
      _
    $region19: #{tpu_custom_call.1} parent=1 // pred_check_branch
      %36 = sbr.rel (0) target = $region21
    $region20: #{tpu_custom_call.1} parent=1 // pred_region
      _
    $region21: #{tpu_custom_call.1} parent=1 // pred_fallthru
      _
    // Predicated region
    $region22: #{tpu_custom_call.1} parent=1 // pred_check
      _
    $region23: #{tpu_custom_call.1} parent=1 // pred_check_branch
      %38 = sbr.rel (0) target = $region25
    $region24: #{tpu_custom_call.1} parent=1 // pred_region
      _
    $region25: #{tpu_custom_call.1} parent=1 // pred_fallthru
      _
    // Predicated region
    $region26: #{tpu_custom_call.1} parent=1 // pred_check
      _
    $region27: #{tpu_custom_call.1} parent=1 // pred_check_branch
      %40 = sbr.rel (0) target = $region29
    $region28: #{tpu_custom_call.1} parent=1 // pred_region
      _
    $region29: #{tpu_custom_call.1} parent=1 // pred_fallthru
      _
    // Predicated region
    $region30: #{tpu_custom_call.1} parent=1 // pred_check
      _
    $region31: #{tpu_custom_call.1} parent=1 // pred_check_branch
      %42 = sbr.rel (0) target = $region33
    $region32: #{tpu_custom_call.1} parent=1 // pred_region
      %s44 = ssub.s32 512, 512
      %45 = vsyncadd [#allocation12], %s44
      %s46 = sshll.u32 [#allocation11], 4
      %s47 = int_to_ptr.vmem [resolvable:$true] %s46
      %52 = dma.hbm_to_vmem [thread:$0]  %s7, 512, %s47, [#allocation12], 128, 128, 8
    $region33: #{tpu_custom_call.1} parent=1 // pred_fallthru
      _
    // Predicated region
    $region34: #{tpu_custom_call.1} parent=1 // pred_check
      _
    $region35: #{tpu_custom_call.1} parent=1 // pred_check_branch
      %54 = sbr.rel (0) target = $region37
    $region36: #{tpu_custom_call.1} parent=1 // pred_region
      _
    $region37: #{tpu_custom_call.1} parent=1 // pred_fallthru
      _
    // Predicated region
    $region38: #{tpu_custom_call.1} parent=1 // pred_check
      _
    $region39: #{tpu_custom_call.1} parent=1 // pred_check_branch
      %56 = sbr.rel (0) target = $region41
    $region40: #{tpu_custom_call.1} parent=1 // pred_region
      %57 = dma.done [#allocation9], 256
    $region41: #{tpu_custom_call.1} parent=1 // pred_fallthru
      _
    // Predicated region
    $region42: #{tpu_custom_call.1} parent=1 // pred_check
      _
    $region43: #{tpu_custom_call.1} parent=1 // pred_check_branch
      %59 = sbr.rel (0) target = $region45
    $region44: #{tpu_custom_call.1} parent=1 // pred_region
      %60 = dma.done [#allocation12], 512
    $region45: #{tpu_custom_call.1} parent=1 // pred_fallthru
      _
    %vm61 = vcmask 261120
    %62 = vst.msk [vmem:[#allocation2] sm:$0xff] %vm61, 0.0
    %63 = vst.msk [vmem:[#allocation3] sm:$0xff] %vm61, 0.0
    %64 = vst.msk [vmem:[#allocation4] sm:$0xff] %vm61, 0.0
    %65 = vst.msk [vmem:[#allocation5] sm:$0xff] %vm61, 0.0
    %v66 = vld [vmem:[%s0] sm:$0xff]
    %v67 = vld [vmem:[%s0 + $0x8] sm:$0xff]
    %v68 = vld [vmem:[%s0 + $0x10] sm:$0xff]
    %v69 = vld [vmem:[%s0 + $0x18] sm:$0xff]
    %v70 = vld [vmem:[%s0 + $0x20] sm:$0xff]
    %v71 = vld [vmem:[%s0 + $0x28] sm:$0xff]
    %v72 = vld [vmem:[%s0 + $0x30] sm:$0xff]
    %v73 = vld [vmem:[%s0 + $0x38] sm:$0xff]
    %v74 = vld [vmem:[#allocation8] sm:$0xff]
    %v75 = vld [vmem:[#allocation8 + $0x8] sm:$0xff]
    %v76 = vld [vmem:[%s3] sm:$0x1]
    %v78 = vlaneseq
    %v79 = vshrl.u32 %v78, 7
    %v80 = vsub.s32 0, %v79
    %v81 = vrot.slane %v76, %v80
    %vm83 = vcmask 130048
    %v85 = vsel %vm83, %v66, 0
    %v88 = vsel %vm83, %v67, 0
    %v91 = vsel %vm83, %v68, 0
    %v94 = vsel %vm83, %v69, 0
    %v97 = vsel %vm83, %v70, 0
    %v100 = vsel %vm83, %v71, 0
    %v103 = vsel %vm83, %v72, 0
    %v106 = vsel %vm83, %v73, 0
    %108 = vmatprep.subr.mxu0 0.0
    %109 = vmatpush1.msra.mxu0 %v74
    %110 = vmatprep.subr.mxu0 0.0
    %111 = vmatpush1.msra.mxu0 %v75
    %112 = vmatprep.subr.mxu0 0.0
    %113 = vmatpush1.msra.mxu0 0.0
    %114 = vmatprep.subr.mxu0 0.0
    %115 = vmatpush1.msra.mxu0 0.0
    %116 = vmatprep.subr.mxu0 0.0
    %117 = vmatpush1.msra.mxu0 0.0
    %118 = vmatprep.subr.mxu0 0.0
    %119 = vmatpush1.msra.mxu0 0.0
    %120 = vmatprep.subr.mxu0 0.0
    %121 = vmatpush1.msra.mxu0 0.0
    %122 = vmatprep.subr.mxu0 0.0
    %123 = vmatpush1.msra.mxu0 0.0
    %124 = vmatprep.subr.mxu0 0.0
    %125 = vmatpush1.msra.mxu0 0.0
    %126 = vmatprep.subr.mxu0 0.0
    %127 = vmatpush1.msra.mxu0 0.0
    %128 = vmatprep.subr.mxu0 0.0
    %129 = vmatpush1.msra.mxu0 0.0
    %130 = vmatprep.subr.mxu0 0.0
    %131 = vmatpush1.msra.mxu0 0.0
    %132 = vmatprep.subr.mxu0 0.0
    %133 = vmatpush1.msra.mxu0 0.0
    %134 = vmatprep.subr.mxu0 0.0
    %135 = vmatpush1.msra.mxu0 0.0
    %136 = vmatprep.subr.mxu0 0.0
    %137 = vmatpush1.msra.mxu0 0.0
    %138 = vmatprep.subr.mxu0 0.0
    %139 = vmatpush1.msra.mxu0 0.0
    %140 = vmatprep.subr.mxu0 0.0
    %141 = vmatpush1.msra.mxu0 0.0
    %142 = vmatprep.subr.mxu0 0.0
    %143 = vmatpush1.msra.mxu0 0.0
    %144 = vmatprep.subr.mxu0 0.0
    %145 = vmatpush1.msra.mxu0 0.0
    %146 = vmatprep.subr.mxu0 0.0
    %147 = vmatpush1.msra.mxu0 0.0
    %148 = vmatprep.subr.mxu0 0.0
    %149 = vmatpush1.msra.mxu0 0.0
    %150 = vmatprep.subr.mxu0 0.0
    %151 = vmatpush1.msra.mxu0 0.0
    %152 = vmatprep.subr.mxu0 0.0
    %153 = vmatpush1.msra.mxu0 0.0
    %154 = vmatprep.subr.mxu0 0.0
    %155 = vmatpush1.msra.mxu0 0.0
    %156 = vmatprep.subr.mxu0 0.0
    %157 = vmatpush1.msra.mxu0 0.0
    %158 = vmatprep.subr.mxu0 0.0
    %159 = vmatpush1.msra.mxu0 0.0
    %160 = vmatprep.subr.mxu0 0.0
    %161 = vmatpush1.msra.mxu0 0.0
    %162 = vmatprep.subr.mxu0 0.0
    %163 = vmatpush1.msra.mxu0 0.0
    %164 = vmatprep.subr.mxu0 0.0
    %165 = vmatpush1.msra.mxu0 0.0
    %166 = vmatprep.subr.mxu0 0.0
    %167 = vmatpush1.msra.mxu0 0.0
    %168 = vmatprep.subr.mxu0 0.0
    %169 = vmatpush1.msra.mxu0 0.0
    %170 = vmatprep.subr.mxu0 0.0
    %171 = vmatpush1.msra.mxu0 0.0
    %172 = vmatprep.mubr.f32.mxu0 0.0
    %173 = vmatmul.mubr.f32.gmra.mrb[0].mxu0 %v85
    %v174 = vpop.f32.mrb[0].mxu0
    %v175 = vadd.f32 %v81, %v174
    %v176 = vpop.f32.mrb[0].mxu0
    %177 = vmatprep.mubr.f32.mxu0 0.0
    %178 = vmatmul.mubr.f32.gmra.mrb[0].mxu0 %v88
    %v179 = vpop.f32.mrb[0].mxu0
    %v180 = vadd.f32 %v81, %v179
    %v181 = vpop.f32.mrb[0].mxu0
    %182 = vmatprep.mubr.f32.mxu0 0.0
    %183 = vmatmul.mubr.f32.gmra.mrb[0].mxu0 %v91
    %v184 = vpop.f32.mrb[0].mxu0
    %v185 = vadd.f32 %v81, %v184
    %v186 = vpop.f32.mrb[0].mxu0
    %187 = vmatprep.mubr.f32.mxu0 0.0
    %188 = vmatmul.mubr.f32.gmra.mrb[0].mxu0 %v94
    %v189 = vpop.f32.mrb[0].mxu0
    %v190 = vadd.f32 %v81, %v189
    %v191 = vpop.f32.mrb[0].mxu0
    %192 = vmatprep.mubr.f32.mxu0 0.0
    %193 = vmatmul.mubr.f32.gmra.mrb[0].mxu0 %v97
    %v194 = vpop.f32.mrb[0].mxu0
    %v195 = vadd.f32 %v81, %v194
    %v196 = vpop.f32.mrb[0].mxu0
    %197 = vmatprep.mubr.f32.mxu0 0.0
    %198 = vmatmul.mubr.f32.gmra.mrb[0].mxu0 %v100
    %v199 = vpop.f32.mrb[0].mxu0
    %v200 = vadd.f32 %v81, %v199
    %v201 = vpop.f32.mrb[0].mxu0
    %202 = vmatprep.mubr.f32.mxu0 0.0
    %203 = vmatmul.mubr.f32.gmra.mrb[0].mxu0 %v103
    %v204 = vpop.f32.mrb[0].mxu0
    %v205 = vadd.f32 %v81, %v204
    %v206 = vpop.f32.mrb[0].mxu0
    %207 = vmatprep.mubr.f32.mxu0 0.0
    %208 = vmatmul.mubr.f32.gmra.mrb[0].mxu0 %v106
    %v209 = vpop.f32.mrb[0].mxu0
    %v210 = vadd.f32 %v81, %v209
    %v211 = vpop.f32.mrb[0].mxu0
    %212 = vdwg.mxu0
    %213 = vst [vmem:[#allocation6] sm:$0xff] %v175
    %214 = vst [vmem:[#allocation6 + $0x8] sm:$0xff] %v180
    %215 = vst [vmem:[#allocation6 + $0x10] sm:$0xff] %v185
    %216 = vst [vmem:[#allocation6 + $0x18] sm:$0xff] %v190
    %217 = vst [vmem:[#allocation6 + $0x20] sm:$0xff] %v195
    %218 = vst [vmem:[#allocation6 + $0x28] sm:$0xff] %v200
    %219 = vst [vmem:[#allocation6 + $0x30] sm:$0xff] %v205
    %220 = vst [vmem:[#allocation6 + $0x38] sm:$0xff] %v210
    %v221 = vld [vmem:[#allocation6] sm:$0xff]
    %v222 = vld [vmem:[#allocation2] sm:$0xff]
    %v223 = vld [vmem:[%s2] sm:$0xff]
    %v224 = vld [vmem:[%s2 + $0x8] sm:$0xff]
    %v225 = vld [vmem:[%s2 + $0x10] sm:$0xff]
    %v226 = vld [vmem:[%s2 + $0x18] sm:$0xff]
    %v228 = vsel %vm61, %v222, 0
    %230 = vmatprep.subr.mxu0 0.0
    %231 = vmatpush1.msra.mxu0 %v223
    %232 = vmatprep.subr.mxu0 0.0
    %233 = vmatpush1.msra.mxu0 %v224
    %234 = vmatprep.subr.mxu0 0.0
    %235 = vmatpush1.msra.mxu0 %v225
    %236 = vmatprep.subr.mxu0 0.0
    %237 = vmatpush1.msra.mxu0 %v226
    %238 = vmatprep.subr.mxu0 0.0
    %239 = vmatpush1.msra.mxu0 0.0
    %240 = vmatprep.subr.mxu0 0.0
    %241 = vmatpush1.msra.mxu0 0.0
    %242 = vmatprep.subr.mxu0 0.0
    %243 = vmatpush1.msra.mxu0 0.0
    %244 = vmatprep.subr.mxu0 0.0
    %245 = vmatpush1.msra.mxu0 0.0
    %246 = vmatprep.subr.mxu0 0.0
    %247 = vmatpush1.msra.mxu0 0.0
    %248 = vmatprep.subr.mxu0 0.0
    %249 = vmatpush1.msra.mxu0 0.0
    %250 = vmatprep.subr.mxu0 0.0
    %251 = vmatpush1.msra.mxu0 0.0
    %252 = vmatprep.subr.mxu0 0.0
    %253 = vmatpush1.msra.mxu0 0.0
    %254 = vmatprep.subr.mxu0 0.0
    %255 = vmatpush1.msra.mxu0 0.0
    %256 = vmatprep.subr.mxu0 0.0
    %257 = vmatpush1.msra.mxu0 0.0
    %258 = vmatprep.subr.mxu0 0.0
    %259 = vmatpush1.msra.mxu0 0.0
    %260 = vmatprep.subr.mxu0 0.0
    %261 = vmatpush1.msra.mxu0 0.0
    %262 = vmatprep.subr.mxu0 0.0
    %263 = vmatpush1.msra.mxu0 0.0
    %264 = vmatprep.subr.mxu0 0.0
    %265 = vmatpush1.msra.mxu0 0.0
    %266 = vmatprep.subr.mxu0 0.0
    %267 = vmatpush1.msra.mxu0 0.0
    %268 = vmatprep.subr.mxu0 0.0
    %269 = vmatpush1.msra.mxu0 0.0
    %270 = vmatprep.subr.mxu0 0.0
    %271 = vmatpush1.msra.mxu0 0.0
    %272 = vmatprep.subr.mxu0 0.0
    %273 = vmatpush1.msra.mxu0 0.0
    %274 = vmatprep.subr.mxu0 0.0
    %275 = vmatpush1.msra.mxu0 0.0
    %276 = vmatprep.subr.mxu0 0.0
    %277 = vmatpush1.msra.mxu0 0.0
    %278 = vmatprep.subr.mxu0 0.0
    %279 = vmatpush1.msra.mxu0 0.0
    %280 = vmatprep.subr.mxu0 0.0
    %281 = vmatpush1.msra.mxu0 0.0
    %282 = vmatprep.subr.mxu0 0.0
    %283 = vmatpush1.msra.mxu0 0.0
    %284 = vmatprep.subr.mxu0 0.0
    %285 = vmatpush1.msra.mxu0 0.0
    %286 = vmatprep.subr.mxu0 0.0
    %287 = vmatpush1.msra.mxu0 0.0
    %288 = vmatprep.subr.mxu0 0.0
    %289 = vmatpush1.msra.mxu0 0.0
    %290 = vmatprep.subr.mxu0 0.0
    %291 = vmatpush1.msra.mxu0 0.0
    %292 = vmatprep.subr.mxu0 0.0
    %293 = vmatpush1.msra.mxu0 0.0
    %294 = vmatprep.mubr.f32.mxu0 0.0
    %295 = vmatmul.mubr.f32.gmra.mrb[0].mxu0 %v228
    %v296 = vpop.f32.mrb[0].mxu0
    %v297 = vadd.f32 0.0, %v296
    %v298 = vpop.f32.mrb[0].mxu0
    %299 = vdwg.mxu0
    %v300 = vadd.f32 %v221, %v297
    %v301 = vld [vmem:[#allocation3] sm:$0xff]
    %v302 = vxor.u32 %v300, 2147483648
    %v303 = vmul.f32 %v302, 1.442695
    %v304 = vpow.pop %v303
    %v305 = vadd.f32 %v304, 1.0
    %v306 = vrcp.pop %v305
    %v307 = vmul.f32 1.0, %v306
    %v308 = vtanh.pop %v300
    %310 = vrot.lane.b32.xlu0 %v301, 32
    %v311 = vpop.permute.xlu0 %310
    %v313 = vmul.f32 %v307, %v311
    %315 = vrot.lane.b32.xlu0 %v308, 64
    %v316 = vpop.permute.xlu0 %315
    %v318 = vmul.f32 %v307, %v316
    %320 = vrot.lane.b32.xlu0 %v318, 32
    %v321 = vpop.permute.xlu0 %320
    %v323 = vadd.f32 %v313, %v321
    %v324 = vtanh.pop %v323
    %326 = vrot.lane.b32.xlu0 %v324, 64
    %v327 = vpop.permute.xlu0 %326
    %v329 = vmul.f32 %v307, %v327
    %331 = vrot.lane.b32.xlu0 %v329, 32
    %v332 = vpop.permute.xlu0 %331
    %334 = vst.msk [vmem:[#allocation2] sm:$0xff] %vm61, %v332
    %336 = vrot.lane.b32.xlu0 %v323, 96
    %v337 = vpop.permute.xlu0 %336
    %339 = vst.msk [vmem:[#allocation3] sm:$0xff] %vm61, %v337
    %v340 = vld [vmem:[%s4] sm:$0xff]
    %v341 = vld [vmem:[%s4 + $0x8] sm:$0xff]
    %v342 = vld [vmem:[%s4 + $0x10] sm:$0xff]
    %v343 = vld [vmem:[%s4 + $0x18] sm:$0xff]
    %v344 = vld [vmem:[#allocation4] sm:$0xff]
    %v345 = vld [vmem:[%s5] sm:$0xff]
    %v346 = vld [vmem:[%s5 + $0x8] sm:$0xff]
    %v347 = vld [vmem:[%s5 + $0x10] sm:$0xff]
    %v348 = vld [vmem:[%s5 + $0x18] sm:$0xff]
    %v350 = vsel %vm61, %v344, 0
    %352 = vmatprep.subr.mxu0 0.0
    %353 = vmatpush1.msra.mxu0 %v345
    %354 = vmatprep.subr.mxu0 0.0
    %355 = vmatpush1.msra.mxu0 %v346
    %356 = vmatprep.subr.mxu0 0.0
    %357 = vmatpush1.msra.mxu0 %v347
    %358 = vmatprep.subr.mxu0 0.0
    %359 = vmatpush1.msra.mxu0 %v348
    %360 = vmatprep.subr.mxu0 0.0
    %361 = vmatpush1.msra.mxu0 0.0
    %362 = vmatprep.subr.mxu0 0.0
    %363 = vmatpush1.msra.mxu0 0.0
    %364 = vmatprep.subr.mxu0 0.0
    %365 = vmatpush1.msra.mxu0 0.0
    %366 = vmatprep.subr.mxu0 0.0
    %367 = vmatpush1.msra.mxu0 0.0
    %368 = vmatprep.subr.mxu0 0.0
    %369 = vmatpush1.msra.mxu0 0.0
    %370 = vmatprep.subr.mxu0 0.0
    %371 = vmatpush1.msra.mxu0 0.0
    %372 = vmatprep.subr.mxu0 0.0
    %373 = vmatpush1.msra.mxu0 0.0
    %374 = vmatprep.subr.mxu0 0.0
    %375 = vmatpush1.msra.mxu0 0.0
    %376 = vmatprep.subr.mxu0 0.0
    %377 = vmatpush1.msra.mxu0 0.0
    %378 = vmatprep.subr.mxu0 0.0
    %379 = vmatpush1.msra.mxu0 0.0
    %380 = vmatprep.subr.mxu0 0.0
    %381 = vmatpush1.msra.mxu0 0.0
    %382 = vmatprep.subr.mxu0 0.0
    %383 = vmatpush1.msra.mxu0 0.0
    %384 = vmatprep.subr.mxu0 0.0
    %385 = vmatpush1.msra.mxu0 0.0
    %386 = vmatprep.subr.mxu0 0.0
    %387 = vmatpush1.msra.mxu0 0.0
    %388 = vmatprep.subr.mxu0 0.0
    %389 = vmatpush1.msra.mxu0 0.0
    %390 = vmatprep.subr.mxu0 0.0
    %391 = vmatpush1.msra.mxu0 0.0
    %392 = vmatprep.subr.mxu0 0.0
    %393 = vmatpush1.msra.mxu0 0.0
    %394 = vmatprep.subr.mxu0 0.0
    %395 = vmatpush1.msra.mxu0 0.0
    %396 = vmatprep.subr.mxu0 0.0
    %397 = vmatpush1.msra.mxu0 0.0
    %398 = vmatprep.subr.mxu0 0.0
    %399 = vmatpush1.msra.mxu0 0.0
    %400 = vmatprep.subr.mxu0 0.0
    %401 = vmatpush1.msra.mxu0 0.0
    %402 = vmatprep.subr.mxu0 0.0
    %403 = vmatpush1.msra.mxu0 0.0
    %404 = vmatprep.subr.mxu0 0.0
    %405 = vmatpush1.msra.mxu0 0.0
    %406 = vmatprep.subr.mxu0 0.0
    %407 = vmatpush1.msra.mxu0 0.0
    %408 = vmatprep.subr.mxu0 0.0
    %409 = vmatpush1.msra.mxu0 0.0
    %410 = vmatprep.subr.mxu0 0.0
    %411 = vmatpush1.msra.mxu0 0.0
    %412 = vmatprep.subr.mxu0 0.0
    %413 = vmatpush1.msra.mxu0 0.0
    %414 = vmatprep.subr.mxu0 0.0
    %415 = vmatpush1.msra.mxu0 0.0
    %416 = vmatprep.mubr.f32.mxu0 0.0
    %417 = vmatmul.mubr.f32.gmra.mrb[0].mxu0 %v350
    %v418 = vpop.f32.mrb[0].mxu0
    %v419 = vadd.f32 0.0, %v418
    %v420 = vpop.f32.mrb[0].mxu0
    %421 = vdwg.mxu0
    %v422 = vsel %vm61, %v332, 0
    %424 = vmatprep.subr.mxu0 0.0
    %425 = vmatpush1.msra.mxu0 %v340
    %426 = vmatprep.subr.mxu0 0.0
    %427 = vmatpush1.msra.mxu0 %v341
    %428 = vmatprep.subr.mxu0 0.0
    %429 = vmatpush1.msra.mxu0 %v342
    %430 = vmatprep.subr.mxu0 0.0
    %431 = vmatpush1.msra.mxu0 %v343
    %432 = vmatprep.subr.mxu0 0.0
    %433 = vmatpush1.msra.mxu0 0.0
    %434 = vmatprep.subr.mxu0 0.0
    %435 = vmatpush1.msra.mxu0 0.0
    %436 = vmatprep.subr.mxu0 0.0
    %437 = vmatpush1.msra.mxu0 0.0
    %438 = vmatprep.subr.mxu0 0.0
    %439 = vmatpush1.msra.mxu0 0.0
    %440 = vmatprep.subr.mxu0 0.0
    %441 = vmatpush1.msra.mxu0 0.0
    %442 = vmatprep.subr.mxu0 0.0
    %443 = vmatpush1.msra.mxu0 0.0
    %444 = vmatprep.subr.mxu0 0.0
    %445 = vmatpush1.msra.mxu0 0.0
    %446 = vmatprep.subr.mxu0 0.0
    %447 = vmatpush1.msra.mxu0 0.0
    %448 = vmatprep.subr.mxu0 0.0
    %449 = vmatpush1.msra.mxu0 0.0
    %450 = vmatprep.subr.mxu0 0.0
    %451 = vmatpush1.msra.mxu0 0.0
    %452 = vmatprep.subr.mxu0 0.0
    %453 = vmatpush1.msra.mxu0 0.0
    %454 = vmatprep.subr.mxu0 0.0
    %455 = vmatpush1.msra.mxu0 0.0
    %456 = vmatprep.subr.mxu0 0.0
    %457 = vmatpush1.msra.mxu0 0.0
    %458 = vmatprep.subr.mxu0 0.0
    %459 = vmatpush1.msra.mxu0 0.0
    %460 = vmatprep.subr.mxu0 0.0
    %461 = vmatpush1.msra.mxu0 0.0
    %462 = vmatprep.subr.mxu0 0.0
    %463 = vmatpush1.msra.mxu0 0.0
    %464 = vmatprep.subr.mxu0 0.0
    %465 = vmatpush1.msra.mxu0 0.0
    %466 = vmatprep.subr.mxu0 0.0
    %467 = vmatpush1.msra.mxu0 0.0
    %468 = vmatprep.subr.mxu0 0.0
    %469 = vmatpush1.msra.mxu0 0.0
    %470 = vmatprep.subr.mxu0 0.0
    %471 = vmatpush1.msra.mxu0 0.0
    %472 = vmatprep.subr.mxu0 0.0
    %473 = vmatpush1.msra.mxu0 0.0
    %474 = vmatprep.subr.mxu0 0.0
    %475 = vmatpush1.msra.mxu0 0.0
    %476 = vmatprep.subr.mxu0 0.0
    %477 = vmatpush1.msra.mxu0 0.0
    %478 = vmatprep.subr.mxu0 0.0
    %479 = vmatpush1.msra.mxu0 0.0
    %480 = vmatprep.subr.mxu0 0.0
    %481 = vmatpush1.msra.mxu0 0.0
    %482 = vmatprep.subr.mxu0 0.0
    %483 = vmatpush1.msra.mxu0 0.0
    %484 = vmatprep.subr.mxu0 0.0
    %485 = vmatpush1.msra.mxu0 0.0
    %486 = vmatprep.subr.mxu0 0.0
    %487 = vmatpush1.msra.mxu0 0.0
    %488 = vmatprep.mubr.f32.mxu0 0.0
    %489 = vmatmul.mubr.f32.gmra.mrb[0].mxu0 %v422
    %v490 = vpop.f32.mrb[0].mxu0
    %v491 = vadd.f32 %v419, %v490
    %v492 = vpop.f32.mrb[0].mxu0
    %493 = vdwg.mxu0
    %v494 = vld [vmem:[%s6] sm:$0x1]
    %v496 = vlaneseq
    %v497 = vshrl.u32 %v496, 7
    %v498 = vsub.s32 0, %v497
    %v499 = vrot.slane %v494, %v498
    %v501 = vadd.f32 %v491, %v499
    %v502 = vld [vmem:[#allocation5] sm:$0xff]
    %v503 = vxor.u32 %v501, 2147483648
    %v504 = vmul.f32 %v503, 1.442695
    %v505 = vpow.pop %v504
    %v506 = vadd.f32 %v505, 1.0
    %v507 = vrcp.pop %v506
    %v508 = vmul.f32 1.0, %v507
    %v509 = vtanh.pop %v501
    %511 = vrot.lane.b32.xlu0 %v502, 32
    %v512 = vpop.permute.xlu0 %511
    %v514 = vmul.f32 %v508, %v512
    %516 = vrot.lane.b32.xlu0 %v509, 64
    %v517 = vpop.permute.xlu0 %516
    %v519 = vmul.f32 %v508, %v517
    %521 = vrot.lane.b32.xlu0 %v519, 32
    %v522 = vpop.permute.xlu0 %521
    %v524 = vadd.f32 %v514, %v522
    %v525 = vtanh.pop %v524
    %527 = vrot.lane.b32.xlu0 %v525, 64
    %v528 = vpop.permute.xlu0 %527
    %v530 = vmul.f32 %v508, %v528
    %532 = vrot.lane.b32.xlu0 %v530, 32
    %v533 = vpop.permute.xlu0 %532
    %535 = vst.msk [vmem:[#allocation4] sm:$0xff] %vm61, %v533
    %537 = vrot.lane.b32.xlu0 %v524, 96
    %v538 = vpop.permute.xlu0 %537
    %540 = vst.msk [vmem:[#allocation5] sm:$0xff] %vm61, %v538
    %541 = vst.msk [vmem:[#allocation7] sm:$0xff] %vm61, %v533
    %v542 = vld [vmem:[#allocation6 + $0x8] sm:$0xff]
    %v543 = vld [vmem:[#allocation2] sm:$0xff]
    %v544 = vld [vmem:[%s2] sm:$0xff]
    %v545 = vld [vmem:[%s2 + $0x8] sm:$0xff]
    %v546 = vld [vmem:[%s2 + $0x10] sm:$0xff]
    %v547 = vld [vmem:[%s2 + $0x18] sm:$0xff]
    %v549 = vsel %vm61, %v543, 0
    %551 = vmatprep.subr.mxu0 0.0
    %552 = vmatpush1.msra.mxu0 %v544
    %553 = vmatprep.subr.mxu0 0.0
    %554 = vmatpush1.msra.mxu0 %v545
    %555 = vmatprep.subr.mxu0 0.0
    %556 = vmatpush1.msra.mxu0 %v546
    %557 = vmatprep.subr.mxu0 0.0
    %558 = vmatpush1.msra.mxu0 %v547
    %559 = vmatprep.subr.mxu0 0.0
    %560 = vmatpush1.msra.mxu0 0.0
    %561 = vmatprep.subr.mxu0 0.0
    %562 = vmatpush1.msra.mxu0 0.0
    %563 = vmatprep.subr.mxu0 0.0
    %564 = vmatpush1.msra.mxu0 0.0
    %565 = vmatprep.subr.mxu0 0.0
    %566 = vmatpush1.msra.mxu0 0.0
    %567 = vmatprep.subr.mxu0 0.0
    %568 = vmatpush1.msra.mxu0 0.0
    %569 = vmatprep.subr.mxu0 0.0
    %570 = vmatpush1.msra.mxu0 0.0
    %571 = vmatprep.subr.mxu0 0.0
    %572 = vmatpush1.msra.mxu0 0.0
    %573 = vmatprep.subr.mxu0 0.0
    %574 = vmatpush1.msra.mxu0 0.0
    %575 = vmatprep.subr.mxu0 0.0
    %576 = vmatpush1.msra.mxu0 0.0
    %577 = vmatprep.subr.mxu0 0.0
    %578 = vmatpush1.msra.mxu0 0.0
    %579 = vmatprep.subr.mxu0 0.0
    %580 = vmatpush1.msra.mxu0 0.0
    %581 = vmatprep.subr.mxu0 0.0
    %582 = vmatpush1.msra.mxu0 0.0
    %583 = vmatprep.subr.mxu0 0.0
    %584 = vmatpush1.msra.mxu0 0.0
    %585 = vmatprep.subr.mxu0 0.0
    %586 = vmatpush1.msra.mxu0 0.0
    %587 = vmatprep.subr.mxu0 0.0
    %588 = vmatpush1.msra.mxu0 0.0
    %589 = vmatprep.subr.mxu0 0.0
    %590 = vmatpush1.msra.mxu0 0.0
    %591 = vmatprep.subr.mxu0 0.0
    %592 = vmatpush1.msra.mxu0 0.0
    %593 = vmatprep.subr.mxu0 0.0
    %594 = vmatpush1.msra.mxu0 0.0
    %595 = vmatprep.subr.mxu0 0.0
    %596 = vmatpush1.msra.mxu0 0.0
    %597 = vmatprep.subr.mxu0 0.0
    %598 = vmatpush1.msra.mxu0 0.0
    %599 = vmatprep.subr.mxu0 0.0
    %600 = vmatpush1.msra.mxu0 0.0
    %601 = vmatprep.subr.mxu0 0.0
    %602 = vmatpush1.msra.mxu0 0.0
    %603 = vmatprep.subr.mxu0 0.0
    %604 = vmatpush1.msra.mxu0 0.0
    %605 = vmatprep.subr.mxu0 0.0
    %606 = vmatpush1.msra.mxu0 0.0
    %607 = vmatprep.subr.mxu0 0.0
    %608 = vmatpush1.msra.mxu0 0.0
    %609 = vmatprep.subr.mxu0 0.0
    %610 = vmatpush1.msra.mxu0 0.0
    %611 = vmatprep.subr.mxu0 0.0
    %612 = vmatpush1.msra.mxu0 0.0
    %613 = vmatprep.subr.mxu0 0.0
    %614 = vmatpush1.msra.mxu0 0.0
    %615 = vmatprep.mubr.f32.mxu0 0.0
    %616 = vmatmul.mubr.f32.gmra.mrb[0].mxu0 %v549
    %v617 = vpop.f32.mrb[0].mxu0
    %v618 = vadd.f32 0.0, %v617
    %v619 = vpop.f32.mrb[0].mxu0
    %620 = vdwg.mxu0
    %v621 = vadd.f32 %v542, %v618
    %v622 = vld [vmem:[#allocation3] sm:$0xff]
    %v623 = vxor.u32 %v621, 2147483648
    %v624 = vmul.f32 %v623, 1.442695
    %v625 = vpow.pop %v624
    %v626 = vadd.f32 %v625, 1.0
    %v627 = vrcp.pop %v626
    %v628 = vmul.f32 1.0, %v627
    %v629 = vtanh.pop %v621
    %631 = vrot.lane.b32.xlu0 %v622, 32
    %v632 = vpop.permute.xlu0 %631
    %v634 = vmul.f32 %v628, %v632
    %636 = vrot.lane.b32.xlu0 %v629, 64
    %v637 = vpop.permute.xlu0 %636
    %v639 = vmul.f32 %v628, %v637
    %641 = vrot.lane.b32.xlu0 %v639, 32
    %v642 = vpop.permute.xlu0 %641
    %v644 = vadd.f32 %v634, %v642
    %v645 = vtanh.pop %v644
    %647 = vrot.lane.b32.xlu0 %v645, 64
    %v648 = vpop.permute.xlu0 %647
    %v650 = vmul.f32 %v628, %v648
    %652 = vrot.lane.b32.xlu0 %v650, 32
    %v653 = vpop.permute.xlu0 %652
    %655 = vst.msk [vmem:[#allocation2] sm:$0xff] %vm61, %v653
    %657 = vrot.lane.b32.xlu0 %v644, 96
    %v658 = vpop.permute.xlu0 %657
    %660 = vst.msk [vmem:[#allocation3] sm:$0xff] %vm61, %v658
    %v661 = vld [vmem:[%s4] sm:$0xff]
    %v662 = vld [vmem:[%s4 + $0x8] sm:$0xff]
    %v663 = vld [vmem:[%s4 + $0x10] sm:$0xff]
    %v664 = vld [vmem:[%s4 + $0x18] sm:$0xff]
    %v665 = vld [vmem:[#allocation4] sm:$0xff]
    %v666 = vld [vmem:[%s5] sm:$0xff]
    %v667 = vld [vmem:[%s5 + $0x8] sm:$0xff]
    %v668 = vld [vmem:[%s5 + $0x10] sm:$0xff]
    %v669 = vld [vmem:[%s5 + $0x18] sm:$0xff]
    %v671 = vsel %vm61, %v665, 0
    %673 = vmatprep.subr.mxu0 0.0
    %674 = vmatpush1.msra.mxu0 %v666
    %675 = vmatprep.subr.mxu0 0.0
    %676 = vmatpush1.msra.mxu0 %v667
    %677 = vmatprep.subr.mxu0 0.0
    %678 = vmatpush1.msra.mxu0 %v668
    %679 = vmatprep.subr.mxu0 0.0
    %680 = vmatpush1.msra.mxu0 %v669
    %681 = vmatprep.subr.mxu0 0.0
    %682 = vmatpush1.msra.mxu0 0.0
    %683 = vmatprep.subr.mxu0 0.0
    %684 = vmatpush1.msra.mxu0 0.0
    %685 = vmatprep.subr.mxu0 0.0
    %686 = vmatpush1.msra.mxu0 0.0
    %687 = vmatprep.subr.mxu0 0.0
    %688 = vmatpush1.msra.mxu0 0.0
    %689 = vmatprep.subr.mxu0 0.0
    %690 = vmatpush1.msra.mxu0 0.0
    %691 = vmatprep.subr.mxu0 0.0
    %692 = vmatpush1.msra.mxu0 0.0
    %693 = vmatprep.subr.mxu0 0.0
    %694 = vmatpush1.msra.mxu0 0.0
    %695 = vmatprep.subr.mxu0 0.0
    %696 = vmatpush1.msra.mxu0 0.0
    %697 = vmatprep.subr.mxu0 0.0
    %698 = vmatpush1.msra.mxu0 0.0
    %699 = vmatprep.subr.mxu0 0.0
    %700 = vmatpush1.msra.mxu0 0.0
    %701 = vmatprep.subr.mxu0 0.0
    %702 = vmatpush1.msra.mxu0 0.0
    %703 = vmatprep.subr.mxu0 0.0
    %704 = vmatpush1.msra.mxu0 0.0
    %705 = vmatprep.subr.mxu0 0.0
    %706 = vmatpush1.msra.mxu0 0.0
    %707 = vmatprep.subr.mxu0 0.0
    %708 = vmatpush1.msra.mxu0 0.0
    %709 = vmatprep.subr.mxu0 0.0
    %710 = vmatpush1.msra.mxu0 0.0
    %711 = vmatprep.subr.mxu0 0.0
    %712 = vmatpush1.msra.mxu0 0.0
    %713 = vmatprep.subr.mxu0 0.0
    %714 = vmatpush1.msra.mxu0 0.0
    %715 = vmatprep.subr.mxu0 0.0
    %716 = vmatpush1.msra.mxu0 0.0
    %717 = vmatprep.subr.mxu0 0.0
    %718 = vmatpush1.msra.mxu0 0.0
    %719 = vmatprep.subr.mxu0 0.0
    %720 = vmatpush1.msra.mxu0 0.0
    %721 = vmatprep.subr.mxu0 0.0
    %722 = vmatpush1.msra.mxu0 0.0
    %723 = vmatprep.subr.mxu0 0.0
    %724 = vmatpush1.msra.mxu0 0.0
    %725 = vmatprep.subr.mxu0 0.0
    %726 = vmatpush1.msra.mxu0 0.0
    %727 = vmatprep.subr.mxu0 0.0
    %728 = vmatpush1.msra.mxu0 0.0
    %729 = vmatprep.subr.mxu0 0.0
    %730 = vmatpush1.msra.mxu0 0.0
    %731 = vmatprep.subr.mxu0 0.0
    %732 = vmatpush1.msra.mxu0 0.0
    %733 = vmatprep.subr.mxu0 0.0
    %734 = vmatpush1.msra.mxu0 0.0
    %735 = vmatprep.subr.mxu0 0.0
    %736 = vmatpush1.msra.mxu0 0.0
    %737 = vmatprep.mubr.f32.mxu0 0.0
    %738 = vmatmul.mubr.f32.gmra.mrb[0].mxu0 %v671
    %v739 = vpop.f32.mrb[0].mxu0
    %v740 = vadd.f32 0.0, %v739
    %v741 = vpop.f32.mrb[0].mxu0
    %742 = vdwg.mxu0
    %v743 = vsel %vm61, %v653, 0
    %745 = vmatprep.subr.mxu0 0.0
    %746 = vmatpush1.msra.mxu0 %v661
    %747 = vmatprep.subr.mxu0 0.0
    %748 = vmatpush1.msra.mxu0 %v662
    %749 = vmatprep.subr.mxu0 0.0
    %750 = vmatpush1.msra.mxu0 %v663
    %751 = vmatprep.subr.mxu0 0.0
    %752 = vmatpush1.msra.mxu0 %v664
    %753 = vmatprep.subr.mxu0 0.0
    %754 = vmatpush1.msra.mxu0 0.0
    %755 = vmatprep.subr.mxu0 0.0
    %756 = vmatpush1.msra.mxu0 0.0
    %757 = vmatprep.subr.mxu0 0.0
    %758 = vmatpush1.msra.mxu0 0.0
    %759 = vmatprep.subr.mxu0 0.0
    %760 = vmatpush1.msra.mxu0 0.0
    %761 = vmatprep.subr.mxu0 0.0
    %762 = vmatpush1.msra.mxu0 0.0
    %763 = vmatprep.subr.mxu0 0.0
    %764 = vmatpush1.msra.mxu0 0.0
    %765 = vmatprep.subr.mxu0 0.0
    %766 = vmatpush1.msra.mxu0 0.0
    %767 = vmatprep.subr.mxu0 0.0
    %768 = vmatpush1.msra.mxu0 0.0
    %769 = vmatprep.subr.mxu0 0.0
    %770 = vmatpush1.msra.mxu0 0.0
    %771 = vmatprep.subr.mxu0 0.0
    %772 = vmatpush1.msra.mxu0 0.0
    %773 = vmatprep.subr.mxu0 0.0
    %774 = vmatpush1.msra.mxu0 0.0
    %775 = vmatprep.subr.mxu0 0.0
    %776 = vmatpush1.msra.mxu0 0.0
    %777 = vmatprep.subr.mxu0 0.0
    %778 = vmatpush1.msra.mxu0 0.0
    %779 = vmatprep.subr.mxu0 0.0
    %780 = vmatpush1.msra.mxu0 0.0
    %781 = vmatprep.subr.mxu0 0.0
    %782 = vmatpush1.msra.mxu0 0.0
    %783 = vmatprep.subr.mxu0 0.0
    %784 = vmatpush1.msra.mxu0 0.0
    %785 = vmatprep.subr.mxu0 0.0
    %786 = vmatpush1.msra.mxu0 0.0
    %787 = vmatprep.subr.mxu0 0.0
    %788 = vmatpush1.msra.mxu0 0.0
    %789 = vmatprep.subr.mxu0 0.0
    %790 = vmatpush1.msra.mxu0 0.0
    %791 = vmatprep.subr.mxu0 0.0
    %792 = vmatpush1.msra.mxu0 0.0
    %793 = vmatprep.subr.mxu0 0.0
    %794 = vmatpush1.msra.mxu0 0.0
    %795 = vmatprep.subr.mxu0 0.0
    %796 = vmatpush1.msra.mxu0 0.0
    %797 = vmatprep.subr.mxu0 0.0
    %798 = vmatpush1.msra.mxu0 0.0
    %799 = vmatprep.subr.mxu0 0.0
    %800 = vmatpush1.msra.mxu0 0.0
    %801 = vmatprep.subr.mxu0 0.0
    %802 = vmatpush1.msra.mxu0 0.0
    %803 = vmatprep.subr.mxu0 0.0
    %804 = vmatpush1.msra.mxu0 0.0
    %805 = vmatprep.subr.mxu0 0.0
    %806 = vmatpush1.msra.mxu0 0.0
    %807 = vmatprep.subr.mxu0 0.0
    %808 = vmatpush1.msra.mxu0 0.0
    %809 = vmatprep.mubr.f32.mxu0 0.0
    %810 = vmatmul.mubr.f32.gmra.mrb[0].mxu0 %v743
    %v811 = vpop.f32.mrb[0].mxu0
    %v812 = vadd.f32 %v740, %v811
    %v813 = vpop.f32.mrb[0].mxu0
    %814 = vdwg.mxu0
    %v815 = vld [vmem:[%s6] sm:$0x1]
    %v817 = vlaneseq
    %v818 = vshrl.u32 %v817, 7
    %v819 = vsub.s32 0, %v818
    %v820 = vrot.slane %v815, %v819
    %v822 = vadd.f32 %v812, %v820
    %v823 = vld [vmem:[#allocation5] sm:$0xff]
    %v824 = vxor.u32 %v822, 2147483648
    %v825 = vmul.f32 %v824, 1.442695
    %v826 = vpow.pop %v825
    %v827 = vadd.f32 %v826, 1.0
    %v828 = vrcp.pop %v827
    %v829 = vmul.f32 1.0, %v828
    %v830 = vtanh.pop %v822
    %832 = vrot.lane.b32.xlu0 %v823, 32
    %v833 = vpop.permute.xlu0 %832
    %v835 = vmul.f32 %v829, %v833
    %837 = vrot.lane.b32.xlu0 %v830, 64
    %v838 = vpop.permute.xlu0 %837
    %v840 = vmul.f32 %v829, %v838
    %842 = vrot.lane.b32.xlu0 %v840, 32
    %v843 = vpop.permute.xlu0 %842
    %v845 = vadd.f32 %v835, %v843
    %v846 = vtanh.pop %v845
    %848 = vrot.lane.b32.xlu0 %v846, 64
    %v849 = vpop.permute.xlu0 %848
    %v851 = vmul.f32 %v829, %v849
    %853 = vrot.lane.b32.xlu0 %v851, 32
    %v854 = vpop.permute.xlu0 %853
    %856 = vst.msk [vmem:[#allocation4] sm:$0xff] %vm61, %v854
    %858 = vrot.lane.b32.xlu0 %v845, 96
    %v859 = vpop.permute.xlu0 %858
    %861 = vst.msk [vmem:[#allocation5] sm:$0xff] %vm61, %v859
    %862 = vst.msk [vmem:[#allocation7 + $0x8] sm:$0xff] %vm61, %v854
    %v863 = vld [vmem:[#allocation6 + $0x10] sm:$0xff]
    %v864 = vld [vmem:[#allocation2] sm:$0xff]
    %v865 = vld [vmem:[%s2] sm:$0xff]
    %v866 = vld [vmem:[%s2 + $0x8] sm:$0xff]
    %v867 = vld [vmem:[%s2 + $0x10] sm:$0xff]
    %v868 = vld [vmem:[%s2 + $0x18] sm:$0xff]
    %v870 = vsel %vm61, %v864, 0
    %872 = vmatprep.subr.mxu0 0.0
    %873 = vmatpush1.msra.mxu0 %v865
    %874 = vmatprep.subr.mxu0 0.0
    %875 = vmatpush1.msra.mxu0 %v866
    %876 = vmatprep.subr.mxu0 0.0
    %877 = vmatpush1.msra.mxu0 %v867
    %878 = vmatprep.subr.mxu0 0.0
    %879 = vmatpush1.msra.mxu0 %v868
    %880 = vmatprep.subr.mxu0 0.0
    %881 = vmatpush1.msra.mxu0 0.0
    %882 = vmatprep.subr.mxu0 0.0
    %883 = vmatpush1.msra.mxu0 0.0
    %884 = vmatprep.subr.mxu0 0.0
    %885 = vmatpush1.msra.mxu0 0.0
    %886 = vmatprep.subr.mxu0 0.0
    %887 = vmatpush1.msra.mxu0 0.0
    %888 = vmatprep.subr.mxu0 0.0
    %889 = vmatpush1.msra.mxu0 0.0
    %890 = vmatprep.subr.mxu0 0.0
    %891 = vmatpush1.msra.mxu0 0.0
    %892 = vmatprep.subr.mxu0 0.0
    %893 = vmatpush1.msra.mxu0 0.0
    %894 = vmatprep.subr.mxu0 0.0
    %895 = vmatpush1.msra.mxu0 0.0
    %896 = vmatprep.subr.mxu0 0.0
    %897 = vmatpush1.msra.mxu0 0.0
    %898 = vmatprep.subr.mxu0 0.0
    %899 = vmatpush1.msra.mxu0 0.0
    %900 = vmatprep.subr.mxu0 0.0
    %901 = vmatpush1.msra.mxu0 0.0
    %902 = vmatprep.subr.mxu0 0.0
    %903 = vmatpush1.msra.mxu0 0.0
    %904 = vmatprep.subr.mxu0 0.0
    %905 = vmatpush1.msra.mxu0 0.0
    %906 = vmatprep.subr.mxu0 0.0
    %907 = vmatpush1.msra.mxu0 0.0
    %908 = vmatprep.subr.mxu0 0.0
    %909 = vmatpush1.msra.mxu0 0.0
    %910 = vmatprep.subr.mxu0 0.0
    %911 = vmatpush1.msra.mxu0 0.0
    %912 = vmatprep.subr.mxu0 0.0
    %913 = vmatpush1.msra.mxu0 0.0
    %914 = vmatprep.subr.mxu0 0.0
    %915 = vmatpush1.msra.mxu0 0.0
    %916 = vmatprep.subr.mxu0 0.0
    %917 = vmatpush1.msra.mxu0 0.0
    %918 = vmatprep.subr.mxu0 0.0
    %919 = vmatpush1.msra.mxu0 0.0
    %920 = vmatprep.subr.mxu0 0.0
    %921 = vmatpush1.msra.mxu0 0.0
    %922 = vmatprep.subr.mxu0 0.0
    %923 = vmatpush1.msra.mxu0 0.0
    %924 = vmatprep.subr.mxu0 0.0
    %925 = vmatpush1.msra.mxu0 0.0
    %926 = vmatprep.subr.mxu0 0.0
    %927 = vmatpush1.msra.mxu0 0.0
    %928 = vmatprep.subr.mxu0 0.0
    %929 = vmatpush1.msra.mxu0 0.0
    %930 = vmatprep.subr.mxu0 0.0
    %931 = vmatpush1.msra.mxu0 0.0
    %932 = vmatprep.subr.mxu0 0.0
    %933 = vmatpush1.msra.mxu0 0.0
    %934 = vmatprep.subr.mxu0 0.0
    %935 = vmatpush1.msra.mxu0 0.0
    %936 = vmatprep.mubr.f32.mxu0 0.0
    %937 = vmatmul.mubr.f32.gmra.mrb[0].mxu0 %v870
    %v938 = vpop.f32.mrb[0].mxu0
    %v939 = vadd.f32 0.0, %v938
    %v940 = vpop.f32.mrb[0].mxu0
    %941 = vdwg.mxu0
    %v942 = vadd.f32 %v863, %v939
    %v943 = vld [vmem:[#allocation3] sm:$0xff]
    %v944 = vxor.u32 %v942, 2147483648
    %v945 = vmul.f32 %v944, 1.442695
    %v946 = vpow.pop %v945
    %v947 = vadd.f32 %v946, 1.0
    %v948 = vrcp.pop %v947
    %v949 = vmul.f32 1.0, %v948
    %v950 = vtanh.pop %v942
    %952 = vrot.lane.b32.xlu0 %v943, 32
    %v953 = vpop.permute.xlu0 %952
    %v955 = vmul.f32 %v949, %v953
    %957 = vrot.lane.b32.xlu0 %v950, 64
    %v958 = vpop.permute.xlu0 %957
    %v960 = vmul.f32 %v949, %v958
    %962 = vrot.lane.b32.xlu0 %v960, 32
    %v963 = vpop.permute.xlu0 %962
    %v965 = vadd.f32 %v955, %v963
    %v966 = vtanh.pop %v965
    %968 = vrot.lane.b32.xlu0 %v966, 64
    %v969 = vpop.permute.xlu0 %968
    %v971 = vmul.f32 %v949, %v969
    %973 = vrot.lane.b32.xlu0 %v971, 32
    %v974 = vpop.permute.xlu0 %973
    %976 = vst.msk [vmem:[#allocation2] sm:$0xff] %vm61, %v974
    %978 = vrot.lane.b32.xlu0 %v965, 96
    %v979 = vpop.permute.xlu0 %978
    %981 = vst.msk [vmem:[#allocation3] sm:$0xff] %vm61, %v979
    %v982 = vld [vmem:[%s4] sm:$0xff]
    %v983 = vld [vmem:[%s4 + $0x8] sm:$0xff]
    %v984 = vld [vmem:[%s4 + $0x10] sm:$0xff]
    %v985 = vld [vmem:[%s4 + $0x18] sm:$0xff]
    %v986 = vld [vmem:[#allocation4] sm:$0xff]
    %v987 = vld [vmem:[%s5] sm:$0xff]
    %v988 = vld [vmem:[%s5 + $0x8] sm:$0xff]
    %v989 = vld [vmem:[%s5 + $0x10] sm:$0xff]
    %v990 = vld [vmem:[%s5 + $0x18] sm:$0xff]
    %v992 = vsel %vm61, %v986, 0
    %994 = vmatprep.subr.mxu0 0.0
    %995 = vmatpush1.msra.mxu0 %v987
    %996 = vmatprep.subr.mxu0 0.0
    %997 = vmatpush1.msra.mxu0 %v988
    %998 = vmatprep.subr.mxu0 0.0
    %999 = vmatpush1.msra.mxu0 %v989
    %1000 = vmatprep.subr.mxu0 0.0
    %1001 = vmatpush1.msra.mxu0 %v990
    %1002 = vmatprep.subr.mxu0 0.0
    %1003 = vmatpush1.msra.mxu0 0.0
    %1004 = vmatprep.subr.mxu0 0.0
    %1005 = vmatpush1.msra.mxu0 0.0
    %1006 = vmatprep.subr.mxu0 0.0
    %1007 = vmatpush1.msra.mxu0 0.0
    %1008 = vmatprep.subr.mxu0 0.0
    %1009 = vmatpush1.msra.mxu0 0.0
    %1010 = vmatprep.subr.mxu0 0.0
    %1011 = vmatpush1.msra.mxu0 0.0
    %1012 = vmatprep.subr.mxu0 0.0
    %1013 = vmatpush1.msra.mxu0 0.0
    %1014 = vmatprep.subr.mxu0 0.0
    %1015 = vmatpush1.msra.mxu0 0.0
    %1016 = vmatprep.subr.mxu0 0.0
    %1017 = vmatpush1.msra.mxu0 0.0
    %1018 = vmatprep.subr.mxu0 0.0
    %1019 = vmatpush1.msra.mxu0 0.0
    %1020 = vmatprep.subr.mxu0 0.0
    %1021 = vmatpush1.msra.mxu0 0.0
    %1022 = vmatprep.subr.mxu0 0.0
    %1023 = vmatpush1.msra.mxu0 0.0
    %1024 = vmatprep.subr.mxu0 0.0
    %1025 = vmatpush1.msra.mxu0 0.0
    %1026 = vmatprep.subr.mxu0 0.0
    %1027 = vmatpush1.msra.mxu0 0.0
    %1028 = vmatprep.subr.mxu0 0.0
    %1029 = vmatpush1.msra.mxu0 0.0
    %1030 = vmatprep.subr.mxu0 0.0
    %1031 = vmatpush1.msra.mxu0 0.0
    %1032 = vmatprep.subr.mxu0 0.0
    %1033 = vmatpush1.msra.mxu0 0.0
    %1034 = vmatprep.subr.mxu0 0.0
    %1035 = vmatpush1.msra.mxu0 0.0
    %1036 = vmatprep.subr.mxu0 0.0
    %1037 = vmatpush1.msra.mxu0 0.0
    %1038 = vmatprep.subr.mxu0 0.0
    %1039 = vmatpush1.msra.mxu0 0.0
    %1040 = vmatprep.subr.mxu0 0.0
    %1041 = vmatpush1.msra.mxu0 0.0
    %1042 = vmatprep.subr.mxu0 0.0
    %1043 = vmatpush1.msra.mxu0 0.0
    %1044 = vmatprep.subr.mxu0 0.0
    %1045 = vmatpush1.msra.mxu0 0.0
    %1046 = vmatprep.subr.mxu0 0.0
    %1047 = vmatpush1.msra.mxu0 0.0
    %1048 = vmatprep.subr.mxu0 0.0
    %1049 = vmatpush1.msra.mxu0 0.0
    %1050 = vmatprep.subr.mxu0 0.0
    %1051 = vmatpush1.msra.mxu0 0.0
    %1052 = vmatprep.subr.mxu0 0.0
    %1053 = vmatpush1.msra.mxu0 0.0
    %1054 = vmatprep.subr.mxu0 0.0
    %1055 = vmatpush1.msra.mxu0 0.0
    %1056 = vmatprep.subr.mxu0 0.0
    %1057 = vmatpush1.msra.mxu0 0.0
    %1058 = vmatprep.mubr.f32.mxu0 0.0
    %1059 = vmatmul.mubr.f32.gmra.mrb[0].mxu0 %v992
    %v1060 = vpop.f32.mrb[0].mxu0
    %v1061 = vadd.f32 0.0, %v1060
    %v1062 = vpop.f32.mrb[0].mxu0
    %1063 = vdwg.mxu0
    %v1064 = vsel %vm61, %v974, 0
    %1066 = vmatprep.subr.mxu0 0.0
    %1067 = vmatpush1.msra.mxu0 %v982
    %1068 = vmatprep.subr.mxu0 0.0
    %1069 = vmatpush1.msra.mxu0 %v983
    %1070 = vmatprep.subr.mxu0 0.0
    %1071 = vmatpush1.msra.mxu0 %v984
    %1072 = vmatprep.subr.mxu0 0.0
    %1073 = vmatpush1.msra.mxu0 %v985
    %1074 = vmatprep.subr.mxu0 0.0
    %1075 = vmatpush1.msra.mxu0 0.0
    %1076 = vmatprep.subr.mxu0 0.0
    %1077 = vmatpush1.msra.mxu0 0.0
    %1078 = vmatprep.subr.mxu0 0.0
    %1079 = vmatpush1.msra.mxu0 0.0
    %1080 = vmatprep.subr.mxu0 0.0
    %1081 = vmatpush1.msra.mxu0 0.0
    %1082 = vmatprep.subr.mxu0 0.0
    %1083 = vmatpush1.msra.mxu0 0.0
    %1084 = vmatprep.subr.mxu0 0.0
    %1085 = vmatpush1.msra.mxu0 0.0
    %1086 = vmatprep.subr.mxu0 0.0
    %1087 = vmatpush1.msra.mxu0 0.0
    %1088 = vmatprep.subr.mxu0 0.0
    %1089 = vmatpush1.msra.mxu0 0.0
    %1090 = vmatprep.subr.mxu0 0.0
    %1091 = vmatpush1.msra.mxu0 0.0
    %1092 = vmatprep.subr.mxu0 0.0
    %1093 = vmatpush1.msra.mxu0 0.0
    %1094 = vmatprep.subr.mxu0 0.0
    %1095 = vmatpush1.msra.mxu0 0.0
    %1096 = vmatprep.subr.mxu0 0.0
    %1097 = vmatpush1.msra.mxu0 0.0
    %1098 = vmatprep.subr.mxu0 0.0
    %1099 = vmatpush1.msra.mxu0 0.0
    %1100 = vmatprep.subr.mxu0 0.0
    %1101 = vmatpush1.msra.mxu0 0.0
    %1102 = vmatprep.subr.mxu0 0.0
    %1103 = vmatpush1.msra.mxu0 0.0
    %1104 = vmatprep.subr.mxu0 0.0
    %1105 = vmatpush1.msra.mxu0 0.0
    %1106 = vmatprep.subr.mxu0 0.0
    %1107 = vmatpush1.msra.mxu0 0.0
    %1108 = vmatprep.subr.mxu0 0.0
    %1109 = vmatpush1.msra.mxu0 0.0
    %1110 = vmatprep.subr.mxu0 0.0
    %1111 = vmatpush1.msra.mxu0 0.0
    %1112 = vmatprep.subr.mxu0 0.0
    %1113 = vmatpush1.msra.mxu0 0.0
    %1114 = vmatprep.subr.mxu0 0.0
    %1115 = vmatpush1.msra.mxu0 0.0
    %1116 = vmatprep.subr.mxu0 0.0
    %1117 = vmatpush1.msra.mxu0 0.0
    %1118 = vmatprep.subr.mxu0 0.0
    %1119 = vmatpush1.msra.mxu0 0.0
    %1120 = vmatprep.subr.mxu0 0.0
    %1121 = vmatpush1.msra.mxu0 0.0
    %1122 = vmatprep.subr.mxu0 0.0
    %1123 = vmatpush1.msra.mxu0 0.0
    %1124 = vmatprep.subr.mxu0 0.0
    %1125 = vmatpush1.msra.mxu0 0.0
    %1126 = vmatprep.subr.mxu0 0.0
    %1127 = vmatpush1.msra.mxu0 0.0
    %1128 = vmatprep.subr.mxu0 0.0
    %1129 = vmatpush1.msra.mxu0 0.0
    %1130 = vmatprep.mubr.f32.mxu0 0.0
    %1131 = vmatmul.mubr.f32.gmra.mrb[0].mxu0 %v1064
    %v1132 = vpop.f32.mrb[0].mxu0
    %v1133 = vadd.f32 %v1061, %v1132
    %v1134 = vpop.f32.mrb[0].mxu0
    %1135 = vdwg.mxu0
    %v1136 = vld [vmem:[%s6] sm:$0x1]
    %v1138 = vlaneseq
    %v1139 = vshrl.u32 %v1138, 7
    %v1140 = vsub.s32 0, %v1139
    %v1141 = vrot.slane %v1136, %v1140
    %v1143 = vadd.f32 %v1133, %v1141
    %v1144 = vld [vmem:[#allocation5] sm:$0xff]
    %v1145 = vxor.u32 %v1143, 2147483648
    %v1146 = vmul.f32 %v1145, 1.442695
    %v1147 = vpow.pop %v1146
    %v1148 = vadd.f32 %v1147, 1.0
    %v1149 = vrcp.pop %v1148
    %v1150 = vmul.f32 1.0, %v1149
    %v1151 = vtanh.pop %v1143
    %1153 = vrot.lane.b32.xlu0 %v1144, 32
    %v1154 = vpop.permute.xlu0 %1153
    %v1156 = vmul.f32 %v1150, %v1154
    %1158 = vrot.lane.b32.xlu0 %v1151, 64
    %v1159 = vpop.permute.xlu0 %1158
    %v1161 = vmul.f32 %v1150, %v1159
    %1163 = vrot.lane.b32.xlu0 %v1161, 32
    %v1164 = vpop.permute.xlu0 %1163
    %v1166 = vadd.f32 %v1156, %v1164
    %v1167 = vtanh.pop %v1166
    %1169 = vrot.lane.b32.xlu0 %v1167, 64
    %v1170 = vpop.permute.xlu0 %1169
    %v1172 = vmul.f32 %v1150, %v1170
    %1174 = vrot.lane.b32.xlu0 %v1172, 32
    %v1175 = vpop.permute.xlu0 %1174
    %1177 = vst.msk [vmem:[#allocation4] sm:$0xff] %vm61, %v1175
    %1179 = vrot.lane.b32.xlu0 %v1166, 96
    %v1180 = vpop.permute.xlu0 %1179
    %1182 = vst.msk [vmem:[#allocation5] sm:$0xff] %vm61, %v1180
    %1183 = vst.msk [vmem:[#allocation7 + $0x10] sm:$0xff] %vm61, %v1175
    %v1184 = vld [vmem:[#allocation6 + $0x18] sm:$0xff]
    %v1185 = vld [vmem:[#allocation2] sm:$0xff]
    %v1186 = vld [vmem:[%s2] sm:$0xff]
    %v1187 = vld [vmem:[%s2 + $0x8] sm:$0xff]
    %v1188 = vld [vmem:[%s2 + $0x10] sm:$0xff]
    %v1189 = vld [vmem:[%s2 + $0x18] sm:$0xff]
    %v1191 = vsel %vm61, %v1185, 0
    %1193 = vmatprep.subr.mxu0 0.0
    %1194 = vmatpush1.msra.mxu0 %v1186
    %1195 = vmatprep.subr.mxu0 0.0
    %1196 = vmatpush1.msra.mxu0 %v1187
    %1197 = vmatprep.subr.mxu0 0.0
    %1198 = vmatpush1.msra.mxu0 %v1188
    %1199 = vmatprep.subr.mxu0 0.0
    %1200 = vmatpush1.msra.mxu0 %v1189
    %1201 = vmatprep.subr.mxu0 0.0
    %1202 = vmatpush1.msra.mxu0 0.0
    %1203 = vmatprep.subr.mxu0 0.0
    %1204 = vmatpush1.msra.mxu0 0.0
    %1205 = vmatprep.subr.mxu0 0.0
    %1206 = vmatpush1.msra.mxu0 0.0
    %1207 = vmatprep.subr.mxu0 0.0
    %1208 = vmatpush1.msra.mxu0 0.0
    %1209 = vmatprep.subr.mxu0 0.0
    %1210 = vmatpush1.msra.mxu0 0.0
    %1211 = vmatprep.subr.mxu0 0.0
    %1212 = vmatpush1.msra.mxu0 0.0
    %1213 = vmatprep.subr.mxu0 0.0
    %1214 = vmatpush1.msra.mxu0 0.0
    %1215 = vmatprep.subr.mxu0 0.0
    %1216 = vmatpush1.msra.mxu0 0.0
    %1217 = vmatprep.subr.mxu0 0.0
    %1218 = vmatpush1.msra.mxu0 0.0
    %1219 = vmatprep.subr.mxu0 0.0
    %1220 = vmatpush1.msra.mxu0 0.0
    %1221 = vmatprep.subr.mxu0 0.0
    %1222 = vmatpush1.msra.mxu0 0.0
    %1223 = vmatprep.subr.mxu0 0.0
    %1224 = vmatpush1.msra.mxu0 0.0
    %1225 = vmatprep.subr.mxu0 0.0
    %1226 = vmatpush1.msra.mxu0 0.0
    %1227 = vmatprep.subr.mxu0 0.0
    %1228 = vmatpush1.msra.mxu0 0.0
    %1229 = vmatprep.subr.mxu0 0.0
    %1230 = vmatpush1.msra.mxu0 0.0
    %1231 = vmatprep.subr.mxu0 0.0
    %1232 = vmatpush1.msra.mxu0 0.0
    %1233 = vmatprep.subr.mxu0 0.0
    %1234 = vmatpush1.msra.mxu0 0.0
    %1235 = vmatprep.subr.mxu0 0.0
    %1236 = vmatpush1.msra.mxu0 0.0
    %1237 = vmatprep.subr.mxu0 0.0
    %1238 = vmatpush1.msra.mxu0 0.0
    %1239 = vmatprep.subr.mxu0 0.0
    %1240 = vmatpush1.msra.mxu0 0.0
    %1241 = vmatprep.subr.mxu0 0.0
    %1242 = vmatpush1.msra.mxu0 0.0
    %1243 = vmatprep.subr.mxu0 0.0
    %1244 = vmatpush1.msra.mxu0 0.0
    %1245 = vmatprep.subr.mxu0 0.0
    %1246 = vmatpush1.msra.mxu0 0.0
    %1247 = vmatprep.subr.mxu0 0.0
    %1248 = vmatpush1.msra.mxu0 0.0
    %1249 = vmatprep.subr.mxu0 0.0
    %1250 = vmatpush1.msra.mxu0 0.0
    %1251 = vmatprep.subr.mxu0 0.0
    %1252 = vmatpush1.msra.mxu0 0.0
    %1253 = vmatprep.subr.mxu0 0.0
    %1254 = vmatpush1.msra.mxu0 0.0
    %1255 = vmatprep.subr.mxu0 0.0
    %1256 = vmatpush1.msra.mxu0 0.0
    %1257 = vmatprep.mubr.f32.mxu0 0.0
    %1258 = vmatmul.mubr.f32.gmra.mrb[0].mxu0 %v1191
    %v1259 = vpop.f32.mrb[0].mxu0
    %v1260 = vadd.f32 0.0, %v1259
    %v1261 = vpop.f32.mrb[0].mxu0
    %1262 = vdwg.mxu0
    %v1263 = vadd.f32 %v1184, %v1260
    %v1264 = vld [vmem:[#allocation3] sm:$0xff]
    %v1265 = vxor.u32 %v1263, 2147483648
    %v1266 = vmul.f32 %v1265, 1.442695
    %v1267 = vpow.pop %v1266
    %v1268 = vadd.f32 %v1267, 1.0
    %v1269 = vrcp.pop %v1268
    %v1270 = vmul.f32 1.0, %v1269
    %v1271 = vtanh.pop %v1263
    %1273 = vrot.lane.b32.xlu0 %v1264, 32
    %v1274 = vpop.permute.xlu0 %1273
    %v1276 = vmul.f32 %v1270, %v1274
    %1278 = vrot.lane.b32.xlu0 %v1271, 64
    %v1279 = vpop.permute.xlu0 %1278
    %v1281 = vmul.f32 %v1270, %v1279
    %1283 = vrot.lane.b32.xlu0 %v1281, 32
    %v1284 = vpop.permute.xlu0 %1283
    %v1286 = vadd.f32 %v1276, %v1284
    %v1287 = vtanh.pop %v1286
    %1289 = vrot.lane.b32.xlu0 %v1287, 64
    %v1290 = vpop.permute.xlu0 %1289
    %v1292 = vmul.f32 %v1270, %v1290
    %1294 = vrot.lane.b32.xlu0 %v1292, 32
    %v1295 = vpop.permute.xlu0 %1294
    %1297 = vst.msk [vmem:[#allocation2] sm:$0xff] %vm61, %v1295
    %1299 = vrot.lane.b32.xlu0 %v1286, 96
    %v1300 = vpop.permute.xlu0 %1299
    %1302 = vst.msk [vmem:[#allocation3] sm:$0xff] %vm61, %v1300
    %v1303 = vld [vmem:[%s4] sm:$0xff]
    %v1304 = vld [vmem:[%s4 + $0x8] sm:$0xff]
    %v1305 = vld [vmem:[%s4 + $0x10] sm:$0xff]
    %v1306 = vld [vmem:[%s4 + $0x18] sm:$0xff]
    %v1307 = vld [vmem:[#allocation4] sm:$0xff]
    %v1308 = vld [vmem:[%s5] sm:$0xff]
    %v1309 = vld [vmem:[%s5 + $0x8] sm:$0xff]
    %v1310 = vld [vmem:[%s5 + $0x10] sm:$0xff]
    %v1311 = vld [vmem:[%s5 + $0x18] sm:$0xff]
    %v1313 = vsel %vm61, %v1307, 0
    %1315 = vmatprep.subr.mxu0 0.0
    %1316 = vmatpush1.msra.mxu0 %v1308
    %1317 = vmatprep.subr.mxu0 0.0
    %1318 = vmatpush1.msra.mxu0 %v1309
    %1319 = vmatprep.subr.mxu0 0.0
    %1320 = vmatpush1.msra.mxu0 %v1310
    %1321 = vmatprep.subr.mxu0 0.0
    %1322 = vmatpush1.msra.mxu0 %v1311
    %1323 = vmatprep.subr.mxu0 0.0
    %1324 = vmatpush1.msra.mxu0 0.0
    %1325 = vmatprep.subr.mxu0 0.0
    %1326 = vmatpush1.msra.mxu0 0.0
    %1327 = vmatprep.subr.mxu0 0.0
    %1328 = vmatpush1.msra.mxu0 0.0
    %1329 = vmatprep.subr.mxu0 0.0
    %1330 = vmatpush1.msra.mxu0 0.0
    %1331 = vmatprep.subr.mxu0 0.0
    %1332 = vmatpush1.msra.mxu0 0.0
    %1333 = vmatprep.subr.mxu0 0.0
    %1334 = vmatpush1.msra.mxu0 0.0
    %1335 = vmatprep.subr.mxu0 0.0
    %1336 = vmatpush1.msra.mxu0 0.0
    %1337 = vmatprep.subr.mxu0 0.0
    %1338 = vmatpush1.msra.mxu0 0.0
    %1339 = vmatprep.subr.mxu0 0.0
    %1340 = vmatpush1.msra.mxu0 0.0
    %1341 = vmatprep.subr.mxu0 0.0
    %1342 = vmatpush1.msra.mxu0 0.0
    %1343 = vmatprep.subr.mxu0 0.0
    %1344 = vmatpush1.msra.mxu0 0.0
    %1345 = vmatprep.subr.mxu0 0.0
    %1346 = vmatpush1.msra.mxu0 0.0
    %1347 = vmatprep.subr.mxu0 0.0
    %1348 = vmatpush1.msra.mxu0 0.0
    %1349 = vmatprep.subr.mxu0 0.0
    %1350 = vmatpush1.msra.mxu0 0.0
    %1351 = vmatprep.subr.mxu0 0.0
    %1352 = vmatpush1.msra.mxu0 0.0
    %1353 = vmatprep.subr.mxu0 0.0
    %1354 = vmatpush1.msra.mxu0 0.0
    %1355 = vmatprep.subr.mxu0 0.0
    %1356 = vmatpush1.msra.mxu0 0.0
    %1357 = vmatprep.subr.mxu0 0.0
    %1358 = vmatpush1.msra.mxu0 0.0
    %1359 = vmatprep.subr.mxu0 0.0
    %1360 = vmatpush1.msra.mxu0 0.0
    %1361 = vmatprep.subr.mxu0 0.0
    %1362 = vmatpush1.msra.mxu0 0.0
    %1363 = vmatprep.subr.mxu0 0.0
    %1364 = vmatpush1.msra.mxu0 0.0
    %1365 = vmatprep.subr.mxu0 0.0
    %1366 = vmatpush1.msra.mxu0 0.0
    %1367 = vmatprep.subr.mxu0 0.0
    %1368 = vmatpush1.msra.mxu0 0.0
    %1369 = vmatprep.subr.mxu0 0.0
    %1370 = vmatpush1.msra.mxu0 0.0
    %1371 = vmatprep.subr.mxu0 0.0
    %1372 = vmatpush1.msra.mxu0 0.0
    %1373 = vmatprep.subr.mxu0 0.0
    %1374 = vmatpush1.msra.mxu0 0.0
    %1375 = vmatprep.subr.mxu0 0.0
    %1376 = vmatpush1.msra.mxu0 0.0
    %1377 = vmatprep.subr.mxu0 0.0
    %1378 = vmatpush1.msra.mxu0 0.0
    %1379 = vmatprep.mubr.f32.mxu0 0.0
    %1380 = vmatmul.mubr.f32.gmra.mrb[0].mxu0 %v1313
    %v1381 = vpop.f32.mrb[0].mxu0
    %v1382 = vadd.f32 0.0, %v1381
    %v1383 = vpop.f32.mrb[0].mxu0
    %1384 = vdwg.mxu0
    %v1385 = vsel %vm61, %v1295, 0
    %1387 = vmatprep.subr.mxu0 0.0
    %1388 = vmatpush1.msra.mxu0 %v1303
    %1389 = vmatprep.subr.mxu0 0.0
    %1390 = vmatpush1.msra.mxu0 %v1304
    %1391 = vmatprep.subr.mxu0 0.0
    %1392 = vmatpush1.msra.mxu0 %v1305
    %1393 = vmatprep.subr.mxu0 0.0
    %1394 = vmatpush1.msra.mxu0 %v1306
    %1395 = vmatprep.subr.mxu0 0.0
    %1396 = vmatpush1.msra.mxu0 0.0
    %1397 = vmatprep.subr.mxu0 0.0
    %1398 = vmatpush1.msra.mxu0 0.0
    %1399 = vmatprep.subr.mxu0 0.0
    %1400 = vmatpush1.msra.mxu0 0.0
    %1401 = vmatprep.subr.mxu0 0.0
    %1402 = vmatpush1.msra.mxu0 0.0
    %1403 = vmatprep.subr.mxu0 0.0
    %1404 = vmatpush1.msra.mxu0 0.0
    %1405 = vmatprep.subr.mxu0 0.0
    %1406 = vmatpush1.msra.mxu0 0.0
    %1407 = vmatprep.subr.mxu0 0.0
    %1408 = vmatpush1.msra.mxu0 0.0
    %1409 = vmatprep.subr.mxu0 0.0
    %1410 = vmatpush1.msra.mxu0 0.0
    %1411 = vmatprep.subr.mxu0 0.0
    %1412 = vmatpush1.msra.mxu0 0.0
    %1413 = vmatprep.subr.mxu0 0.0
    %1414 = vmatpush1.msra.mxu0 0.0
    %1415 = vmatprep.subr.mxu0 0.0
    %1416 = vmatpush1.msra.mxu0 0.0
    %1417 = vmatprep.subr.mxu0 0.0
    %1418 = vmatpush1.msra.mxu0 0.0
    %1419 = vmatprep.subr.mxu0 0.0
    %1420 = vmatpush1.msra.mxu0 0.0
    %1421 = vmatprep.subr.mxu0 0.0
    %1422 = vmatpush1.msra.mxu0 0.0
    %1423 = vmatprep.subr.mxu0 0.0
    %1424 = vmatpush1.msra.mxu0 0.0
    %1425 = vmatprep.subr.mxu0 0.0
    %1426 = vmatpush1.msra.mxu0 0.0
    %1427 = vmatprep.subr.mxu0 0.0
    %1428 = vmatpush1.msra.mxu0 0.0
    %1429 = vmatprep.subr.mxu0 0.0
    %1430 = vmatpush1.msra.mxu0 0.0
    %1431 = vmatprep.subr.mxu0 0.0
    %1432 = vmatpush1.msra.mxu0 0.0
    %1433 = vmatprep.subr.mxu0 0.0
    %1434 = vmatpush1.msra.mxu0 0.0
    %1435 = vmatprep.subr.mxu0 0.0
    %1436 = vmatpush1.msra.mxu0 0.0
    %1437 = vmatprep.subr.mxu0 0.0
    %1438 = vmatpush1.msra.mxu0 0.0
    %1439 = vmatprep.subr.mxu0 0.0
    %1440 = vmatpush1.msra.mxu0 0.0
    %1441 = vmatprep.subr.mxu0 0.0
    %1442 = vmatpush1.msra.mxu0 0.0
    %1443 = vmatprep.subr.mxu0 0.0
    %1444 = vmatpush1.msra.mxu0 0.0
    %1445 = vmatprep.subr.mxu0 0.0
    %1446 = vmatpush1.msra.mxu0 0.0
    %1447 = vmatprep.subr.mxu0 0.0
    %1448 = vmatpush1.msra.mxu0 0.0
    %1449 = vmatprep.subr.mxu0 0.0
    %1450 = vmatpush1.msra.mxu0 0.0
    %1451 = vmatprep.mubr.f32.mxu0 0.0
    %1452 = vmatmul.mubr.f32.gmra.mrb[0].mxu0 %v1385
    %v1453 = vpop.f32.mrb[0].mxu0
    %v1454 = vadd.f32 %v1382, %v1453
    %v1455 = vpop.f32.mrb[0].mxu0
    %1456 = vdwg.mxu0
    %v1457 = vld [vmem:[%s6] sm:$0x1]
    %v1459 = vlaneseq
    %v1460 = vshrl.u32 %v1459, 7
    %v1461 = vsub.s32 0, %v1460
    %v1462 = vrot.slane %v1457, %v1461
    %v1464 = vadd.f32 %v1454, %v1462
    %v1465 = vld [vmem:[#allocation5] sm:$0xff]
    %v1466 = vxor.u32 %v1464, 2147483648
    %v1467 = vmul.f32 %v1466, 1.442695
    %v1468 = vpow.pop %v1467
    %v1469 = vadd.f32 %v1468, 1.0
    %v1470 = vrcp.pop %v1469
    %v1471 = vmul.f32 1.0, %v1470
    %v1472 = vtanh.pop %v1464
    %1474 = vrot.lane.b32.xlu0 %v1465, 32
    %v1475 = vpop.permute.xlu0 %1474
    %v1477 = vmul.f32 %v1471, %v1475
    %1479 = vrot.lane.b32.xlu0 %v1472, 64
    %v1480 = vpop.permute.xlu0 %1479
    %v1482 = vmul.f32 %v1471, %v1480
    %1484 = vrot.lane.b32.xlu0 %v1482, 32
    %v1485 = vpop.permute.xlu0 %1484
    %v1487 = vadd.f32 %v1477, %v1485
    %v1488 = vtanh.pop %v1487
    %1490 = vrot.lane.b32.xlu0 %v1488, 64
    %v1491 = vpop.permute.xlu0 %1490
    %v1493 = vmul.f32 %v1471, %v1491
    %1495 = vrot.lane.b32.xlu0 %v1493, 32
    %v1496 = vpop.permute.xlu0 %1495
    %1498 = vst.msk [vmem:[#allocation4] sm:$0xff] %vm61, %v1496
    %1500 = vrot.lane.b32.xlu0 %v1487, 96
    %v1501 = vpop.permute.xlu0 %1500
    %1503 = vst.msk [vmem:[#allocation5] sm:$0xff] %vm61, %v1501
    %1504 = vst.msk [vmem:[#allocation7 + $0x18] sm:$0xff] %vm61, %v1496
    %v1505 = vld [vmem:[#allocation6 + $0x20] sm:$0xff]
    %v1506 = vld [vmem:[#allocation2] sm:$0xff]
    %v1507 = vld [vmem:[%s2] sm:$0xff]
    %v1508 = vld [vmem:[%s2 + $0x8] sm:$0xff]
    %v1509 = vld [vmem:[%s2 + $0x10] sm:$0xff]
    %v1510 = vld [vmem:[%s2 + $0x18] sm:$0xff]
    %v1512 = vsel %vm61, %v1506, 0
    %1514 = vmatprep.subr.mxu0 0.0
    %1515 = vmatpush1.msra.mxu0 %v1507
    %1516 = vmatprep.subr.mxu0 0.0
    %1517 = vmatpush1.msra.mxu0 %v1508
    %1518 = vmatprep.subr.mxu0 0.0
    %1519 = vmatpush1.msra.mxu0 %v1509
    %1520 = vmatprep.subr.mxu0 0.0
    %1521 = vmatpush1.msra.mxu0 %v1510
    %1522 = vmatprep.subr.mxu0 0.0
    %1523 = vmatpush1.msra.mxu0 0.0
    %1524 = vmatprep.subr.mxu0 0.0
    %1525 = vmatpush1.msra.mxu0 0.0
    %1526 = vmatprep.subr.mxu0 0.0
    %1527 = vmatpush1.msra.mxu0 0.0
    %1528 = vmatprep.subr.mxu0 0.0
    %1529 = vmatpush1.msra.mxu0 0.0
    %1530 = vmatprep.subr.mxu0 0.0
    %1531 = vmatpush1.msra.mxu0 0.0
    %1532 = vmatprep.subr.mxu0 0.0
    %1533 = vmatpush1.msra.mxu0 0.0
    %1534 = vmatprep.subr.mxu0 0.0
    %1535 = vmatpush1.msra.mxu0 0.0
    %1536 = vmatprep.subr.mxu0 0.0
    %1537 = vmatpush1.msra.mxu0 0.0
    %1538 = vmatprep.subr.mxu0 0.0
    %1539 = vmatpush1.msra.mxu0 0.0
    %1540 = vmatprep.subr.mxu0 0.0
    %1541 = vmatpush1.msra.mxu0 0.0
    %1542 = vmatprep.subr.mxu0 0.0
    %1543 = vmatpush1.msra.mxu0 0.0
    %1544 = vmatprep.subr.mxu0 0.0
    %1545 = vmatpush1.msra.mxu0 0.0
    %1546 = vmatprep.subr.mxu0 0.0
    %1547 = vmatpush1.msra.mxu0 0.0
    %1548 = vmatprep.subr.mxu0 0.0
    %1549 = vmatpush1.msra.mxu0 0.0
    %1550 = vmatprep.subr.mxu0 0.0
    %1551 = vmatpush1.msra.mxu0 0.0
    %1552 = vmatprep.subr.mxu0 0.0
    %1553 = vmatpush1.msra.mxu0 0.0
    %1554 = vmatprep.subr.mxu0 0.0
    %1555 = vmatpush1.msra.mxu0 0.0
    %1556 = vmatprep.subr.mxu0 0.0
    %1557 = vmatpush1.msra.mxu0 0.0
    %1558 = vmatprep.subr.mxu0 0.0
    %1559 = vmatpush1.msra.mxu0 0.0
    %1560 = vmatprep.subr.mxu0 0.0
    %1561 = vmatpush1.msra.mxu0 0.0
    %1562 = vmatprep.subr.mxu0 0.0
    %1563 = vmatpush1.msra.mxu0 0.0
    %1564 = vmatprep.subr.mxu0 0.0
    %1565 = vmatpush1.msra.mxu0 0.0
    %1566 = vmatprep.subr.mxu0 0.0
    %1567 = vmatpush1.msra.mxu0 0.0
    %1568 = vmatprep.subr.mxu0 0.0
    %1569 = vmatpush1.msra.mxu0 0.0
    %1570 = vmatprep.subr.mxu0 0.0
    %1571 = vmatpush1.msra.mxu0 0.0
    %1572 = vmatprep.subr.mxu0 0.0
    %1573 = vmatpush1.msra.mxu0 0.0
    %1574 = vmatprep.subr.mxu0 0.0
    %1575 = vmatpush1.msra.mxu0 0.0
    %1576 = vmatprep.subr.mxu0 0.0
    %1577 = vmatpush1.msra.mxu0 0.0
    %1578 = vmatprep.mubr.f32.mxu0 0.0
    %1579 = vmatmul.mubr.f32.gmra.mrb[0].mxu0 %v1512
    %v1580 = vpop.f32.mrb[0].mxu0
    %v1581 = vadd.f32 0.0, %v1580
    %v1582 = vpop.f32.mrb[0].mxu0
    %1583 = vdwg.mxu0
    %v1584 = vadd.f32 %v1505, %v1581
    %v1585 = vld [vmem:[#allocation3] sm:$0xff]
    %v1586 = vxor.u32 %v1584, 2147483648
    %v1587 = vmul.f32 %v1586, 1.442695
    %v1588 = vpow.pop %v1587
    %v1589 = vadd.f32 %v1588, 1.0
    %v1590 = vrcp.pop %v1589
    %v1591 = vmul.f32 1.0, %v1590
    %v1592 = vtanh.pop %v1584
    %1594 = vrot.lane.b32.xlu0 %v1585, 32
    %v1595 = vpop.permute.xlu0 %1594
    %v1597 = vmul.f32 %v1591, %v1595
    %1599 = vrot.lane.b32.xlu0 %v1592, 64
    %v1600 = vpop.permute.xlu0 %1599
    %v1602 = vmul.f32 %v1591, %v1600
    %1604 = vrot.lane.b32.xlu0 %v1602, 32
    %v1605 = vpop.permute.xlu0 %1604
    %v1607 = vadd.f32 %v1597, %v1605
    %v1608 = vtanh.pop %v1607
    %1610 = vrot.lane.b32.xlu0 %v1608, 64
    %v1611 = vpop.permute.xlu0 %1610
    %v1613 = vmul.f32 %v1591, %v1611
    %1615 = vrot.lane.b32.xlu0 %v1613, 32
    %v1616 = vpop.permute.xlu0 %1615
    %1618 = vst.msk [vmem:[#allocation2] sm:$0xff] %vm61, %v1616
    %1620 = vrot.lane.b32.xlu0 %v1607, 96
    %v1621 = vpop.permute.xlu0 %1620
    %1623 = vst.msk [vmem:[#allocation3] sm:$0xff] %vm61, %v1621
    %v1624 = vld [vmem:[%s4] sm:$0xff]
    %v1625 = vld [vmem:[%s4 + $0x8] sm:$0xff]
    %v1626 = vld [vmem:[%s4 + $0x10] sm:$0xff]
    %v1627 = vld [vmem:[%s4 + $0x18] sm:$0xff]
    %v1628 = vld [vmem:[#allocation4] sm:$0xff]
    %v1629 = vld [vmem:[%s5] sm:$0xff]
    %v1630 = vld [vmem:[%s5 + $0x8] sm:$0xff]
    %v1631 = vld [vmem:[%s5 + $0x10] sm:$0xff]
    %v1632 = vld [vmem:[%s5 + $0x18] sm:$0xff]
    %v1634 = vsel %vm61, %v1628, 0
    %1636 = vmatprep.subr.mxu0 0.0
    %1637 = vmatpush1.msra.mxu0 %v1629
    %1638 = vmatprep.subr.mxu0 0.0
    %1639 = vmatpush1.msra.mxu0 %v1630
    %1640 = vmatprep.subr.mxu0 0.0
    %1641 = vmatpush1.msra.mxu0 %v1631
    %1642 = vmatprep.subr.mxu0 0.0
    %1643 = vmatpush1.msra.mxu0 %v1632
    %1644 = vmatprep.subr.mxu0 0.0
    %1645 = vmatpush1.msra.mxu0 0.0
    %1646 = vmatprep.subr.mxu0 0.0
    %1647 = vmatpush1.msra.mxu0 0.0
    %1648 = vmatprep.subr.mxu0 0.0
    %1649 = vmatpush1.msra.mxu0 0.0
    %1650 = vmatprep.subr.mxu0 0.0
    %1651 = vmatpush1.msra.mxu0 0.0
    %1652 = vmatprep.subr.mxu0 0.0
    %1653 = vmatpush1.msra.mxu0 0.0
    %1654 = vmatprep.subr.mxu0 0.0
    %1655 = vmatpush1.msra.mxu0 0.0
    %1656 = vmatprep.subr.mxu0 0.0
    %1657 = vmatpush1.msra.mxu0 0.0
    %1658 = vmatprep.subr.mxu0 0.0
    %1659 = vmatpush1.msra.mxu0 0.0
    %1660 = vmatprep.subr.mxu0 0.0
    %1661 = vmatpush1.msra.mxu0 0.0
    %1662 = vmatprep.subr.mxu0 0.0
    %1663 = vmatpush1.msra.mxu0 0.0
    %1664 = vmatprep.subr.mxu0 0.0
    %1665 = vmatpush1.msra.mxu0 0.0
    %1666 = vmatprep.subr.mxu0 0.0
    %1667 = vmatpush1.msra.mxu0 0.0
    %1668 = vmatprep.subr.mxu0 0.0
    %1669 = vmatpush1.msra.mxu0 0.0
    %1670 = vmatprep.subr.mxu0 0.0
    %1671 = vmatpush1.msra.mxu0 0.0
    %1672 = vmatprep.subr.mxu0 0.0
    %1673 = vmatpush1.msra.mxu0 0.0
    %1674 = vmatprep.subr.mxu0 0.0
    %1675 = vmatpush1.msra.mxu0 0.0
    %1676 = vmatprep.subr.mxu0 0.0
    %1677 = vmatpush1.msra.mxu0 0.0
    %1678 = vmatprep.subr.mxu0 0.0
    %1679 = vmatpush1.msra.mxu0 0.0
    %1680 = vmatprep.subr.mxu0 0.0
    %1681 = vmatpush1.msra.mxu0 0.0
    %1682 = vmatprep.subr.mxu0 0.0
    %1683 = vmatpush1.msra.mxu0 0.0
    %1684 = vmatprep.subr.mxu0 0.0
    %1685 = vmatpush1.msra.mxu0 0.0
    %1686 = vmatprep.subr.mxu0 0.0
    %1687 = vmatpush1.msra.mxu0 0.0
    %1688 = vmatprep.subr.mxu0 0.0
    %1689 = vmatpush1.msra.mxu0 0.0
    %1690 = vmatprep.subr.mxu0 0.0
    %1691 = vmatpush1.msra.mxu0 0.0
    %1692 = vmatprep.subr.mxu0 0.0
    %1693 = vmatpush1.msra.mxu0 0.0
    %1694 = vmatprep.subr.mxu0 0.0
    %1695 = vmatpush1.msra.mxu0 0.0
    %1696 = vmatprep.subr.mxu0 0.0
    %1697 = vmatpush1.msra.mxu0 0.0
    %1698 = vmatprep.subr.mxu0 0.0
    %1699 = vmatpush1.msra.mxu0 0.0
    %1700 = vmatprep.mubr.f32.mxu0 0.0
    %1701 = vmatmul.mubr.f32.gmra.mrb[0].mxu0 %v1634
    %v1702 = vpop.f32.mrb[0].mxu0
    %v1703 = vadd.f32 0.0, %v1702
    %v1704 = vpop.f32.mrb[0].mxu0
    %1705 = vdwg.mxu0
    %v1706 = vsel %vm61, %v1616, 0
    %1708 = vmatprep.subr.mxu0 0.0
    %1709 = vmatpush1.msra.mxu0 %v1624
    %1710 = vmatprep.subr.mxu0 0.0
    %1711 = vmatpush1.msra.mxu0 %v1625
    %1712 = vmatprep.subr.mxu0 0.0
    %1713 = vmatpush1.msra.mxu0 %v1626
    %1714 = vmatprep.subr.mxu0 0.0
    %1715 = vmatpush1.msra.mxu0 %v1627
    %1716 = vmatprep.subr.mxu0 0.0
    %1717 = vmatpush1.msra.mxu0 0.0
    %1718 = vmatprep.subr.mxu0 0.0
    %1719 = vmatpush1.msra.mxu0 0.0
    %1720 = vmatprep.subr.mxu0 0.0
    %1721 = vmatpush1.msra.mxu0 0.0
    %1722 = vmatprep.subr.mxu0 0.0
    %1723 = vmatpush1.msra.mxu0 0.0
    %1724 = vmatprep.subr.mxu0 0.0
    %1725 = vmatpush1.msra.mxu0 0.0
    %1726 = vmatprep.subr.mxu0 0.0
    %1727 = vmatpush1.msra.mxu0 0.0
    %1728 = vmatprep.subr.mxu0 0.0
    %1729 = vmatpush1.msra.mxu0 0.0
    %1730 = vmatprep.subr.mxu0 0.0
    %1731 = vmatpush1.msra.mxu0 0.0
    %1732 = vmatprep.subr.mxu0 0.0
    %1733 = vmatpush1.msra.mxu0 0.0
    %1734 = vmatprep.subr.mxu0 0.0
    %1735 = vmatpush1.msra.mxu0 0.0
    %1736 = vmatprep.subr.mxu0 0.0
    %1737 = vmatpush1.msra.mxu0 0.0
    %1738 = vmatprep.subr.mxu0 0.0
    %1739 = vmatpush1.msra.mxu0 0.0
    %1740 = vmatprep.subr.mxu0 0.0
    %1741 = vmatpush1.msra.mxu0 0.0
    %1742 = vmatprep.subr.mxu0 0.0
    %1743 = vmatpush1.msra.mxu0 0.0
    %1744 = vmatprep.subr.mxu0 0.0
    %1745 = vmatpush1.msra.mxu0 0.0
    %1746 = vmatprep.subr.mxu0 0.0
    %1747 = vmatpush1.msra.mxu0 0.0
    %1748 = vmatprep.subr.mxu0 0.0
    %1749 = vmatpush1.msra.mxu0 0.0
    %1750 = vmatprep.subr.mxu0 0.0
    %1751 = vmatpush1.msra.mxu0 0.0
    %1752 = vmatprep.subr.mxu0 0.0
    %1753 = vmatpush1.msra.mxu0 0.0
    %1754 = vmatprep.subr.mxu0 0.0
    %1755 = vmatpush1.msra.mxu0 0.0
    %1756 = vmatprep.subr.mxu0 0.0
    %1757 = vmatpush1.msra.mxu0 0.0
    %1758 = vmatprep.subr.mxu0 0.0
    %1759 = vmatpush1.msra.mxu0 0.0
    %1760 = vmatprep.subr.mxu0 0.0
    %1761 = vmatpush1.msra.mxu0 0.0
    %1762 = vmatprep.subr.mxu0 0.0
    %1763 = vmatpush1.msra.mxu0 0.0
    %1764 = vmatprep.subr.mxu0 0.0
    %1765 = vmatpush1.msra.mxu0 0.0
    %1766 = vmatprep.subr.mxu0 0.0
    %1767 = vmatpush1.msra.mxu0 0.0
    %1768 = vmatprep.subr.mxu0 0.0
    %1769 = vmatpush1.msra.mxu0 0.0
    %1770 = vmatprep.subr.mxu0 0.0
    %1771 = vmatpush1.msra.mxu0 0.0
    %1772 = vmatprep.mubr.f32.mxu0 0.0
    %1773 = vmatmul.mubr.f32.gmra.mrb[0].mxu0 %v1706
    %v1774 = vpop.f32.mrb[0].mxu0
    %v1775 = vadd.f32 %v1703, %v1774
    %v1776 = vpop.f32.mrb[0].mxu0
    %1777 = vdwg.mxu0
    %v1778 = vld [vmem:[%s6] sm:$0x1]
    %v1780 = vlaneseq
    %v1781 = vshrl.u32 %v1780, 7
    %v1782 = vsub.s32 0, %v1781
    %v1783 = vrot.slane %v1778, %v1782
    %v1785 = vadd.f32 %v1775, %v1783
    %v1786 = vld [vmem:[#allocation5] sm:$0xff]
    %v1787 = vxor.u32 %v1785, 2147483648
    %v1788 = vmul.f32 %v1787, 1.442695
    %v1789 = vpow.pop %v1788
    %v1790 = vadd.f32 %v1789, 1.0
    %v1791 = vrcp.pop %v1790
    %v1792 = vmul.f32 1.0, %v1791
    %v1793 = vtanh.pop %v1785
    %1795 = vrot.lane.b32.xlu0 %v1786, 32
    %v1796 = vpop.permute.xlu0 %1795
    %v1798 = vmul.f32 %v1792, %v1796
    %1800 = vrot.lane.b32.xlu0 %v1793, 64
    %v1801 = vpop.permute.xlu0 %1800
    %v1803 = vmul.f32 %v1792, %v1801
    %1805 = vrot.lane.b32.xlu0 %v1803, 32
    %v1806 = vpop.permute.xlu0 %1805
    %v1808 = vadd.f32 %v1798, %v1806
    %v1809 = vtanh.pop %v1808
    %1811 = vrot.lane.b32.xlu0 %v1809, 64
    %v1812 = vpop.permute.xlu0 %1811
    %v1814 = vmul.f32 %v1792, %v1812
    %1816 = vrot.lane.b32.xlu0 %v1814, 32
    %v1817 = vpop.permute.xlu0 %1816
    %1819 = vst.msk [vmem:[#allocation4] sm:$0xff] %vm61, %v1817
    %1821 = vrot.lane.b32.xlu0 %v1808, 96
    %v1822 = vpop.permute.xlu0 %1821
    %1824 = vst.msk [vmem:[#allocation5] sm:$0xff] %vm61, %v1822
    %1825 = vst.msk [vmem:[#allocation7 + $0x20] sm:$0xff] %vm61, %v1817
    %v1826 = vld [vmem:[#allocation6 + $0x28] sm:$0xff]
    %v1827 = vld [vmem:[#allocation2] sm:$0xff]
    %v1828 = vld [vmem:[%s2] sm:$0xff]
    %v1829 = vld [vmem:[%s2 + $0x8] sm:$0xff]
    %v1830 = vld [vmem:[%s2 + $0x10] sm:$0xff]
    %v1831 = vld [vmem:[%s2 + $0x18] sm:$0xff]
    %v1833 = vsel %vm61, %v1827, 0
    %1835 = vmatprep.subr.mxu0 0.0
    %1836 = vmatpush1.msra.mxu0 %v1828
    %1837 = vmatprep.subr.mxu0 0.0
    %1838 = vmatpush1.msra.mxu0 %v1829
    %1839 = vmatprep.subr.mxu0 0.0
    %1840 = vmatpush1.msra.mxu0 %v1830
    %1841 = vmatprep.subr.mxu0 0.0
    %1842 = vmatpush1.msra.mxu0 %v1831
    %1843 = vmatprep.subr.mxu0 0.0
    %1844 = vmatpush1.msra.mxu0 0.0
    %1845 = vmatprep.subr.mxu0 0.0
    %1846 = vmatpush1.msra.mxu0 0.0
    %1847 = vmatprep.subr.mxu0 0.0
    %1848 = vmatpush1.msra.mxu0 0.0
    %1849 = vmatprep.subr.mxu0 0.0
    %1850 = vmatpush1.msra.mxu0 0.0
    %1851 = vmatprep.subr.mxu0 0.0
    %1852 = vmatpush1.msra.mxu0 0.0
    %1853 = vmatprep.subr.mxu0 0.0
    %1854 = vmatpush1.msra.mxu0 0.0
    %1855 = vmatprep.subr.mxu0 0.0
    %1856 = vmatpush1.msra.mxu0 0.0
    %1857 = vmatprep.subr.mxu0 0.0
    %1858 = vmatpush1.msra.mxu0 0.0
    %1859 = vmatprep.subr.mxu0 0.0
    %1860 = vmatpush1.msra.mxu0 0.0
    %1861 = vmatprep.subr.mxu0 0.0
    %1862 = vmatpush1.msra.mxu0 0.0
    %1863 = vmatprep.subr.mxu0 0.0
    %1864 = vmatpush1.msra.mxu0 0.0
    %1865 = vmatprep.subr.mxu0 0.0
    %1866 = vmatpush1.msra.mxu0 0.0
    %1867 = vmatprep.subr.mxu0 0.0
    %1868 = vmatpush1.msra.mxu0 0.0
    %1869 = vmatprep.subr.mxu0 0.0
    %1870 = vmatpush1.msra.mxu0 0.0
    %1871 = vmatprep.subr.mxu0 0.0
    %1872 = vmatpush1.msra.mxu0 0.0
    %1873 = vmatprep.subr.mxu0 0.0
    %1874 = vmatpush1.msra.mxu0 0.0
    %1875 = vmatprep.subr.mxu0 0.0
    %1876 = vmatpush1.msra.mxu0 0.0
    %1877 = vmatprep.subr.mxu0 0.0
    %1878 = vmatpush1.msra.mxu0 0.0
    %1879 = vmatprep.subr.mxu0 0.0
    %1880 = vmatpush1.msra.mxu0 0.0
    %1881 = vmatprep.subr.mxu0 0.0
    %1882 = vmatpush1.msra.mxu0 0.0
    %1883 = vmatprep.subr.mxu0 0.0
    %1884 = vmatpush1.msra.mxu0 0.0
    %1885 = vmatprep.subr.mxu0 0.0
    %1886 = vmatpush1.msra.mxu0 0.0
    %1887 = vmatprep.subr.mxu0 0.0
    %1888 = vmatpush1.msra.mxu0 0.0
    %1889 = vmatprep.subr.mxu0 0.0
    %1890 = vmatpush1.msra.mxu0 0.0
    %1891 = vmatprep.subr.mxu0 0.0
    %1892 = vmatpush1.msra.mxu0 0.0
    %1893 = vmatprep.subr.mxu0 0.0
    %1894 = vmatpush1.msra.mxu0 0.0
    %1895 = vmatprep.subr.mxu0 0.0
    %1896 = vmatpush1.msra.mxu0 0.0
    %1897 = vmatprep.subr.mxu0 0.0
    %1898 = vmatpush1.msra.mxu0 0.0
    %1899 = vmatprep.mubr.f32.mxu0 0.0
    %1900 = vmatmul.mubr.f32.gmra.mrb[0].mxu0 %v1833
    %v1901 = vpop.f32.mrb[0].mxu0
    %v1902 = vadd.f32 0.0, %v1901
    %v1903 = vpop.f32.mrb[0].mxu0
    %1904 = vdwg.mxu0
    %v1905 = vadd.f32 %v1826, %v1902
    %v1906 = vld [vmem:[#allocation3] sm:$0xff]
    %v1907 = vxor.u32 %v1905, 2147483648
    %v1908 = vmul.f32 %v1907, 1.442695
    %v1909 = vpow.pop %v1908
    %v1910 = vadd.f32 %v1909, 1.0
    %v1911 = vrcp.pop %v1910
    %v1912 = vmul.f32 1.0, %v1911
    %v1913 = vtanh.pop %v1905
    %1915 = vrot.lane.b32.xlu0 %v1906, 32
    %v1916 = vpop.permute.xlu0 %1915
    %v1918 = vmul.f32 %v1912, %v1916
    %1920 = vrot.lane.b32.xlu0 %v1913, 64
    %v1921 = vpop.permute.xlu0 %1920
    %v1923 = vmul.f32 %v1912, %v1921
    %1925 = vrot.lane.b32.xlu0 %v1923, 32
    %v1926 = vpop.permute.xlu0 %1925
    %v1928 = vadd.f32 %v1918, %v1926
    %v1929 = vtanh.pop %v1928
    %1931 = vrot.lane.b32.xlu0 %v1929, 64
    %v1932 = vpop.permute.xlu0 %1931
    %v1934 = vmul.f32 %v1912, %v1932
    %1936 = vrot.lane.b32.xlu0 %v1934, 32
    %v1937 = vpop.permute.xlu0 %1936
    %1939 = vst.msk [vmem:[#allocation2] sm:$0xff] %vm61, %v1937
    %1941 = vrot.lane.b32.xlu0 %v1928, 96
    %v1942 = vpop.permute.xlu0 %1941
    %1944 = vst.msk [vmem:[#allocation3] sm:$0xff] %vm61, %v1942
    %v1945 = vld [vmem:[%s4] sm:$0xff]
    %v1946 = vld [vmem:[%s4 + $0x8] sm:$0xff]
    %v1947 = vld [vmem:[%s4 + $0x10] sm:$0xff]
    %v1948 = vld [vmem:[%s4 + $0x18] sm:$0xff]
    %v1949 = vld [vmem:[#allocation4] sm:$0xff]
    %v1950 = vld [vmem:[%s5] sm:$0xff]
    %v1951 = vld [vmem:[%s5 + $0x8] sm:$0xff]
    %v1952 = vld [vmem:[%s5 + $0x10] sm:$0xff]
    %v1953 = vld [vmem:[%s5 + $0x18] sm:$0xff]
    %v1955 = vsel %vm61, %v1949, 0
    %1957 = vmatprep.subr.mxu0 0.0
    %1958 = vmatpush1.msra.mxu0 %v1950
    %1959 = vmatprep.subr.mxu0 0.0
    %1960 = vmatpush1.msra.mxu0 %v1951
    %1961 = vmatprep.subr.mxu0 0.0
    %1962 = vmatpush1.msra.mxu0 %v1952
    %1963 = vmatprep.subr.mxu0 0.0
    %1964 = vmatpush1.msra.mxu0 %v1953
    %1965 = vmatprep.subr.mxu0 0.0
    %1966 = vmatpush1.msra.mxu0 0.0
    %1967 = vmatprep.subr.mxu0 0.0
    %1968 = vmatpush1.msra.mxu0 0.0
    %1969 = vmatprep.subr.mxu0 0.0
    %1970 = vmatpush1.msra.mxu0 0.0
    %1971 = vmatprep.subr.mxu0 0.0
    %1972 = vmatpush1.msra.mxu0 0.0
    %1973 = vmatprep.subr.mxu0 0.0
    %1974 = vmatpush1.msra.mxu0 0.0
    %1975 = vmatprep.subr.mxu0 0.0
    %1976 = vmatpush1.msra.mxu0 0.0
    %1977 = vmatprep.subr.mxu0 0.0
    %1978 = vmatpush1.msra.mxu0 0.0
    %1979 = vmatprep.subr.mxu0 0.0
    %1980 = vmatpush1.msra.mxu0 0.0
    %1981 = vmatprep.subr.mxu0 0.0
    %1982 = vmatpush1.msra.mxu0 0.0
    %1983 = vmatprep.subr.mxu0 0.0
    %1984 = vmatpush1.msra.mxu0 0.0
    %1985 = vmatprep.subr.mxu0 0.0
    %1986 = vmatpush1.msra.mxu0 0.0
    %1987 = vmatprep.subr.mxu0 0.0
    %1988 = vmatpush1.msra.mxu0 0.0
    %1989 = vmatprep.subr.mxu0 0.0
    %1990 = vmatpush1.msra.mxu0 0.0
    %1991 = vmatprep.subr.mxu0 0.0
    %1992 = vmatpush1.msra.mxu0 0.0
    %1993 = vmatprep.subr.mxu0 0.0
    %1994 = vmatpush1.msra.mxu0 0.0
    %1995 = vmatprep.subr.mxu0 0.0
    %1996 = vmatpush1.msra.mxu0 0.0
    %1997 = vmatprep.subr.mxu0 0.0
    %1998 = vmatpush1.msra.mxu0 0.0
    %1999 = vmatprep.subr.mxu0 0.0
    %2000 = vmatpush1.msra.mxu0 0.0
    %2001 = vmatprep.subr.mxu0 0.0
    %2002 = vmatpush1.msra.mxu0 0.0
    %2003 = vmatprep.subr.mxu0 0.0
    %2004 = vmatpush1.msra.mxu0 0.0
    %2005 = vmatprep.subr.mxu0 0.0
    %2006 = vmatpush1.msra.mxu0 0.0
    %2007 = vmatprep.subr.mxu0 0.0
    %2008 = vmatpush1.msra.mxu0 0.0
    %2009 = vmatprep.subr.mxu0 0.0
    %2010 = vmatpush1.msra.mxu0 0.0
    %2011 = vmatprep.subr.mxu0 0.0
    %2012 = vmatpush1.msra.mxu0 0.0
    %2013 = vmatprep.subr.mxu0 0.0
    %2014 = vmatpush1.msra.mxu0 0.0
    %2015 = vmatprep.subr.mxu0 0.0
    %2016 = vmatpush1.msra.mxu0 0.0
    %2017 = vmatprep.subr.mxu0 0.0
    %2018 = vmatpush1.msra.mxu0 0.0
    %2019 = vmatprep.subr.mxu0 0.0
    %2020 = vmatpush1.msra.mxu0 0.0
    %2021 = vmatprep.mubr.f32.mxu0 0.0
    %2022 = vmatmul.mubr.f32.gmra.mrb[0].mxu0 %v1955
    %v2023 = vpop.f32.mrb[0].mxu0
    %v2024 = vadd.f32 0.0, %v2023
    %v2025 = vpop.f32.mrb[0].mxu0
    %2026 = vdwg.mxu0
    %v2027 = vsel %vm61, %v1937, 0
    %2029 = vmatprep.subr.mxu0 0.0
    %2030 = vmatpush1.msra.mxu0 %v1945
    %2031 = vmatprep.subr.mxu0 0.0
    %2032 = vmatpush1.msra.mxu0 %v1946
    %2033 = vmatprep.subr.mxu0 0.0
    %2034 = vmatpush1.msra.mxu0 %v1947
    %2035 = vmatprep.subr.mxu0 0.0
    %2036 = vmatpush1.msra.mxu0 %v1948
    %2037 = vmatprep.subr.mxu0 0.0
    %2038 = vmatpush1.msra.mxu0 0.0
    %2039 = vmatprep.subr.mxu0 0.0
    %2040 = vmatpush1.msra.mxu0 0.0
    %2041 = vmatprep.subr.mxu0 0.0
    %2042 = vmatpush1.msra.mxu0 0.0
    %2043 = vmatprep.subr.mxu0 0.0
    %2044 = vmatpush1.msra.mxu0 0.0
    %2045 = vmatprep.subr.mxu0 0.0
    %2046 = vmatpush1.msra.mxu0 0.0
    %2047 = vmatprep.subr.mxu0 0.0
    %2048 = vmatpush1.msra.mxu0 0.0
    %2049 = vmatprep.subr.mxu0 0.0
    %2050 = vmatpush1.msra.mxu0 0.0
    %2051 = vmatprep.subr.mxu0 0.0
    %2052 = vmatpush1.msra.mxu0 0.0
    %2053 = vmatprep.subr.mxu0 0.0
    %2054 = vmatpush1.msra.mxu0 0.0
    %2055 = vmatprep.subr.mxu0 0.0
    %2056 = vmatpush1.msra.mxu0 0.0
    %2057 = vmatprep.subr.mxu0 0.0
    %2058 = vmatpush1.msra.mxu0 0.0
    %2059 = vmatprep.subr.mxu0 0.0
    %2060 = vmatpush1.msra.mxu0 0.0
    %2061 = vmatprep.subr.mxu0 0.0
    %2062 = vmatpush1.msra.mxu0 0.0
    %2063 = vmatprep.subr.mxu0 0.0
    %2064 = vmatpush1.msra.mxu0 0.0
    %2065 = vmatprep.subr.mxu0 0.0
    %2066 = vmatpush1.msra.mxu0 0.0
    %2067 = vmatprep.subr.mxu0 0.0
    %2068 = vmatpush1.msra.mxu0 0.0
    %2069 = vmatprep.subr.mxu0 0.0
    %2070 = vmatpush1.msra.mxu0 0.0
    %2071 = vmatprep.subr.mxu0 0.0
    %2072 = vmatpush1.msra.mxu0 0.0
    %2073 = vmatprep.subr.mxu0 0.0
    %2074 = vmatpush1.msra.mxu0 0.0
    %2075 = vmatprep.subr.mxu0 0.0
    %2076 = vmatpush1.msra.mxu0 0.0
    %2077 = vmatprep.subr.mxu0 0.0
    %2078 = vmatpush1.msra.mxu0 0.0
    %2079 = vmatprep.subr.mxu0 0.0
    %2080 = vmatpush1.msra.mxu0 0.0
    %2081 = vmatprep.subr.mxu0 0.0
    %2082 = vmatpush1.msra.mxu0 0.0
    %2083 = vmatprep.subr.mxu0 0.0
    %2084 = vmatpush1.msra.mxu0 0.0
    %2085 = vmatprep.subr.mxu0 0.0
    %2086 = vmatpush1.msra.mxu0 0.0
    %2087 = vmatprep.subr.mxu0 0.0
    %2088 = vmatpush1.msra.mxu0 0.0
    %2089 = vmatprep.subr.mxu0 0.0
    %2090 = vmatpush1.msra.mxu0 0.0
    %2091 = vmatprep.subr.mxu0 0.0
    %2092 = vmatpush1.msra.mxu0 0.0
    %2093 = vmatprep.mubr.f32.mxu0 0.0
    %2094 = vmatmul.mubr.f32.gmra.mrb[0].mxu0 %v2027
    %v2095 = vpop.f32.mrb[0].mxu0
    %v2096 = vadd.f32 %v2024, %v2095
    %v2097 = vpop.f32.mrb[0].mxu0
    %2098 = vdwg.mxu0
    %v2099 = vld [vmem:[%s6] sm:$0x1]
    %v2101 = vlaneseq
    %v2102 = vshrl.u32 %v2101, 7
    %v2103 = vsub.s32 0, %v2102
    %v2104 = vrot.slane %v2099, %v2103
    %v2106 = vadd.f32 %v2096, %v2104
    %v2107 = vld [vmem:[#allocation5] sm:$0xff]
    %v2108 = vxor.u32 %v2106, 2147483648
    %v2109 = vmul.f32 %v2108, 1.442695
    %v2110 = vpow.pop %v2109
    %v2111 = vadd.f32 %v2110, 1.0
    %v2112 = vrcp.pop %v2111
    %v2113 = vmul.f32 1.0, %v2112
    %v2114 = vtanh.pop %v2106
    %2116 = vrot.lane.b32.xlu0 %v2107, 32
    %v2117 = vpop.permute.xlu0 %2116
    %v2119 = vmul.f32 %v2113, %v2117
    %2121 = vrot.lane.b32.xlu0 %v2114, 64
    %v2122 = vpop.permute.xlu0 %2121
    %v2124 = vmul.f32 %v2113, %v2122
    %2126 = vrot.lane.b32.xlu0 %v2124, 32
    %v2127 = vpop.permute.xlu0 %2126
    %v2129 = vadd.f32 %v2119, %v2127
    %v2130 = vtanh.pop %v2129
    %2132 = vrot.lane.b32.xlu0 %v2130, 64
    %v2133 = vpop.permute.xlu0 %2132
    %v2135 = vmul.f32 %v2113, %v2133
    %2137 = vrot.lane.b32.xlu0 %v2135, 32
    %v2138 = vpop.permute.xlu0 %2137
    %2140 = vst.msk [vmem:[#allocation4] sm:$0xff] %vm61, %v2138
    %2142 = vrot.lane.b32.xlu0 %v2129, 96
    %v2143 = vpop.permute.xlu0 %2142
    %2145 = vst.msk [vmem:[#allocation5] sm:$0xff] %vm61, %v2143
    %2146 = vst.msk [vmem:[#allocation7 + $0x28] sm:$0xff] %vm61, %v2138
    %v2147 = vld [vmem:[#allocation6 + $0x30] sm:$0xff]
    %v2148 = vld [vmem:[#allocation2] sm:$0xff]
    %v2149 = vld [vmem:[%s2] sm:$0xff]
    %v2150 = vld [vmem:[%s2 + $0x8] sm:$0xff]
    %v2151 = vld [vmem:[%s2 + $0x10] sm:$0xff]
    %v2152 = vld [vmem:[%s2 + $0x18] sm:$0xff]
    %v2154 = vsel %vm61, %v2148, 0
    %2156 = vmatprep.subr.mxu0 0.0
    %2157 = vmatpush1.msra.mxu0 %v2149
    %2158 = vmatprep.subr.mxu0 0.0
    %2159 = vmatpush1.msra.mxu0 %v2150
    %2160 = vmatprep.subr.mxu0 0.0
    %2161 = vmatpush1.msra.mxu0 %v2151
    %2162 = vmatprep.subr.mxu0 0.0
    %2163 = vmatpush1.msra.mxu0 %v2152
    %2164 = vmatprep.subr.mxu0 0.0
    %2165 = vmatpush1.msra.mxu0 0.0
    %2166 = vmatprep.subr.mxu0 0.0
    %2167 = vmatpush1.msra.mxu0 0.0
    %2168 = vmatprep.subr.mxu0 0.0
    %2169 = vmatpush1.msra.mxu0 0.0
    %2170 = vmatprep.subr.mxu0 0.0
    %2171 = vmatpush1.msra.mxu0 0.0
    %2172 = vmatprep.subr.mxu0 0.0
    %2173 = vmatpush1.msra.mxu0 0.0
    %2174 = vmatprep.subr.mxu0 0.0
    %2175 = vmatpush1.msra.mxu0 0.0
    %2176 = vmatprep.subr.mxu0 0.0
    %2177 = vmatpush1.msra.mxu0 0.0
    %2178 = vmatprep.subr.mxu0 0.0
    %2179 = vmatpush1.msra.mxu0 0.0
    %2180 = vmatprep.subr.mxu0 0.0
    %2181 = vmatpush1.msra.mxu0 0.0
    %2182 = vmatprep.subr.mxu0 0.0
    %2183 = vmatpush1.msra.mxu0 0.0
    %2184 = vmatprep.subr.mxu0 0.0
    %2185 = vmatpush1.msra.mxu0 0.0
    %2186 = vmatprep.subr.mxu0 0.0
    %2187 = vmatpush1.msra.mxu0 0.0
    %2188 = vmatprep.subr.mxu0 0.0
    %2189 = vmatpush1.msra.mxu0 0.0
    %2190 = vmatprep.subr.mxu0 0.0
    %2191 = vmatpush1.msra.mxu0 0.0
    %2192 = vmatprep.subr.mxu0 0.0
    %2193 = vmatpush1.msra.mxu0 0.0
    %2194 = vmatprep.subr.mxu0 0.0
    %2195 = vmatpush1.msra.mxu0 0.0
    %2196 = vmatprep.subr.mxu0 0.0
    %2197 = vmatpush1.msra.mxu0 0.0
    %2198 = vmatprep.subr.mxu0 0.0
    %2199 = vmatpush1.msra.mxu0 0.0
    %2200 = vmatprep.subr.mxu0 0.0
    %2201 = vmatpush1.msra.mxu0 0.0
    %2202 = vmatprep.subr.mxu0 0.0
    %2203 = vmatpush1.msra.mxu0 0.0
    %2204 = vmatprep.subr.mxu0 0.0
    %2205 = vmatpush1.msra.mxu0 0.0
    %2206 = vmatprep.subr.mxu0 0.0
    %2207 = vmatpush1.msra.mxu0 0.0
    %2208 = vmatprep.subr.mxu0 0.0
    %2209 = vmatpush1.msra.mxu0 0.0
    %2210 = vmatprep.subr.mxu0 0.0
    %2211 = vmatpush1.msra.mxu0 0.0
    %2212 = vmatprep.subr.mxu0 0.0
    %2213 = vmatpush1.msra.mxu0 0.0
    %2214 = vmatprep.subr.mxu0 0.0
    %2215 = vmatpush1.msra.mxu0 0.0
    %2216 = vmatprep.subr.mxu0 0.0
    %2217 = vmatpush1.msra.mxu0 0.0
    %2218 = vmatprep.subr.mxu0 0.0
    %2219 = vmatpush1.msra.mxu0 0.0
    %2220 = vmatprep.mubr.f32.mxu0 0.0
    %2221 = vmatmul.mubr.f32.gmra.mrb[0].mxu0 %v2154
    %v2222 = vpop.f32.mrb[0].mxu0
    %v2223 = vadd.f32 0.0, %v2222
    %v2224 = vpop.f32.mrb[0].mxu0
    %2225 = vdwg.mxu0
    %v2226 = vadd.f32 %v2147, %v2223
    %v2227 = vld [vmem:[#allocation3] sm:$0xff]
    %v2228 = vxor.u32 %v2226, 2147483648
    %v2229 = vmul.f32 %v2228, 1.442695
    %v2230 = vpow.pop %v2229
    %v2231 = vadd.f32 %v2230, 1.0
    %v2232 = vrcp.pop %v2231
    %v2233 = vmul.f32 1.0, %v2232
    %v2234 = vtanh.pop %v2226
    %2236 = vrot.lane.b32.xlu0 %v2227, 32
    %v2237 = vpop.permute.xlu0 %2236
    %v2239 = vmul.f32 %v2233, %v2237
    %2241 = vrot.lane.b32.xlu0 %v2234, 64
    %v2242 = vpop.permute.xlu0 %2241
    %v2244 = vmul.f32 %v2233, %v2242
    %2246 = vrot.lane.b32.xlu0 %v2244, 32
    %v2247 = vpop.permute.xlu0 %2246
    %v2249 = vadd.f32 %v2239, %v2247
    %v2250 = vtanh.pop %v2249
    %2252 = vrot.lane.b32.xlu0 %v2250, 64
    %v2253 = vpop.permute.xlu0 %2252
    %v2255 = vmul.f32 %v2233, %v2253
    %2257 = vrot.lane.b32.xlu0 %v2255, 32
    %v2258 = vpop.permute.xlu0 %2257
    %2260 = vst.msk [vmem:[#allocation2] sm:$0xff] %vm61, %v2258
    %2262 = vrot.lane.b32.xlu0 %v2249, 96
    %v2263 = vpop.permute.xlu0 %2262
    %2265 = vst.msk [vmem:[#allocation3] sm:$0xff] %vm61, %v2263
    %v2266 = vld [vmem:[%s4] sm:$0xff]
    %v2267 = vld [vmem:[%s4 + $0x8] sm:$0xff]
    %v2268 = vld [vmem:[%s4 + $0x10] sm:$0xff]
    %v2269 = vld [vmem:[%s4 + $0x18] sm:$0xff]
    %v2270 = vld [vmem:[#allocation4] sm:$0xff]
    %v2271 = vld [vmem:[%s5] sm:$0xff]
    %v2272 = vld [vmem:[%s5 + $0x8] sm:$0xff]
    %v2273 = vld [vmem:[%s5 + $0x10] sm:$0xff]
    %v2274 = vld [vmem:[%s5 + $0x18] sm:$0xff]
    %v2276 = vsel %vm61, %v2270, 0
    %2278 = vmatprep.subr.mxu0 0.0
    %2279 = vmatpush1.msra.mxu0 %v2271
    %2280 = vmatprep.subr.mxu0 0.0
    %2281 = vmatpush1.msra.mxu0 %v2272
    %2282 = vmatprep.subr.mxu0 0.0
    %2283 = vmatpush1.msra.mxu0 %v2273
    %2284 = vmatprep.subr.mxu0 0.0
    %2285 = vmatpush1.msra.mxu0 %v2274
    %2286 = vmatprep.subr.mxu0 0.0
    %2287 = vmatpush1.msra.mxu0 0.0
    %2288 = vmatprep.subr.mxu0 0.0
    %2289 = vmatpush1.msra.mxu0 0.0
    %2290 = vmatprep.subr.mxu0 0.0
    %2291 = vmatpush1.msra.mxu0 0.0
    %2292 = vmatprep.subr.mxu0 0.0
    %2293 = vmatpush1.msra.mxu0 0.0
    %2294 = vmatprep.subr.mxu0 0.0
    %2295 = vmatpush1.msra.mxu0 0.0
    %2296 = vmatprep.subr.mxu0 0.0
    %2297 = vmatpush1.msra.mxu0 0.0
    %2298 = vmatprep.subr.mxu0 0.0
    %2299 = vmatpush1.msra.mxu0 0.0
    %2300 = vmatprep.subr.mxu0 0.0
    %2301 = vmatpush1.msra.mxu0 0.0
    %2302 = vmatprep.subr.mxu0 0.0
    %2303 = vmatpush1.msra.mxu0 0.0
    %2304 = vmatprep.subr.mxu0 0.0
    %2305 = vmatpush1.msra.mxu0 0.0
    %2306 = vmatprep.subr.mxu0 0.0
    %2307 = vmatpush1.msra.mxu0 0.0
    %2308 = vmatprep.subr.mxu0 0.0
    %2309 = vmatpush1.msra.mxu0 0.0
    %2310 = vmatprep.subr.mxu0 0.0
    %2311 = vmatpush1.msra.mxu0 0.0
    %2312 = vmatprep.subr.mxu0 0.0
    %2313 = vmatpush1.msra.mxu0 0.0
    %2314 = vmatprep.subr.mxu0 0.0
    %2315 = vmatpush1.msra.mxu0 0.0
    %2316 = vmatprep.subr.mxu0 0.0
    %2317 = vmatpush1.msra.mxu0 0.0
    %2318 = vmatprep.subr.mxu0 0.0
    %2319 = vmatpush1.msra.mxu0 0.0
    %2320 = vmatprep.subr.mxu0 0.0
    %2321 = vmatpush1.msra.mxu0 0.0
    %2322 = vmatprep.subr.mxu0 0.0
    %2323 = vmatpush1.msra.mxu0 0.0
    %2324 = vmatprep.subr.mxu0 0.0
    %2325 = vmatpush1.msra.mxu0 0.0
    %2326 = vmatprep.subr.mxu0 0.0
    %2327 = vmatpush1.msra.mxu0 0.0
    %2328 = vmatprep.subr.mxu0 0.0
    %2329 = vmatpush1.msra.mxu0 0.0
    %2330 = vmatprep.subr.mxu0 0.0
    %2331 = vmatpush1.msra.mxu0 0.0
    %2332 = vmatprep.subr.mxu0 0.0
    %2333 = vmatpush1.msra.mxu0 0.0
    %2334 = vmatprep.subr.mxu0 0.0
    %2335 = vmatpush1.msra.mxu0 0.0
    %2336 = vmatprep.subr.mxu0 0.0
    %2337 = vmatpush1.msra.mxu0 0.0
    %2338 = vmatprep.subr.mxu0 0.0
    %2339 = vmatpush1.msra.mxu0 0.0
    %2340 = vmatprep.subr.mxu0 0.0
    %2341 = vmatpush1.msra.mxu0 0.0
    %2342 = vmatprep.mubr.f32.mxu0 0.0
    %2343 = vmatmul.mubr.f32.gmra.mrb[0].mxu0 %v2276
    %v2344 = vpop.f32.mrb[0].mxu0
    %v2345 = vadd.f32 0.0, %v2344
    %v2346 = vpop.f32.mrb[0].mxu0
    %2347 = vdwg.mxu0
    %v2348 = vsel %vm61, %v2258, 0
    %2350 = vmatprep.subr.mxu0 0.0
    %2351 = vmatpush1.msra.mxu0 %v2266
    %2352 = vmatprep.subr.mxu0 0.0
    %2353 = vmatpush1.msra.mxu0 %v2267
    %2354 = vmatprep.subr.mxu0 0.0
    %2355 = vmatpush1.msra.mxu0 %v2268
    %2356 = vmatprep.subr.mxu0 0.0
    %2357 = vmatpush1.msra.mxu0 %v2269
    %2358 = vmatprep.subr.mxu0 0.0
    %2359 = vmatpush1.msra.mxu0 0.0
    %2360 = vmatprep.subr.mxu0 0.0
    %2361 = vmatpush1.msra.mxu0 0.0
    %2362 = vmatprep.subr.mxu0 0.0
    %2363 = vmatpush1.msra.mxu0 0.0
    %2364 = vmatprep.subr.mxu0 0.0
    %2365 = vmatpush1.msra.mxu0 0.0
    %2366 = vmatprep.subr.mxu0 0.0
    %2367 = vmatpush1.msra.mxu0 0.0
    %2368 = vmatprep.subr.mxu0 0.0
    %2369 = vmatpush1.msra.mxu0 0.0
    %2370 = vmatprep.subr.mxu0 0.0
    %2371 = vmatpush1.msra.mxu0 0.0
    %2372 = vmatprep.subr.mxu0 0.0
    %2373 = vmatpush1.msra.mxu0 0.0
    %2374 = vmatprep.subr.mxu0 0.0
    %2375 = vmatpush1.msra.mxu0 0.0
    %2376 = vmatprep.subr.mxu0 0.0
    %2377 = vmatpush1.msra.mxu0 0.0
    %2378 = vmatprep.subr.mxu0 0.0
    %2379 = vmatpush1.msra.mxu0 0.0
    %2380 = vmatprep.subr.mxu0 0.0
    %2381 = vmatpush1.msra.mxu0 0.0
    %2382 = vmatprep.subr.mxu0 0.0
    %2383 = vmatpush1.msra.mxu0 0.0
    %2384 = vmatprep.subr.mxu0 0.0
    %2385 = vmatpush1.msra.mxu0 0.0
    %2386 = vmatprep.subr.mxu0 0.0
    %2387 = vmatpush1.msra.mxu0 0.0
    %2388 = vmatprep.subr.mxu0 0.0
    %2389 = vmatpush1.msra.mxu0 0.0
    %2390 = vmatprep.subr.mxu0 0.0
    %2391 = vmatpush1.msra.mxu0 0.0
    %2392 = vmatprep.subr.mxu0 0.0
    %2393 = vmatpush1.msra.mxu0 0.0
    %2394 = vmatprep.subr.mxu0 0.0
    %2395 = vmatpush1.msra.mxu0 0.0
    %2396 = vmatprep.subr.mxu0 0.0
    %2397 = vmatpush1.msra.mxu0 0.0
    %2398 = vmatprep.subr.mxu0 0.0
    %2399 = vmatpush1.msra.mxu0 0.0
    %2400 = vmatprep.subr.mxu0 0.0
    %2401 = vmatpush1.msra.mxu0 0.0
    %2402 = vmatprep.subr.mxu0 0.0
    %2403 = vmatpush1.msra.mxu0 0.0
    %2404 = vmatprep.subr.mxu0 0.0
    %2405 = vmatpush1.msra.mxu0 0.0
    %2406 = vmatprep.subr.mxu0 0.0
    %2407 = vmatpush1.msra.mxu0 0.0
    %2408 = vmatprep.subr.mxu0 0.0
    %2409 = vmatpush1.msra.mxu0 0.0
    %2410 = vmatprep.subr.mxu0 0.0
    %2411 = vmatpush1.msra.mxu0 0.0
    %2412 = vmatprep.subr.mxu0 0.0
    %2413 = vmatpush1.msra.mxu0 0.0
    %2414 = vmatprep.mubr.f32.mxu0 0.0
    %2415 = vmatmul.mubr.f32.gmra.mrb[0].mxu0 %v2348
    %v2416 = vpop.f32.mrb[0].mxu0
    %v2417 = vadd.f32 %v2345, %v2416
    %v2418 = vpop.f32.mrb[0].mxu0
    %2419 = vdwg.mxu0
    %v2420 = vld [vmem:[%s6] sm:$0x1]
    %v2422 = vlaneseq
    %v2423 = vshrl.u32 %v2422, 7
    %v2424 = vsub.s32 0, %v2423
    %v2425 = vrot.slane %v2420, %v2424
    %v2427 = vadd.f32 %v2417, %v2425
    %v2428 = vld [vmem:[#allocation5] sm:$0xff]
    %v2429 = vxor.u32 %v2427, 2147483648
    %v2430 = vmul.f32 %v2429, 1.442695
    %v2431 = vpow.pop %v2430
    %v2432 = vadd.f32 %v2431, 1.0
    %v2433 = vrcp.pop %v2432
    %v2434 = vmul.f32 1.0, %v2433
    %v2435 = vtanh.pop %v2427
    %2437 = vrot.lane.b32.xlu0 %v2428, 32
    %v2438 = vpop.permute.xlu0 %2437
    %v2440 = vmul.f32 %v2434, %v2438
    %2442 = vrot.lane.b32.xlu0 %v2435, 64
    %v2443 = vpop.permute.xlu0 %2442
    %v2445 = vmul.f32 %v2434, %v2443
    %2447 = vrot.lane.b32.xlu0 %v2445, 32
    %v2448 = vpop.permute.xlu0 %2447
    %v2450 = vadd.f32 %v2440, %v2448
    %v2451 = vtanh.pop %v2450
    %2453 = vrot.lane.b32.xlu0 %v2451, 64
    %v2454 = vpop.permute.xlu0 %2453
    %v2456 = vmul.f32 %v2434, %v2454
    %2458 = vrot.lane.b32.xlu0 %v2456, 32
    %v2459 = vpop.permute.xlu0 %2458
    %2461 = vst.msk [vmem:[#allocation4] sm:$0xff] %vm61, %v2459
    %2463 = vrot.lane.b32.xlu0 %v2450, 96
    %v2464 = vpop.permute.xlu0 %2463
    %2466 = vst.msk [vmem:[#allocation5] sm:$0xff] %vm61, %v2464
    %2467 = vst.msk [vmem:[#allocation7 + $0x30] sm:$0xff] %vm61, %v2459
    %v2468 = vld [vmem:[#allocation6 + $0x38] sm:$0xff]
    %v2469 = vld [vmem:[#allocation2] sm:$0xff]
    %v2470 = vld [vmem:[%s2] sm:$0xff]
    %v2471 = vld [vmem:[%s2 + $0x8] sm:$0xff]
    %v2472 = vld [vmem:[%s2 + $0x10] sm:$0xff]
    %v2473 = vld [vmem:[%s2 + $0x18] sm:$0xff]
    %v2475 = vsel %vm61, %v2469, 0
    %2477 = vmatprep.subr.mxu0 0.0
    %2478 = vmatpush1.msra.mxu0 %v2470
    %2479 = vmatprep.subr.mxu0 0.0
    %2480 = vmatpush1.msra.mxu0 %v2471
    %2481 = vmatprep.subr.mxu0 0.0
    %2482 = vmatpush1.msra.mxu0 %v2472
    %2483 = vmatprep.subr.mxu0 0.0
    %2484 = vmatpush1.msra.mxu0 %v2473
    %2485 = vmatprep.subr.mxu0 0.0
    %2486 = vmatpush1.msra.mxu0 0.0
    %2487 = vmatprep.subr.mxu0 0.0
    %2488 = vmatpush1.msra.mxu0 0.0
    %2489 = vmatprep.subr.mxu0 0.0
    %2490 = vmatpush1.msra.mxu0 0.0
    %2491 = vmatprep.subr.mxu0 0.0
    %2492 = vmatpush1.msra.mxu0 0.0
    %2493 = vmatprep.subr.mxu0 0.0
    %2494 = vmatpush1.msra.mxu0 0.0
    %2495 = vmatprep.subr.mxu0 0.0
    %2496 = vmatpush1.msra.mxu0 0.0
    %2497 = vmatprep.subr.mxu0 0.0
    %2498 = vmatpush1.msra.mxu0 0.0
    %2499 = vmatprep.subr.mxu0 0.0
    %2500 = vmatpush1.msra.mxu0 0.0
    %2501 = vmatprep.subr.mxu0 0.0
    %2502 = vmatpush1.msra.mxu0 0.0
    %2503 = vmatprep.subr.mxu0 0.0
    %2504 = vmatpush1.msra.mxu0 0.0
    %2505 = vmatprep.subr.mxu0 0.0
    %2506 = vmatpush1.msra.mxu0 0.0
    %2507 = vmatprep.subr.mxu0 0.0
    %2508 = vmatpush1.msra.mxu0 0.0
    %2509 = vmatprep.subr.mxu0 0.0
    %2510 = vmatpush1.msra.mxu0 0.0
    %2511 = vmatprep.subr.mxu0 0.0
    %2512 = vmatpush1.msra.mxu0 0.0
    %2513 = vmatprep.subr.mxu0 0.0
    %2514 = vmatpush1.msra.mxu0 0.0
    %2515 = vmatprep.subr.mxu0 0.0
    %2516 = vmatpush1.msra.mxu0 0.0
    %2517 = vmatprep.subr.mxu0 0.0
    %2518 = vmatpush1.msra.mxu0 0.0
    %2519 = vmatprep.subr.mxu0 0.0
    %2520 = vmatpush1.msra.mxu0 0.0
    %2521 = vmatprep.subr.mxu0 0.0
    %2522 = vmatpush1.msra.mxu0 0.0
    %2523 = vmatprep.subr.mxu0 0.0
    %2524 = vmatpush1.msra.mxu0 0.0
    %2525 = vmatprep.subr.mxu0 0.0
    %2526 = vmatpush1.msra.mxu0 0.0
    %2527 = vmatprep.subr.mxu0 0.0
    %2528 = vmatpush1.msra.mxu0 0.0
    %2529 = vmatprep.subr.mxu0 0.0
    %2530 = vmatpush1.msra.mxu0 0.0
    %2531 = vmatprep.subr.mxu0 0.0
    %2532 = vmatpush1.msra.mxu0 0.0
    %2533 = vmatprep.subr.mxu0 0.0
    %2534 = vmatpush1.msra.mxu0 0.0
    %2535 = vmatprep.subr.mxu0 0.0
    %2536 = vmatpush1.msra.mxu0 0.0
    %2537 = vmatprep.subr.mxu0 0.0
    %2538 = vmatpush1.msra.mxu0 0.0
    %2539 = vmatprep.subr.mxu0 0.0
    %2540 = vmatpush1.msra.mxu0 0.0
    %2541 = vmatprep.mubr.f32.mxu0 0.0
    %2542 = vmatmul.mubr.f32.gmra.mrb[0].mxu0 %v2475
    %v2543 = vpop.f32.mrb[0].mxu0
    %v2544 = vadd.f32 0.0, %v2543
    %v2545 = vpop.f32.mrb[0].mxu0
    %2546 = vdwg.mxu0
    %v2547 = vadd.f32 %v2468, %v2544
    %v2548 = vld [vmem:[#allocation3] sm:$0xff]
    %v2549 = vxor.u32 %v2547, 2147483648
    %v2550 = vmul.f32 %v2549, 1.442695
    %v2551 = vpow.pop %v2550
    %v2552 = vadd.f32 %v2551, 1.0
    %v2553 = vrcp.pop %v2552
    %v2554 = vmul.f32 1.0, %v2553
    %v2555 = vtanh.pop %v2547
    %2557 = vrot.lane.b32.xlu0 %v2548, 32
    %v2558 = vpop.permute.xlu0 %2557
    %v2560 = vmul.f32 %v2554, %v2558
    %2562 = vrot.lane.b32.xlu0 %v2555, 64
    %v2563 = vpop.permute.xlu0 %2562
    %v2565 = vmul.f32 %v2554, %v2563
    %2567 = vrot.lane.b32.xlu0 %v2565, 32
    %v2568 = vpop.permute.xlu0 %2567
    %v2570 = vadd.f32 %v2560, %v2568
    %v2571 = vtanh.pop %v2570
    %2573 = vrot.lane.b32.xlu0 %v2571, 64
    %v2574 = vpop.permute.xlu0 %2573
    %v2576 = vmul.f32 %v2554, %v2574
    %2578 = vrot.lane.b32.xlu0 %v2576, 32
    %v2579 = vpop.permute.xlu0 %2578
    %2581 = vst.msk [vmem:[#allocation2] sm:$0xff] %vm61, %v2579
    %2583 = vrot.lane.b32.xlu0 %v2570, 96
    %v2584 = vpop.permute.xlu0 %2583
    %2586 = vst.msk [vmem:[#allocation3] sm:$0xff] %vm61, %v2584
    %v2587 = vld [vmem:[%s4] sm:$0xff]
    %v2588 = vld [vmem:[%s4 + $0x8] sm:$0xff]
    %v2589 = vld [vmem:[%s4 + $0x10] sm:$0xff]
    %v2590 = vld [vmem:[%s4 + $0x18] sm:$0xff]
    %v2591 = vld [vmem:[#allocation4] sm:$0xff]
    %v2592 = vld [vmem:[%s5] sm:$0xff]
    %v2593 = vld [vmem:[%s5 + $0x8] sm:$0xff]
    %v2594 = vld [vmem:[%s5 + $0x10] sm:$0xff]
    %v2595 = vld [vmem:[%s5 + $0x18] sm:$0xff]
    %v2597 = vsel %vm61, %v2591, 0
    %2599 = vmatprep.subr.mxu0 0.0
    %2600 = vmatpush1.msra.mxu0 %v2592
    %2601 = vmatprep.subr.mxu0 0.0
    %2602 = vmatpush1.msra.mxu0 %v2593
    %2603 = vmatprep.subr.mxu0 0.0
    %2604 = vmatpush1.msra.mxu0 %v2594
    %2605 = vmatprep.subr.mxu0 0.0
    %2606 = vmatpush1.msra.mxu0 %v2595
    %2607 = vmatprep.subr.mxu0 0.0
    %2608 = vmatpush1.msra.mxu0 0.0
    %2609 = vmatprep.subr.mxu0 0.0
    %2610 = vmatpush1.msra.mxu0 0.0
    %2611 = vmatprep.subr.mxu0 0.0
    %2612 = vmatpush1.msra.mxu0 0.0
    %2613 = vmatprep.subr.mxu0 0.0
    %2614 = vmatpush1.msra.mxu0 0.0
    %2615 = vmatprep.subr.mxu0 0.0
    %2616 = vmatpush1.msra.mxu0 0.0
    %2617 = vmatprep.subr.mxu0 0.0
    %2618 = vmatpush1.msra.mxu0 0.0
    %2619 = vmatprep.subr.mxu0 0.0
    %2620 = vmatpush1.msra.mxu0 0.0
    %2621 = vmatprep.subr.mxu0 0.0
    %2622 = vmatpush1.msra.mxu0 0.0
    %2623 = vmatprep.subr.mxu0 0.0
    %2624 = vmatpush1.msra.mxu0 0.0
    %2625 = vmatprep.subr.mxu0 0.0
    %2626 = vmatpush1.msra.mxu0 0.0
    %2627 = vmatprep.subr.mxu0 0.0
    %2628 = vmatpush1.msra.mxu0 0.0
    %2629 = vmatprep.subr.mxu0 0.0
    %2630 = vmatpush1.msra.mxu0 0.0
    %2631 = vmatprep.subr.mxu0 0.0
    %2632 = vmatpush1.msra.mxu0 0.0
    %2633 = vmatprep.subr.mxu0 0.0
    %2634 = vmatpush1.msra.mxu0 0.0
    %2635 = vmatprep.subr.mxu0 0.0
    %2636 = vmatpush1.msra.mxu0 0.0
    %2637 = vmatprep.subr.mxu0 0.0
    %2638 = vmatpush1.msra.mxu0 0.0
    %2639 = vmatprep.subr.mxu0 0.0
    %2640 = vmatpush1.msra.mxu0 0.0
    %2641 = vmatprep.subr.mxu0 0.0
    %2642 = vmatpush1.msra.mxu0 0.0
    %2643 = vmatprep.subr.mxu0 0.0
    %2644 = vmatpush1.msra.mxu0 0.0
    %2645 = vmatprep.subr.mxu0 0.0
    %2646 = vmatpush1.msra.mxu0 0.0
    %2647 = vmatprep.subr.mxu0 0.0
    %2648 = vmatpush1.msra.mxu0 0.0
    %2649 = vmatprep.subr.mxu0 0.0
    %2650 = vmatpush1.msra.mxu0 0.0
    %2651 = vmatprep.subr.mxu0 0.0
    %2652 = vmatpush1.msra.mxu0 0.0
    %2653 = vmatprep.subr.mxu0 0.0
    %2654 = vmatpush1.msra.mxu0 0.0
    %2655 = vmatprep.subr.mxu0 0.0
    %2656 = vmatpush1.msra.mxu0 0.0
    %2657 = vmatprep.subr.mxu0 0.0
    %2658 = vmatpush1.msra.mxu0 0.0
    %2659 = vmatprep.subr.mxu0 0.0
    %2660 = vmatpush1.msra.mxu0 0.0
    %2661 = vmatprep.subr.mxu0 0.0
    %2662 = vmatpush1.msra.mxu0 0.0
    %2663 = vmatprep.mubr.f32.mxu0 0.0
    %2664 = vmatmul.mubr.f32.gmra.mrb[0].mxu0 %v2597
    %v2665 = vpop.f32.mrb[0].mxu0
    %v2666 = vadd.f32 0.0, %v2665
    %v2667 = vpop.f32.mrb[0].mxu0
    %2668 = vdwg.mxu0
    %v2669 = vsel %vm61, %v2579, 0
    %2671 = vmatprep.subr.mxu0 0.0
    %2672 = vmatpush1.msra.mxu0 %v2587
    %2673 = vmatprep.subr.mxu0 0.0
    %2674 = vmatpush1.msra.mxu0 %v2588
    %2675 = vmatprep.subr.mxu0 0.0
    %2676 = vmatpush1.msra.mxu0 %v2589
    %2677 = vmatprep.subr.mxu0 0.0
    %2678 = vmatpush1.msra.mxu0 %v2590
    %2679 = vmatprep.subr.mxu0 0.0
    %2680 = vmatpush1.msra.mxu0 0.0
    %2681 = vmatprep.subr.mxu0 0.0
    %2682 = vmatpush1.msra.mxu0 0.0
    %2683 = vmatprep.subr.mxu0 0.0
    %2684 = vmatpush1.msra.mxu0 0.0
    %2685 = vmatprep.subr.mxu0 0.0
    %2686 = vmatpush1.msra.mxu0 0.0
    %2687 = vmatprep.subr.mxu0 0.0
    %2688 = vmatpush1.msra.mxu0 0.0
    %2689 = vmatprep.subr.mxu0 0.0
    %2690 = vmatpush1.msra.mxu0 0.0
    %2691 = vmatprep.subr.mxu0 0.0
    %2692 = vmatpush1.msra.mxu0 0.0
    %2693 = vmatprep.subr.mxu0 0.0
    %2694 = vmatpush1.msra.mxu0 0.0
    %2695 = vmatprep.subr.mxu0 0.0
    %2696 = vmatpush1.msra.mxu0 0.0
    %2697 = vmatprep.subr.mxu0 0.0
    %2698 = vmatpush1.msra.mxu0 0.0
    %2699 = vmatprep.subr.mxu0 0.0
    %2700 = vmatpush1.msra.mxu0 0.0
    %2701 = vmatprep.subr.mxu0 0.0
    %2702 = vmatpush1.msra.mxu0 0.0
    %2703 = vmatprep.subr.mxu0 0.0
    %2704 = vmatpush1.msra.mxu0 0.0
    %2705 = vmatprep.subr.mxu0 0.0
    %2706 = vmatpush1.msra.mxu0 0.0
    %2707 = vmatprep.subr.mxu0 0.0
    %2708 = vmatpush1.msra.mxu0 0.0
    %2709 = vmatprep.subr.mxu0 0.0
    %2710 = vmatpush1.msra.mxu0 0.0
    %2711 = vmatprep.subr.mxu0 0.0
    %2712 = vmatpush1.msra.mxu0 0.0
    %2713 = vmatprep.subr.mxu0 0.0
    %2714 = vmatpush1.msra.mxu0 0.0
    %2715 = vmatprep.subr.mxu0 0.0
    %2716 = vmatpush1.msra.mxu0 0.0
    %2717 = vmatprep.subr.mxu0 0.0
    %2718 = vmatpush1.msra.mxu0 0.0
    %2719 = vmatprep.subr.mxu0 0.0
    %2720 = vmatpush1.msra.mxu0 0.0
    %2721 = vmatprep.subr.mxu0 0.0
    %2722 = vmatpush1.msra.mxu0 0.0
    %2723 = vmatprep.subr.mxu0 0.0
    %2724 = vmatpush1.msra.mxu0 0.0
    %2725 = vmatprep.subr.mxu0 0.0
    %2726 = vmatpush1.msra.mxu0 0.0
    %2727 = vmatprep.subr.mxu0 0.0
    %2728 = vmatpush1.msra.mxu0 0.0
    %2729 = vmatprep.subr.mxu0 0.0
    %2730 = vmatpush1.msra.mxu0 0.0
    %2731 = vmatprep.subr.mxu0 0.0
    %2732 = vmatpush1.msra.mxu0 0.0
    %2733 = vmatprep.subr.mxu0 0.0
    %2734 = vmatpush1.msra.mxu0 0.0
    %2735 = vmatprep.mubr.f32.mxu0 0.0
    %2736 = vmatmul.mubr.f32.gmra.mrb[0].mxu0 %v2669
    %v2737 = vpop.f32.mrb[0].mxu0
    %v2738 = vadd.f32 %v2666, %v2737
    %v2739 = vpop.f32.mrb[0].mxu0
    %2740 = vdwg.mxu0
    %v2741 = vld [vmem:[%s6] sm:$0x1]
    %v2743 = vlaneseq
    %v2744 = vshrl.u32 %v2743, 7
    %v2745 = vsub.s32 0, %v2744
    %v2746 = vrot.slane %v2741, %v2745
    %v2748 = vadd.f32 %v2738, %v2746
    %v2749 = vld [vmem:[#allocation5] sm:$0xff]
    %v2750 = vxor.u32 %v2748, 2147483648
    %v2751 = vmul.f32 %v2750, 1.442695
    %v2752 = vpow.pop %v2751
    %v2753 = vadd.f32 %v2752, 1.0
    %v2754 = vrcp.pop %v2753
    %v2755 = vmul.f32 1.0, %v2754
    %v2756 = vtanh.pop %v2748
    %2758 = vrot.lane.b32.xlu0 %v2749, 32
    %v2759 = vpop.permute.xlu0 %2758
    %v2761 = vmul.f32 %v2755, %v2759
    %2763 = vrot.lane.b32.xlu0 %v2756, 64
    %v2764 = vpop.permute.xlu0 %2763
    %v2766 = vmul.f32 %v2755, %v2764
    %2768 = vrot.lane.b32.xlu0 %v2766, 32
    %v2769 = vpop.permute.xlu0 %2768
    %v2771 = vadd.f32 %v2761, %v2769
    %v2772 = vtanh.pop %v2771
    %2774 = vrot.lane.b32.xlu0 %v2772, 64
    %v2775 = vpop.permute.xlu0 %2774
    %v2777 = vmul.f32 %v2755, %v2775
    %2779 = vrot.lane.b32.xlu0 %v2777, 32
    %v2780 = vpop.permute.xlu0 %2779
    %2782 = vst.msk [vmem:[#allocation4] sm:$0xff] %vm61, %v2780
    %2784 = vrot.lane.b32.xlu0 %v2771, 96
    %v2785 = vpop.permute.xlu0 %2784
    %2787 = vst.msk [vmem:[#allocation5] sm:$0xff] %vm61, %v2785
    %2788 = vst.msk [vmem:[#allocation7 + $0x38] sm:$0xff] %vm61, %v2780
    %v2789 = vld [vmem:[#allocation7] sm:$0xff]
    %v2790 = vld [vmem:[#allocation7 + $0x8] sm:$0xff]
    %v2791 = vld [vmem:[#allocation7 + $0x10] sm:$0xff]
    %v2792 = vld [vmem:[#allocation7 + $0x18] sm:$0xff]
    %v2793 = vld [vmem:[#allocation7 + $0x20] sm:$0xff]
    %v2794 = vld [vmem:[#allocation7 + $0x28] sm:$0xff]
    %v2795 = vld [vmem:[#allocation7 + $0x30] sm:$0xff]
    %v2796 = vld [vmem:[#allocation7 + $0x38] sm:$0xff]
    %v2797 = vld [vmem:[#allocation11] sm:$0xff]
    %v2798 = vld [vmem:[#allocation11 + $0x8] sm:$0xff]
    %v2799 = vld [vmem:[#allocation11 + $0x10] sm:$0xff]
    %v2800 = vld [vmem:[#allocation11 + $0x18] sm:$0xff]
    %v2801 = vld [vmem:[%s8] sm:$0x1]
    %v2803 = vlaneseq
    %v2804 = vshrl.u32 %v2803, 7
    %v2805 = vsub.s32 0, %v2804
    %v2806 = vrot.slane %v2801, %v2805
    %v2809 = vsel %vm61, %v2789, 0
    %v2812 = vsel %vm61, %v2790, 0
    %v2815 = vsel %vm61, %v2791, 0
    %v2818 = vsel %vm61, %v2792, 0
    %v2821 = vsel %vm61, %v2793, 0
    %v2824 = vsel %vm61, %v2794, 0
    %v2827 = vsel %vm61, %v2795, 0
    %v2830 = vsel %vm61, %v2796, 0
    %2832 = vmatprep.subr.mxu0 0.0
    %2833 = vmatpush1.msra.mxu0 %v2797
    %2834 = vmatprep.subr.mxu0 0.0
    %2835 = vmatpush1.msra.mxu0 %v2798
    %2836 = vmatprep.subr.mxu0 0.0
    %2837 = vmatpush1.msra.mxu0 %v2799
    %2838 = vmatprep.subr.mxu0 0.0
    %2839 = vmatpush1.msra.mxu0 %v2800
    %2840 = vmatprep.subr.mxu0 0.0
    %2841 = vmatpush1.msra.mxu0 0.0
    %2842 = vmatprep.subr.mxu0 0.0
    %2843 = vmatpush1.msra.mxu0 0.0
    %2844 = vmatprep.subr.mxu0 0.0
    %2845 = vmatpush1.msra.mxu0 0.0
    %2846 = vmatprep.subr.mxu0 0.0
    %2847 = vmatpush1.msra.mxu0 0.0
    %2848 = vmatprep.subr.mxu0 0.0
    %2849 = vmatpush1.msra.mxu0 0.0
    %2850 = vmatprep.subr.mxu0 0.0
    %2851 = vmatpush1.msra.mxu0 0.0
    %2852 = vmatprep.subr.mxu0 0.0
    %2853 = vmatpush1.msra.mxu0 0.0
    %2854 = vmatprep.subr.mxu0 0.0
    %2855 = vmatpush1.msra.mxu0 0.0
    %2856 = vmatprep.subr.mxu0 0.0
    %2857 = vmatpush1.msra.mxu0 0.0
    %2858 = vmatprep.subr.mxu0 0.0
    %2859 = vmatpush1.msra.mxu0 0.0
    %2860 = vmatprep.subr.mxu0 0.0
    %2861 = vmatpush1.msra.mxu0 0.0
    %2862 = vmatprep.subr.mxu0 0.0
    %2863 = vmatpush1.msra.mxu0 0.0
    %2864 = vmatprep.subr.mxu0 0.0
    %2865 = vmatpush1.msra.mxu0 0.0
    %2866 = vmatprep.subr.mxu0 0.0
    %2867 = vmatpush1.msra.mxu0 0.0
    %2868 = vmatprep.subr.mxu0 0.0
    %2869 = vmatpush1.msra.mxu0 0.0
    %2870 = vmatprep.subr.mxu0 0.0
    %2871 = vmatpush1.msra.mxu0 0.0
    %2872 = vmatprep.subr.mxu0 0.0
    %2873 = vmatpush1.msra.mxu0 0.0
    %2874 = vmatprep.subr.mxu0 0.0
    %2875 = vmatpush1.msra.mxu0 0.0
    %2876 = vmatprep.subr.mxu0 0.0
    %2877 = vmatpush1.msra.mxu0 0.0
    %2878 = vmatprep.subr.mxu0 0.0
    %2879 = vmatpush1.msra.mxu0 0.0
    %2880 = vmatprep.subr.mxu0 0.0
    %2881 = vmatpush1.msra.mxu0 0.0
    %2882 = vmatprep.subr.mxu0 0.0
    %2883 = vmatpush1.msra.mxu0 0.0
    %2884 = vmatprep.subr.mxu0 0.0
    %2885 = vmatpush1.msra.mxu0 0.0
    %2886 = vmatprep.subr.mxu0 0.0
    %2887 = vmatpush1.msra.mxu0 0.0
    %2888 = vmatprep.subr.mxu0 0.0
    %2889 = vmatpush1.msra.mxu0 0.0
    %2890 = vmatprep.subr.mxu0 0.0
    %2891 = vmatpush1.msra.mxu0 0.0
    %2892 = vmatprep.subr.mxu0 0.0
    %2893 = vmatpush1.msra.mxu0 0.0
    %2894 = vmatprep.subr.mxu0 0.0
    %2895 = vmatpush1.msra.mxu0 0.0
    %2896 = vmatprep.mubr.f32.mxu0 0.0
    %2897 = vmatmul.mubr.f32.gmra.mrb[0].mxu0 %v2809
    %v2898 = vpop.f32.mrb[0].mxu0
    %v2899 = vadd.f32 %v2806, %v2898
    %v2900 = vpop.f32.mrb[0].mxu0
    %2901 = vmatprep.mubr.f32.mxu0 0.0
    %2902 = vmatmul.mubr.f32.gmra.mrb[0].mxu0 %v2812
    %v2903 = vpop.f32.mrb[0].mxu0
    %v2904 = vadd.f32 %v2806, %v2903
    %v2905 = vpop.f32.mrb[0].mxu0
    %2906 = vmatprep.mubr.f32.mxu0 0.0
    %2907 = vmatmul.mubr.f32.gmra.mrb[0].mxu0 %v2815
    %v2908 = vpop.f32.mrb[0].mxu0
    %v2909 = vadd.f32 %v2806, %v2908
    %v2910 = vpop.f32.mrb[0].mxu0
    %2911 = vmatprep.mubr.f32.mxu0 0.0
    %2912 = vmatmul.mubr.f32.gmra.mrb[0].mxu0 %v2818
    %v2913 = vpop.f32.mrb[0].mxu0
    %v2914 = vadd.f32 %v2806, %v2913
    %v2915 = vpop.f32.mrb[0].mxu0
    %2916 = vmatprep.mubr.f32.mxu0 0.0
    %2917 = vmatmul.mubr.f32.gmra.mrb[0].mxu0 %v2821
    %v2918 = vpop.f32.mrb[0].mxu0
    %v2919 = vadd.f32 %v2806, %v2918
    %v2920 = vpop.f32.mrb[0].mxu0
    %2921 = vmatprep.mubr.f32.mxu0 0.0
    %2922 = vmatmul.mubr.f32.gmra.mrb[0].mxu0 %v2824
    %v2923 = vpop.f32.mrb[0].mxu0
    %v2924 = vadd.f32 %v2806, %v2923
    %v2925 = vpop.f32.mrb[0].mxu0
    %2926 = vmatprep.mubr.f32.mxu0 0.0
    %2927 = vmatmul.mubr.f32.gmra.mrb[0].mxu0 %v2827
    %v2928 = vpop.f32.mrb[0].mxu0
    %v2929 = vadd.f32 %v2806, %v2928
    %v2930 = vpop.f32.mrb[0].mxu0
    %2931 = vmatprep.mubr.f32.mxu0 0.0
    %2932 = vmatmul.mubr.f32.gmra.mrb[0].mxu0 %v2830
    %v2933 = vpop.f32.mrb[0].mxu0
    %v2934 = vadd.f32 %v2806, %v2933
    %v2935 = vpop.f32.mrb[0].mxu0
    %2936 = vdwg.mxu0
    %2937 = vst [vmem:[#allocation13] sm:$0xff] %v2899
    %2938 = vst [vmem:[#allocation13 + $0x8] sm:$0xff] %v2904
    %2939 = vst [vmem:[#allocation13 + $0x10] sm:$0xff] %v2909
    %2940 = vst [vmem:[#allocation13 + $0x18] sm:$0xff] %v2914
    %2941 = vst [vmem:[#allocation13 + $0x20] sm:$0xff] %v2919
    %2942 = vst [vmem:[#allocation13 + $0x28] sm:$0xff] %v2924
    %2943 = vst [vmem:[#allocation13 + $0x30] sm:$0xff] %v2929
    %2944 = vst [vmem:[#allocation13 + $0x38] sm:$0xff] %v2934
    // Predicated region
    $region46: #{tpu_custom_call.1} parent=1 // pred_check
      _
    $region47: #{tpu_custom_call.1} parent=1 // pred_check_branch
      %2946 = sbr.rel (0) target = $region49
    $region48: #{tpu_custom_call.1} parent=1 // pred_region
      %s2948 = ssub.s32 1024, 1024
      %2949 = vsyncadd [#allocation10], %s2948
      %s2950 = sshll.u32 [#allocation13], 4
      %s2951 = int_to_ptr.vmem [resolvable:$true] %s2950
      %2956 = dma.vmem_to_hbm [thread:$0]  %s2951, 1024, %s9, [#allocation10], 128, 128, 8
    $region49: #{tpu_custom_call.1} parent=1 // pred_fallthru
      _
    // Predicated region
    $region50: #{tpu_custom_call.1} parent=1 // pred_check
      _
    $region51: #{tpu_custom_call.1} parent=1 // pred_check_branch
      %2958 = sbr.rel (0) target = $region53
    $region52: #{tpu_custom_call.1} parent=1 // pred_region
      %2959 = dma.done [#allocation10], 1024
    $region53: #{tpu_custom_call.1} parent=1 // pred_fallthru
      _
    %2960 = vsyncpa [#allocation9], 1
    %2961 = vsyncpa [#allocation12], 1
    %2962 = vsyncpa [#allocation10], 1

</llo_original>
